<compile_context>
chip_gen: v5e
topology: v5e:2x2
jax: 0.10.0
libtpu: 0.0.40
codegen_flags: <defaults>
</compile_context>

<pallas_src>
import math

import jax
import jax.numpy as jnp
from jax import lax
from jax.experimental import pallas as pl
from jax.experimental.pallas import tpu as pltpu

BF16 = jnp.bfloat16
F32 = jnp.float32
# contract dim 1 of both operands:  (B,128) x (B,128) -> (B,B)   (== q @ k.T, no transpose)
_NT = (((1,), (1,)), ((), ()))


def _mish(x):
    # Mish: x * tanh(softplus(x))  (exp/log1p/tanh all go to the EUP slot)
    return x * jnp.tanh(jax.nn.softplus(x))


def _softmax_last(s):
    m = jnp.max(s, axis=-1, keepdims=True)
    e = jnp.exp(s - m)
    return e / jnp.sum(e, axis=-1, keepdims=True)


def att_cls_kernel(x1_ref, x2_ref,
                   w1_ref, b1_ref, w2_ref, b2_ref,
                   w3a_ref, w3b_ref, b3_ref,
                   w4_ref, b4_ref, w5_ref, b5_ref,
                   out_ref):
    Gb, B, D = x1_ref.shape          # (groups-per-block, batch, 1024)
    nc_pad = out_ref.shape[-1]

    # Flatten (Gb, B) -> (Gb*B,) so all weight-sharing linears run as one wide
    # MXU matmul.  B == 8 keeps this reshape sublane-aligned (free relayout).
    x1 = x1_ref[...].reshape(Gb * B, D)      # bf16
    x2 = x2_ref[...].reshape(Gb * B, D)

    # ln1 / ln2 : bf16 x bf16 -> f32 accumulation on the MXU
    f1 = jnp.dot(x1, w1_ref[...], preferred_element_type=F32) + b1_ref[...]
    f2 = jnp.dot(x2, w2_ref[...], preferred_element_type=F32) + b2_ref[...]

    # Per-group cross attention (q/k/v splits are 128-lane aligned).
    f1 = f1.reshape(Gb, B, 384)
    f2 = f2.reshape(Gb, B, 384)
    f1_q, f1_k, f1_v = f1[:, :, 0:128], f1[:, :, 128:256], f1[:, :, 256:384]
    f2_q, f2_k, f2_v = f2[:, :, 0:128], f2[:, :, 128:256], f2[:, :, 256:384]

    scale = 1.0 / math.sqrt(128.0)
    # batched scores: contract the feature dim directly (no .T relayout)
    s1 = jnp.einsum('gqd,gkd->gqk', f2_q.astype(BF16), f1_k.astype(BF16),
                    preferred_element_type=F32) * scale
    s2 = jnp.einsum('gqd,gkd->gqk', f1_q.astype(BF16), f2_k.astype(BF16),
                    preferred_element_type=F32) * scale
    attn1 = _softmax_last(s1)
    attn2 = _softmax_last(s2)

    out1 = jnp.einsum('gqk,gkd->gqd', attn1.astype(BF16), f1_v.astype(BF16),
                      preferred_element_type=F32)
    out2 = jnp.einsum('gqk,gkd->gqd', attn2.astype(BF16), f2_v.astype(BF16),
                      preferred_element_type=F32)

    o1 = out1.reshape(Gb * B, 128)
    o2 = out2.reshape(Gb * B, 128)

    # ln3 with the weight pre-split along its input dim: no (*,256) concat
    # copy; both K=128 partial products land in the same f32 accumulator.
    h = (jnp.dot(o1.astype(BF16), w3a_ref[...], preferred_element_type=F32)
         + jnp.dot(o2.astype(BF16), w3b_ref[...], preferred_element_type=F32)
         + b3_ref[...])
    h = _mish(h)
    h = _mish(jnp.dot(h.astype(BF16), w4_ref[...], preferred_element_type=F32)
              + b4_ref[...])
    out = jnp.dot(h.astype(BF16), w5_ref[...], preferred_element_type=F32) + b5_ref[...]

    out_ref[...] = out.reshape(Gb, B, nc_pad).astype(out_ref.dtype)


def init_params(key, num_class):
    """Raw f32 parameters with PyTorch nn.Linear init, transposed to (in, out)."""
    def linear(k, fan_in, fan_out):
        kw, kb = jax.random.split(k)
        bound = 1.0 / math.sqrt(fan_in)
        w = jax.random.uniform(kw, (fan_out, fan_in), F32, -bound, bound)
        b = jax.random.uniform(kb, (fan_out,), F32, -bound, bound)
        return w.T, b.reshape(1, fan_out)   # (in, out), (1, out)

    k1, k2, k3, k4, k5 = jax.random.split(key, 5)
    w1, b1 = linear(k1, 1024, 128 * 3)
    w2, b2 = linear(k2, 1024, 128 * 3)
    w3, b3 = linear(k3, 256, 256)
    w4, b4 = linear(k4, 256, 256)
    w5, b5 = linear(k5, 256, num_class)
    return dict(w1=w1, b1=b1, w2=w2, b2=b2, w3=w3, b3=b3,
                w4=w4, b4=b4, w5=w5, b5=b5)


def prepare_kernel_params(p, num_class):
    """bf16 weights, f32 biases, w3 split along its input dim, ln5 padded to 128 lanes."""
    nc_pad = ((num_class + 127) // 128) * 128
    w5 = jnp.pad(p["w5"], ((0, 0), (0, nc_pad - num_class)))
    b5 = jnp.pad(p["b5"], ((0, 0), (0, nc_pad - num_class)))
    kp = dict(
        w1=p["w1"].astype(BF16), b1=p["b1"],
        w2=p["w2"].astype(BF16), b2=p["b2"],
        w3a=p["w3"][:128, :].astype(BF16),
        w3b=p["w3"][128:, :].astype(BF16),
        b3=p["b3"],
        w4=p["w4"].astype(BF16), b4=p["b4"],
        w5=w5.astype(BF16), b5=b5,
    )
    return kp, nc_pad


def _pick_groups_per_block(G, B, max_rows=512):
    """Largest divisor of G such that groups_per_block * B <= max_rows."""
    gb = 1
    for d in range(1, G + 1):
        if G % d == 0 and d * B <= max_rows:
            gb = d
    return gb


def att_cls_forward_grouped(x1, x2, kp, num_class, groups_per_block=None):
    """x1, x2: (G, B, 1024) — G independent (x1, x2) batches in one pallas_call.

    Grid runs over G // groups_per_block; weights use constant index_maps so
    they are DMA'd once and stay VMEM-resident while x / out tiles stream."""
    G, B, D = x1.shape
    nc_pad = kp["w5"].shape[1]

    if groups_per_block is None:
        groups_per_block = _pick_groups_per_block(G, B)
    gb = groups_per_block
    assert G % gb == 0, "groups_per_block must divide G"

    x1 = x1.astype(BF16)
    x2 = x2.astype(BF16)

    def xmap(g):
        return (g, 0, 0)

    def wmap(g):
        return (0, 0)

    in_specs = [
        pl.BlockSpec((gb, B, D), xmap),
        pl.BlockSpec((gb, B, D), xmap),
        pl.BlockSpec((D, 384), wmap), pl.BlockSpec((1, 384), wmap),
        pl.BlockSpec((D, 384), wmap), pl.BlockSpec((1, 384), wmap),
        pl.BlockSpec((128, 256), wmap), pl.BlockSpec((128, 256), wmap),
        pl.BlockSpec((1, 256), wmap),
        pl.BlockSpec((256, 256), wmap), pl.BlockSpec((1, 256), wmap),
        pl.BlockSpec((256, nc_pad), wmap), pl.BlockSpec((1, nc_pad), wmap),
    ]
    out_specs = pl.BlockSpec((gb, B, nc_pad), xmap)

    # Advisory cost estimate so XLA can overlap neighbouring ops with this
    # DMA-dominated custom call.
    flops = G * (2 * B * D * 384 * 2          # ln1 + ln2
                 + 2 * B * B * 128 * 2        # two score matmuls
                 + 2 * B * B * 128 * 2        # two attn @ v
                 + 2 * B * 128 * 256 * 2      # ln3 (split into two dots)
                 + 2 * B * 256 * 256          # ln4
                 + 2 * B * 256 * nc_pad)      # ln5 (padded)
    transcendentals = G * (2 * B * B + 2 * B * 256 * 3)
    weight_bytes = ((2 * D * 384 + 2 * 128 * 256 + 256 * 256 + 256 * nc_pad) * 2
                    + (2 * 384 + 256 + 256 + nc_pad) * 4)
    act_bytes = G * (2 * B * D * 2 + B * nc_pad * 4)

    out = pl.pallas_call(
        att_cls_kernel,
        out_shape=jax.ShapeDtypeStruct((G, B, nc_pad), F32),
        grid=(G // gb,),
        in_specs=in_specs,
        out_specs=out_specs,
        compiler_params=pltpu.CompilerParams(
            dimension_semantics=("parallel",)),
        cost_estimate=pl.CostEstimate(
            flops=flops,
            transcendentals=transcendentals,
            bytes_accessed=weight_bytes + act_bytes),
    )(x1, x2,
      kp["w1"], kp["b1"], kp["w2"], kp["b2"],
      kp["w3a"], kp["w3b"], kp["b3"],
      kp["w4"], kp["b4"], kp["w5"], kp["b5"])
    return out[:, :, :num_class]


def att_cls_forward(x1, x2, kp, num_class):
    """Original-module semantics: one (B, 1024) pair (G = 1)."""
    return att_cls_forward_grouped(x1[None], x2[None], kp, num_class,
                                   groups_per_block=1)[0]


def att_cls_reference(x1, x2, kp, num_class):
    """Pure-JAX reference mirroring the kernel's bf16-operand / f32-accumulate math."""
    def dot(a, b):
        return jnp.dot(a.astype(BF16), b.astype(BF16), preferred_element_type=F32)

    f1 = dot(x1, kp["w1"]) + kp["b1"]
    f2 = dot(x2, kp["w2"]) + kp["b2"]
    f1_q, f1_k, f1_v = f1[:, :128], f1[:, 128:256], f1[:, 256:384]
    f2_q, f2_k, f2_v = f2[:, :128], f2[:, 128:256], f2[:, 256:384]
    scale = 1.0 / math.sqrt(128.0)
    s1 = lax.dot_general(f2_q.astype(BF16), f1_k.astype(BF16), _NT,
                         preferred_element_type=F32) * scale
    s2 = lax.dot_general(f1_q.astype(BF16), f2_k.astype(BF16), _NT,
                         preferred_element_type=F32) * scale
    attn1 = _softmax_last(s1)
    attn2 = _softmax_last(s2)
    out1 = dot(attn1, f1_v)
    out2 = dot(attn2, f2_v)
    h = dot(out1, kp["w3a"]) + dot(out2, kp["w3b"]) + kp["b3"]
    h = _mish(h)
    h = _mish(dot(h, kp["w4"]) + kp["b4"])
    out = dot(h, kp["w5"]) + kp["b5"]
    return out[:, :num_class]


if __name__ == "__main__":
    key = jax.random.PRNGKey(0)
    k_x1, k_x2, k_p, k_g = jax.random.split(key, 4)

    B = 8              # batch (attention runs over the batch axis, as in the module)
    num_class = 8      # small synthetic class count

    x1 = jax.random.normal(k_x1, (B, 1024), F32)
    x2 = jax.random.normal(k_x2, (B, 1024), F32)
    raw_params = init_params(k_p, num_class)
    kp, _ = prepare_kernel_params(raw_params, num_class)

    # Original-module forward (single (x1, x2) pair).
    out = jax.block_until_ready(att_cls_forward(x1, x2, kp, num_class))
    ref = jax.block_until_ready(att_cls_reference(x1, x2, kp, num_class))
    assert out.shape == (B, num_class)
    assert jnp.allclose(out, ref, atol=2e-3, rtol=2e-3), (
        "single-pair mismatch, max abs diff = "
        f"{float(jnp.max(jnp.abs(out - ref)))}")

    # Grouped path: several independent (x1, x2) batches in one pallas_call
    # (weights DMA'd once, kept VMEM-resident across the grid; axis parallel).
    G = 4
    kg1, kg2 = jax.random.split(k_g)
    x1g = jax.random.normal(kg1, (G, B, 1024), F32)
    x2g = jax.random.normal(kg2, (G, B, 1024), F32)
    refg = jnp.stack([att_cls_reference(x1g[g], x2g[g], kp, num_class)
                      for g in range(G)])

    # (a) 2 groups per grid step -> exercises the multi-step pipelined path.
    outg = jax.block_until_ready(
        att_cls_forward_grouped(x1g, x2g, kp, num_class, groups_per_block=2))
    assert outg.shape == (G, B, num_class)
    assert jnp.allclose(outg, refg, atol=2e-3, rtol=2e-3), (
        "grouped (gb=2) mismatch, max abs diff = "
        f"{float(jnp.max(jnp.abs(outg - refg)))}")

    # (b) auto-picked groups_per_block (all groups in one wide MXU step).
    outa = jax.block_until_ready(
        att_cls_forward_grouped(x1g, x2g, kp, num_class))
    assert jnp.allclose(outa, refg, atol=2e-3, rtol=2e-3), (
        "grouped (auto) mismatch, max abs diff = "
        f"{float(jnp.max(jnp.abs(outa - refg)))}")

    print("KERNEL_OK")
</pallas_src>

<mosaic_0001>
module attributes {stable_mosaic.version = 11 : i64} {
  func.func @att_cls_kernel(%arg0: i32, %arg1: memref<1x8x1024xbf16, #tpu.memory_space<vmem>>, %arg2: memref<1x8x1024xbf16, #tpu.memory_space<vmem>>, %arg3: memref<1024x384xbf16, #tpu.memory_space<vmem>>, %arg4: memref<1x384xf32, #tpu.memory_space<vmem>>, %arg5: memref<1024x384xbf16, #tpu.memory_space<vmem>>, %arg6: memref<1x384xf32, #tpu.memory_space<vmem>>, %arg7: memref<128x256xbf16, #tpu.memory_space<vmem>>, %arg8: memref<128x256xbf16, #tpu.memory_space<vmem>>, %arg9: memref<1x256xf32, #tpu.memory_space<vmem>>, %arg10: memref<256x256xbf16, #tpu.memory_space<vmem>>, %arg11: memref<1x256xf32, #tpu.memory_space<vmem>>, %arg12: memref<256x128xbf16, #tpu.memory_space<vmem>>, %arg13: memref<1x128xf32, #tpu.memory_space<vmem>>, %arg14: memref<1x8x128xf32, #tpu.memory_space<vmem>>) attributes {dimension_semantics = [#tpu.dimension_semantics<parallel>], iteration_bounds = array<i64: 1>, scalar_prefetch = 0 : i64, scratch_operands = 0 : i64, tpu.core_type = #tpu.core_type<tc>, window_params = [{transform_indices = @transform_0, window_bounds = array<i64: 1, 8, 1024>}, {transform_indices = @transform_1, window_bounds = array<i64: 1, 8, 1024>}, {pipeline_mode = #tpu.pipeline_mode<synchronous>, transform_indices = @transform_2, window_bounds = array<i64: 1024, 384>}, {pipeline_mode = #tpu.pipeline_mode<synchronous>, transform_indices = @transform_3, window_bounds = array<i64: 1, 384>}, {pipeline_mode = #tpu.pipeline_mode<synchronous>, transform_indices = @transform_4, window_bounds = array<i64: 1024, 384>}, {pipeline_mode = #tpu.pipeline_mode<synchronous>, transform_indices = @transform_5, window_bounds = array<i64: 1, 384>}, {pipeline_mode = #tpu.pipeline_mode<synchronous>, transform_indices = @transform_6, window_bounds = array<i64: 128, 256>}, {pipeline_mode = #tpu.pipeline_mode<synchronous>, transform_indices = @transform_7, window_bounds = array<i64: 128, 256>}, {pipeline_mode = #tpu.pipeline_mode<synchronous>, transform_indices = @transform_8, window_bounds = array<i64: 1, 256>}, {pipeline_mode = #tpu.pipeline_mode<synchronous>, transform_indices = @transform_9, window_bounds = array<i64: 256, 256>}, {pipeline_mode = #tpu.pipeline_mode<synchronous>, transform_indices = @transform_10, window_bounds = array<i64: 1, 256>}, {pipeline_mode = #tpu.pipeline_mode<synchronous>, transform_indices = @transform_11, window_bounds = array<i64: 256, 128>}, {pipeline_mode = #tpu.pipeline_mode<synchronous>, transform_indices = @transform_12, window_bounds = array<i64: 1, 128>}, {transform_indices = @transform_13, window_bounds = array<i64: 1, 8, 128>}]} {
    %c0 = arith.constant 0 : index
    %c0_0 = arith.constant 0 : index
    %c0_1 = arith.constant 0 : index
    %0 = vector.load %arg1[%c0, %c0_0, %c0_1] : memref<1x8x1024xbf16, #tpu.memory_space<vmem>>, vector<1x8x1024xbf16>
    %1 = vector.shape_cast %0 : vector<1x8x1024xbf16> to vector<8x1024xbf16>
    %c0_2 = arith.constant 0 : index
    %c0_3 = arith.constant 0 : index
    %c0_4 = arith.constant 0 : index
    %2 = vector.load %arg2[%c0_2, %c0_3, %c0_4] : memref<1x8x1024xbf16, #tpu.memory_space<vmem>>, vector<1x8x1024xbf16>
    %3 = vector.shape_cast %2 : vector<1x8x1024xbf16> to vector<8x1024xbf16>
    %c0_5 = arith.constant 0 : index
    %c0_6 = arith.constant 0 : index
    %4 = vector.load %arg3[%c0_5, %c0_6] : memref<1024x384xbf16, #tpu.memory_space<vmem>>, vector<1024x384xbf16>
    %cst = arith.constant dense<0.000000e+00> : vector<8x384xf32>
    %5 = tpu.matmul %1, %4, %cst {dimension_numbers = #tpu.dot_dimension_numbers<[1], [0], [0], [1], [0, 0, 1, 1], [], []>} : vector<8x1024xbf16>, vector<1024x384xbf16>, vector<8x384xf32> -> vector<8x384xf32>
    %c0_7 = arith.constant 0 : index
    %c0_8 = arith.constant 0 : index
    %6 = vector.load %arg4[%c0_7, %c0_8] : memref<1x384xf32, #tpu.memory_space<vmem>>, vector<1x384xf32>
    %7 = vector.broadcast %6 : vector<1x384xf32> to vector<8x384xf32>
    %8 = arith.addf %5, %7 : vector<8x384xf32>
    %c0_9 = arith.constant 0 : index
    %c0_10 = arith.constant 0 : index
    %9 = vector.load %arg5[%c0_9, %c0_10] : memref<1024x384xbf16, #tpu.memory_space<vmem>>, vector<1024x384xbf16>
    %cst_11 = arith.constant dense<0.000000e+00> : vector<8x384xf32>
    %10 = tpu.matmul %3, %9, %cst_11 {dimension_numbers = #tpu.dot_dimension_numbers<[1], [0], [0], [1], [0, 0, 1, 1], [], []>} : vector<8x1024xbf16>, vector<1024x384xbf16>, vector<8x384xf32> -> vector<8x384xf32>
    %c0_12 = arith.constant 0 : index
    %c0_13 = arith.constant 0 : index
    %11 = vector.load %arg6[%c0_12, %c0_13] : memref<1x384xf32, #tpu.memory_space<vmem>>, vector<1x384xf32>
    %12 = vector.broadcast %11 : vector<1x384xf32> to vector<8x384xf32>
    %13 = arith.addf %10, %12 : vector<8x384xf32>
    %14 = vector.shape_cast %8 : vector<8x384xf32> to vector<1x8x384xf32>
    %15 = vector.shape_cast %13 : vector<8x384xf32> to vector<1x8x384xf32>
    %16 = vector.extract_strided_slice %14 {offsets = [0, 0, 0], sizes = [1, 8, 128], strides = [1, 1, 1]} : vector<1x8x384xf32> to vector<1x8x128xf32>
    %17 = vector.extract_strided_slice %14 {offsets = [0, 0, 128], sizes = [1, 8, 128], strides = [1, 1, 1]} : vector<1x8x384xf32> to vector<1x8x128xf32>
    %18 = vector.extract_strided_slice %14 {offsets = [0, 0, 256], sizes = [1, 8, 128], strides = [1, 1, 1]} : vector<1x8x384xf32> to vector<1x8x128xf32>
    %19 = vector.extract_strided_slice %15 {offsets = [0, 0, 0], sizes = [1, 8, 128], strides = [1, 1, 1]} : vector<1x8x384xf32> to vector<1x8x128xf32>
    %20 = vector.extract_strided_slice %15 {offsets = [0, 0, 128], sizes = [1, 8, 128], strides = [1, 1, 1]} : vector<1x8x384xf32> to vector<1x8x128xf32>
    %21 = vector.extract_strided_slice %15 {offsets = [0, 0, 256], sizes = [1, 8, 128], strides = [1, 1, 1]} : vector<1x8x384xf32> to vector<1x8x128xf32>
    %22 = arith.truncf %19 : vector<1x8x128xf32> to vector<1x8x128xbf16>
    %23 = arith.truncf %17 : vector<1x8x128xf32> to vector<1x8x128xbf16>
    "tpu.trace_start"() <{level = 10 : i32, message = "gqd,gkd->gqk"}> : () -> ()
    %cst_14 = arith.constant dense<0.000000e+00> : vector<1x8x8xf32>
    %24 = tpu.matmul %22, %23, %cst_14 {dimension_numbers = #tpu.dot_dimension_numbers<[2], [2], [1], [1], [0, 0, 0, 1, 1, 1], [0], [0]>} : vector<1x8x128xbf16>, vector<1x8x128xbf16>, vector<1x8x8xf32> -> vector<1x8x8xf32>
    "tpu.trace_stop"() : () -> ()
    %cst_15 = arith.constant 0.0883883461 : f32
    %25 = vector.broadcast %cst_15 : f32 to vector<1x8x8xf32>
    %26 = arith.mulf %24, %25 : vector<1x8x8xf32>
    %27 = arith.truncf %16 : vector<1x8x128xf32> to vector<1x8x128xbf16>
    %28 = arith.truncf %20 : vector<1x8x128xf32> to vector<1x8x128xbf16>
    "tpu.trace_start"() <{level = 10 : i32, message = "gqd,gkd->gqk"}> : () -> ()
    %cst_16 = arith.constant dense<0.000000e+00> : vector<1x8x8xf32>
    %29 = tpu.matmul %27, %28, %cst_16 {dimension_numbers = #tpu.dot_dimension_numbers<[2], [2], [1], [1], [0, 0, 0, 1, 1, 1], [0], [0]>} : vector<1x8x128xbf16>, vector<1x8x128xbf16>, vector<1x8x8xf32> -> vector<1x8x8xf32>
    "tpu.trace_stop"() : () -> ()
    %cst_17 = arith.constant 0.0883883461 : f32
    %30 = vector.broadcast %cst_17 : f32 to vector<1x8x8xf32>
    %31 = arith.mulf %29, %30 : vector<1x8x8xf32>
    %cst_18 = arith.constant dense<0xFF800000> : vector<1x8xf32>
    %32 = vector.multi_reduction <maximumf>, %26, %cst_18 [2] : vector<1x8x8xf32> to vector<1x8xf32>
    %33 = vector.shape_cast %32 : vector<1x8xf32> to vector<1x8x1xf32>
    %34 = vector.broadcast %33 : vector<1x8x1xf32> to vector<1x8x8xf32>
    %35 = arith.subf %26, %34 : vector<1x8x8xf32>
    %36 = math.exp %35 : vector<1x8x8xf32>
    %cst_19 = arith.constant dense<0.000000e+00> : vector<1x8xf32>
    %37 = vector.multi_reduction <add>, %36, %cst_19 [2] : vector<1x8x8xf32> to vector<1x8xf32>
    %38 = vector.shape_cast %37 : vector<1x8xf32> to vector<1x8x1xf32>
    %39 = vector.broadcast %38 : vector<1x8x1xf32> to vector<1x8x8xf32>
    %40 = arith.divf %36, %39 : vector<1x8x8xf32>
    %cst_20 = arith.constant dense<0xFF800000> : vector<1x8xf32>
    %41 = vector.multi_reduction <maximumf>, %31, %cst_20 [2] : vector<1x8x8xf32> to vector<1x8xf32>
    %42 = vector.shape_cast %41 : vector<1x8xf32> to vector<1x8x1xf32>
    %43 = vector.broadcast %42 : vector<1x8x1xf32> to vector<1x8x8xf32>
    %44 = arith.subf %31, %43 : vector<1x8x8xf32>
    %45 = math.exp %44 : vector<1x8x8xf32>
    %cst_21 = arith.constant dense<0.000000e+00> : vector<1x8xf32>
    %46 = vector.multi_reduction <add>, %45, %cst_21 [2] : vector<1x8x8xf32> to vector<1x8xf32>
    %47 = vector.shape_cast %46 : vector<1x8xf32> to vector<1x8x1xf32>
    %48 = vector.broadcast %47 : vector<1x8x1xf32> to vector<1x8x8xf32>
    %49 = arith.divf %45, %48 : vector<1x8x8xf32>
    %50 = arith.truncf %40 : vector<1x8x8xf32> to vector<1x8x8xbf16>
    %51 = arith.truncf %18 : vector<1x8x128xf32> to vector<1x8x128xbf16>
    "tpu.trace_start"() <{level = 10 : i32, message = "gqk,gkd->gqd"}> : () -> ()
    %cst_22 = arith.constant dense<0.000000e+00> : vector<1x8x128xf32>
    %52 = tpu.matmul %50, %51, %cst_22 {dimension_numbers = #tpu.dot_dimension_numbers<[2], [1], [1], [2], [0, 0, 0, 1, 1, 2], [0], [0]>} : vector<1x8x8xbf16>, vector<1x8x128xbf16>, vector<1x8x128xf32> -> vector<1x8x128xf32>
    "tpu.trace_stop"() : () -> ()
    %53 = arith.truncf %49 : vector<1x8x8xf32> to vector<1x8x8xbf16>
    %54 = arith.truncf %21 : vector<1x8x128xf32> to vector<1x8x128xbf16>
    "tpu.trace_start"() <{level = 10 : i32, message = "gqk,gkd->gqd"}> : () -> ()
    %cst_23 = arith.constant dense<0.000000e+00> : vector<1x8x128xf32>
    %55 = tpu.matmul %53, %54, %cst_23 {dimension_numbers = #tpu.dot_dimension_numbers<[2], [1], [1], [2], [0, 0, 0, 1, 1, 2], [0], [0]>} : vector<1x8x8xbf16>, vector<1x8x128xbf16>, vector<1x8x128xf32> -> vector<1x8x128xf32>
    "tpu.trace_stop"() : () -> ()
    %56 = vector.shape_cast %52 : vector<1x8x128xf32> to vector<8x128xf32>
    %57 = vector.shape_cast %55 : vector<1x8x128xf32> to vector<8x128xf32>
    %58 = arith.truncf %56 : vector<8x128xf32> to vector<8x128xbf16>
    %c0_24 = arith.constant 0 : index
    %c0_25 = arith.constant 0 : index
    %59 = vector.load %arg7[%c0_24, %c0_25] : memref<128x256xbf16, #tpu.memory_space<vmem>>, vector<128x256xbf16>
    %cst_26 = arith.constant dense<0.000000e+00> : vector<8x256xf32>
    %60 = tpu.matmul %58, %59, %cst_26 {dimension_numbers = #tpu.dot_dimension_numbers<[1], [0], [0], [1], [0, 0, 1, 1], [], []>} : vector<8x128xbf16>, vector<128x256xbf16>, vector<8x256xf32> -> vector<8x256xf32>
    %61 = arith.truncf %57 : vector<8x128xf32> to vector<8x128xbf16>
    %c0_27 = arith.constant 0 : index
    %c0_28 = arith.constant 0 : index
    %62 = vector.load %arg8[%c0_27, %c0_28] : memref<128x256xbf16, #tpu.memory_space<vmem>>, vector<128x256xbf16>
    %cst_29 = arith.constant dense<0.000000e+00> : vector<8x256xf32>
    %63 = tpu.matmul %61, %62, %cst_29 {dimension_numbers = #tpu.dot_dimension_numbers<[1], [0], [0], [1], [0, 0, 1, 1], [], []>} : vector<8x128xbf16>, vector<128x256xbf16>, vector<8x256xf32> -> vector<8x256xf32>
    %64 = arith.addf %60, %63 : vector<8x256xf32>
    %c0_30 = arith.constant 0 : index
    %c0_31 = arith.constant 0 : index
    %65 = vector.load %arg9[%c0_30, %c0_31] : memref<1x256xf32, #tpu.memory_space<vmem>>, vector<1x256xf32>
    %66 = vector.broadcast %65 : vector<1x256xf32> to vector<8x256xf32>
    %67 = arith.addf %64, %66 : vector<8x256xf32>
    %cst_32 = arith.constant 0.000000e+00 : f32
    %68 = vector.broadcast %cst_32 : f32 to vector<8x256xf32>
    %69 = arith.maximumf %67, %68 : vector<8x256xf32>
    %70 = vector.broadcast %cst_32 : f32 to vector<8x256xf32>
    %71 = arith.subf %67, %70 : vector<8x256xf32>
    %72 = arith.cmpf one, %71, %71 : vector<8x256xf32>
    %73 = vector.broadcast %cst_32 : f32 to vector<8x256xf32>
    %74 = arith.addf %67, %73 : vector<8x256xf32>
    %75 = math.absf %71 : vector<8x256xf32>
    %cst_33 = arith.constant 0.000000e+00 : f32
    %76 = vector.broadcast %cst_33 : f32 to vector<8x256xf32>
    %77 = arith.subf %76, %75 : vector<8x256xf32>
    %78 = math.exp %77 : vector<8x256xf32>
    %79 = math.log1p %78 : vector<8x256xf32>
    %80 = arith.addf %69, %79 : vector<8x256xf32>
    %81 = arith.select %72, %74, %80 : vector<8x256xi1>, vector<8x256xf32>
    %82 = math.tanh %81 : vector<8x256xf32>
    %83 = arith.mulf %67, %82 : vector<8x256xf32>
    %84 = arith.truncf %83 : vector<8x256xf32> to vector<8x256xbf16>
    %c0_34 = arith.constant 0 : index
    %c0_35 = arith.constant 0 : index
    %85 = vector.load %arg10[%c0_34, %c0_35] : memref<256x256xbf16, #tpu.memory_space<vmem>>, vector<256x256xbf16>
    %cst_36 = arith.constant dense<0.000000e+00> : vector<8x256xf32>
    %86 = tpu.matmul %84, %85, %cst_36 {dimension_numbers = #tpu.dot_dimension_numbers<[1], [0], [0], [1], [0, 0, 1, 1], [], []>} : vector<8x256xbf16>, vector<256x256xbf16>, vector<8x256xf32> -> vector<8x256xf32>
    %c0_37 = arith.constant 0 : index
    %c0_38 = arith.constant 0 : index
    %87 = vector.load %arg11[%c0_37, %c0_38] : memref<1x256xf32, #tpu.memory_space<vmem>>, vector<1x256xf32>
    %88 = vector.broadcast %87 : vector<1x256xf32> to vector<8x256xf32>
    %89 = arith.addf %86, %88 : vector<8x256xf32>
    %cst_39 = arith.constant 0.000000e+00 : f32
    %90 = vector.broadcast %cst_39 : f32 to vector<8x256xf32>
    %91 = arith.maximumf %89, %90 : vector<8x256xf32>
    %92 = vector.broadcast %cst_39 : f32 to vector<8x256xf32>
    %93 = arith.subf %89, %92 : vector<8x256xf32>
    %94 = arith.cmpf one, %93, %93 : vector<8x256xf32>
    %95 = vector.broadcast %cst_39 : f32 to vector<8x256xf32>
    %96 = arith.addf %89, %95 : vector<8x256xf32>
    %97 = math.absf %93 : vector<8x256xf32>
    %cst_40 = arith.constant 0.000000e+00 : f32
    %98 = vector.broadcast %cst_40 : f32 to vector<8x256xf32>
    %99 = arith.subf %98, %97 : vector<8x256xf32>
    %100 = math.exp %99 : vector<8x256xf32>
    %101 = math.log1p %100 : vector<8x256xf32>
    %102 = arith.addf %91, %101 : vector<8x256xf32>
    %103 = arith.select %94, %96, %102 : vector<8x256xi1>, vector<8x256xf32>
    %104 = math.tanh %103 : vector<8x256xf32>
    %105 = arith.mulf %89, %104 : vector<8x256xf32>
    %106 = arith.truncf %105 : vector<8x256xf32> to vector<8x256xbf16>
    %c0_41 = arith.constant 0 : index
    %c0_42 = arith.constant 0 : index
    %107 = vector.load %arg12[%c0_41, %c0_42] : memref<256x128xbf16, #tpu.memory_space<vmem>>, vector<256x128xbf16>
    %cst_43 = arith.constant dense<0.000000e+00> : vector<8x128xf32>
    %108 = tpu.matmul %106, %107, %cst_43 {dimension_numbers = #tpu.dot_dimension_numbers<[1], [0], [0], [1], [0, 0, 1, 1], [], []>} : vector<8x256xbf16>, vector<256x128xbf16>, vector<8x128xf32> -> vector<8x128xf32>
    %c0_44 = arith.constant 0 : index
    %c0_45 = arith.constant 0 : index
    %109 = vector.load %arg13[%c0_44, %c0_45] : memref<1x128xf32, #tpu.memory_space<vmem>>, vector<1x128xf32>
    %110 = vector.broadcast %109 : vector<1x128xf32> to vector<8x128xf32>
    %111 = arith.addf %108, %110 : vector<8x128xf32>
    %112 = vector.shape_cast %111 : vector<8x128xf32> to vector<1x8x128xf32>
    %c0_46 = arith.constant 0 : index
    %c0_47 = arith.constant 0 : index
    %c0_48 = arith.constant 0 : index
    %113 = vector.load %arg14[%c0_46, %c0_47, %c0_48] : memref<1x8x128xf32, #tpu.memory_space<vmem>>, vector<1x8x128xf32>
    tpu.vector_store %arg14[%c0_46, %c0_47, %c0_48], %112 {strides = array<i32>} : memref<1x8x128xf32, #tpu.memory_space<vmem>>, vector<1x8x128xf32>,
    return
  }
  func.func @transform_0(%arg0: i32) -> (i32, i32, i32) {
    %c0_i32 = arith.constant 0 : i32
    %c0_i32_0 = arith.constant 0 : i32
    %c0_i32_1 = arith.constant 0 : i32
    return %arg0, %c0_i32, %c0_i32_0 : i32, i32, i32
  }
  func.func @transform_1(%arg0: i32) -> (i32, i32, i32) {
    %c0_i32 = arith.constant 0 : i32
    %c0_i32_0 = arith.constant 0 : i32
    %c0_i32_1 = arith.constant 0 : i32
    return %arg0, %c0_i32, %c0_i32_0 : i32, i32, i32
  }
  func.func @transform_2(%arg0: i32) -> (i32, i32) {
    %c0_i32 = arith.constant 0 : i32
    %c0_i32_0 = arith.constant 0 : i32
    %c0_i32_1 = arith.constant 0 : i32
    return %c0_i32, %c0_i32_0 : i32, i32
  }
  func.func @transform_3(%arg0: i32) -> (i32, i32) {
    %c0_i32 = arith.constant 0 : i32
    %c0_i32_0 = arith.constant 0 : i32
    %c0_i32_1 = arith.constant 0 : i32
    return %c0_i32, %c0_i32_0 : i32, i32
  }
  func.func @transform_4(%arg0: i32) -> (i32, i32) {
    %c0_i32 = arith.constant 0 : i32
    %c0_i32_0 = arith.constant 0 : i32
    %c0_i32_1 = arith.constant 0 : i32
    return %c0_i32, %c0_i32_0 : i32, i32
  }
  func.func @transform_5(%arg0: i32) -> (i32, i32) {
    %c0_i32 = arith.constant 0 : i32
    %c0_i32_0 = arith.constant 0 : i32
    %c0_i32_1 = arith.constant 0 : i32
    return %c0_i32, %c0_i32_0 : i32, i32
  }
  func.func @transform_6(%arg0: i32) -> (i32, i32) {
    %c0_i32 = arith.constant 0 : i32
    %c0_i32_0 = arith.constant 0 : i32
    %c0_i32_1 = arith.constant 0 : i32
    return %c0_i32, %c0_i32_0 : i32, i32
  }
  func.func @transform_7(%arg0: i32) -> (i32, i32) {
    %c0_i32 = arith.constant 0 : i32
    %c0_i32_0 = arith.constant 0 : i32
    %c0_i32_1 = arith.constant 0 : i32
    return %c0_i32, %c0_i32_0 : i32, i32
  }
  func.func @transform_8(%arg0: i32) -> (i32, i32) {
    %c0_i32 = arith.constant 0 : i32
    %c0_i32_0 = arith.constant 0 : i32
    %c0_i32_1 = arith.constant 0 : i32
    return %c0_i32, %c0_i32_0 : i32, i32
  }
  func.func @transform_9(%arg0: i32) -> (i32, i32) {
    %c0_i32 = arith.constant 0 : i32
    %c0_i32_0 = arith.constant 0 : i32
    %c0_i32_1 = arith.constant 0 : i32
    return %c0_i32, %c0_i32_0 : i32, i32
  }
  func.func @transform_10(%arg0: i32) -> (i32, i32) {
    %c0_i32 = arith.constant 0 : i32
    %c0_i32_0 = arith.constant 0 : i32
    %c0_i32_1 = arith.constant 0 : i32
    return %c0_i32, %c0_i32_0 : i32, i32
  }
  func.func @transform_11(%arg0: i32) -> (i32, i32) {
    %c0_i32 = arith.constant 0 : i32
    %c0_i32_0 = arith.constant 0 : i32
    %c0_i32_1 = arith.constant 0 : i32
    return %c0_i32, %c0_i32_0 : i32, i32
  }
  func.func @transform_12(%arg0: i32) -> (i32, i32) {
    %c0_i32 = arith.constant 0 : i32
    %c0_i32_0 = arith.constant 0 : i32
    %c0_i32_1 = arith.constant 0 : i32
    return %c0_i32, %c0_i32_0 : i32, i32
  }
  func.func @transform_13(%arg0: i32) -> (i32, i32, i32) {
    %c0_i32 = arith.constant 0 : i32
    %c0_i32_0 = arith.constant 0 : i32
    %c0_i32_1 = arith.constant 0 : i32
    return %arg0, %c0_i32, %c0_i32_0 : i32, i32, i32
  }
}

</mosaic_0001>

<llo_original>
// kernel: tpu_custom_call.1
$region0: #{tpu_custom_call.1}
  #allocation0 [shape = 'u32[]', space=smem, size = 0x4, offset = 0x4, fixed_abs, tag = 'smem constant byte address 0x4 - core index']
  #allocation1 [shape = 'u32[72,128]{1,0:T(1,128)}', space=vmem, size = 0x9000, scoped, tag = 'internal scratch']
  %s0 = inlined_call_operand.hbm [shape: bf16[1,8,1024], index: 0, kind: input, shape index: {}]
  %s1 = inlined_call_operand.hbm [shape: bf16[1,8,1024], index: 1, kind: input, shape index: {}]
  %s2 = inlined_call_operand.hbm [shape: bf16[1024,384], index: 2, kind: input, shape index: {}]
  %s3 = inlined_call_operand.hbm [shape: f32[1,384], index: 3, kind: input, shape index: {}]
  %s4 = inlined_call_operand.hbm [shape: bf16[1024,384], index: 4, kind: input, shape index: {}]
  %s5 = inlined_call_operand.vmem [shape: f32[1,384], index: 5, kind: input, shape index: {}]
  %s6 = inlined_call_operand.hbm [shape: bf16[128,256], index: 6, kind: input, shape index: {}]
  %s7 = inlined_call_operand.hbm [shape: bf16[128,256], index: 7, kind: input, shape index: {}]
  %s8 = inlined_call_operand.vmem [shape: f32[1,256], index: 8, kind: input, shape index: {}]
  %s9 = inlined_call_operand.hbm [shape: bf16[256,256], index: 9, kind: input, shape index: {}]
  %s10 = inlined_call_operand.vmem [shape: f32[1,256], index: 10, kind: input, shape index: {}]
  %s11 = inlined_call_operand.hbm [shape: bf16[256,128], index: 11, kind: input, shape index: {}]
  %s12 = inlined_call_operand.vmem [shape: f32[1,128], index: 12, kind: input, shape index: {}]
  %s13 = inlined_call_operand.hbm [shape: f32[1,8,128], index: 13, kind: output, shape index: {}]
  %s14 = sld [smem:[#allocation0]]
  $region98: #{tpu_custom_call.1} parent=0
    _
  %s16 = ssub.s32 1, %s14
  %s17 = scalar_select 0, %s16, %s14
  $region1: #{tpu_custom_call.1} parent=0
    #allocation2 [shape = 'u8[16384]{0}', space=vmem, size = 0x4000, scoped, tag = 'input window, operand 0, single buffered']
    #allocation3 [shape = 's32[1]{0}', space=sflag, size = 0x4, scoped, tag = 'scoped memory for tpu_custom_call.1']
    #allocation4 [shape = 's32[1]{0}', space=sflag, size = 0x4, scoped, tag = 'scoped memory for tpu_custom_call.1']
    #allocation5 [shape = 'u8[16384]{0}', space=vmem, size = 0x4000, scoped, tag = 'input window, operand 1, single buffered']
    #allocation6 [shape = 's32[1]{0}', space=sflag, size = 0x4, scoped, tag = 'scoped memory for tpu_custom_call.1']
    #allocation7 [shape = 'u8[786432]{0}', space=vmem, size = 0xc0000, scoped, tag = 'input window, operand 2, single buffered']
    #allocation8 [shape = 'u8[1536]{0}', space=vmem, size = 0x800, scoped, tag = 'input window, operand 3, single buffered']
    #allocation9 [shape = 's32[1]{0}', space=sflag, size = 0x4, scoped, tag = 'scoped memory for tpu_custom_call.1']
    #allocation10 [shape = 'u8[786432]{0}', space=vmem, size = 0xc0000, scoped, tag = 'input window, operand 4, single buffered']
    #allocation11 [shape = 'u8[65536]{0}', space=vmem, size = 0x10000, scoped, tag = 'input window, operand 6, single buffered']
    #allocation12 [shape = 's32[1]{0}', space=sflag, size = 0x4, scoped, tag = 'scoped memory for tpu_custom_call.1']
    #allocation13 [shape = 'u8[65536]{0}', space=vmem, size = 0x10000, scoped, tag = 'input window, operand 7, single buffered']
    #allocation14 [shape = 'u8[131072]{0}', space=vmem, size = 0x20000, scoped, tag = 'input window, operand 9, single buffered']
    #allocation15 [shape = 's32[1]{0}', space=sflag, size = 0x4, scoped, tag = 'scoped memory for tpu_custom_call.1']
    #allocation16 [shape = 'u8[65536]{0}', space=vmem, size = 0x10000, scoped, tag = 'input window, operand 11, single buffered']
    #allocation17 [shape = 'u8[4096]{0}', space=vmem, size = 0x1000, scoped, tag = 'output window, operand 0, single buffered']
    %18 = vsyncpa [#allocation3], 0
    %19 = vsyncpa [#allocation6], 0
    %20 = vsyncpa [#allocation9], 0
    %21 = vsyncpa [#allocation12], 0
    %22 = vsyncpa [#allocation15], 0
    %23 = vsyncpa [#allocation4], 0
    // Predicated region
    $region2: #{tpu_custom_call.1} parent=1 // pred_check
      _
    $region3: #{tpu_custom_call.1} parent=1 // pred_check_branch
      %25 = sbr.rel (0) target = $region5
    $region4: #{tpu_custom_call.1} parent=1 // pred_region
      %27 = vsyncadd [#allocation3], 0
      %s29 = sshll.u32 %s0, 4
      %s30 = int_to_ptr.hbm [resolvable:$true] %s29
      %s31 = sshll.u32 [#allocation2], 4
      %s32 = int_to_ptr.vmem [resolvable:$true] %s31
      %34 = dma.hbm_to_vmem [thread:$0]  %s30, 512, %s32, [#allocation3]
    $region5: #{tpu_custom_call.1} parent=1 // pred_fallthru
      _
    // Predicated region
    $region6: #{tpu_custom_call.1} parent=1 // pred_check
      _
    $region7: #{tpu_custom_call.1} parent=1 // pred_check_branch
      %36 = sbr.rel (0) target = $region9
    $region8: #{tpu_custom_call.1} parent=1 // pred_region
      %38 = vsyncadd [#allocation6], 0
      %s40 = sshll.u32 %s1, 4
      %s41 = int_to_ptr.hbm [resolvable:$true] %s40
      %s42 = sshll.u32 [#allocation5], 4
      %s43 = int_to_ptr.vmem [resolvable:$true] %s42
      %45 = dma.hbm_to_vmem [thread:$0]  %s41, 512, %s43, [#allocation6]
    $region9: #{tpu_custom_call.1} parent=1 // pred_fallthru
      _
    // Predicated region
    $region10: #{tpu_custom_call.1} parent=1 // pred_check
      _
    $region11: #{tpu_custom_call.1} parent=1 // pred_check_branch
      %47 = sbr.rel (0) target = $region13
    $region12: #{tpu_custom_call.1} parent=1 // pred_region
      %49 = vsyncadd [#allocation6], 0
      %s50 = sshll.u32 %s2, 4
      %s51 = int_to_ptr.hbm [resolvable:$true] %s50
      %s52 = sshll.u32 [#allocation7], 4
      %s53 = int_to_ptr.vmem [resolvable:$true] %s52
      %58 = dma.hbm_to_vmem [thread:$0]  %s51, 24576, %s53, [#allocation6], 192, 192, 12
    $region13: #{tpu_custom_call.1} parent=1 // pred_fallthru
      _
    // Predicated region
    $region14: #{tpu_custom_call.1} parent=1 // pred_check
      _
    $region15: #{tpu_custom_call.1} parent=1 // pred_check_branch
      %60 = sbr.rel (0) target = $region17
    $region16: #{tpu_custom_call.1} parent=1 // pred_region
      %62 = vsyncadd [#allocation9], 0
      %s64 = sshll.u32 %s3, 4
      %s65 = int_to_ptr.hbm [resolvable:$true] %s64
      %s66 = sshll.u32 [#allocation8], 4
      %s67 = int_to_ptr.vmem [resolvable:$true] %s66
      %69 = dma.hbm_to_vmem [thread:$0]  %s65, 48, %s67, [#allocation9]
    $region17: #{tpu_custom_call.1} parent=1 // pred_fallthru
      _
    // Predicated region
    $region18: #{tpu_custom_call.1} parent=1 // pred_check
      _
    $region19: #{tpu_custom_call.1} parent=1 // pred_check_branch
      %71 = sbr.rel (0) target = $region21
    $region20: #{tpu_custom_call.1} parent=1 // pred_region
      %73 = vsyncadd [#allocation9], 0
      %s74 = sshll.u32 %s4, 4
      %s75 = int_to_ptr.hbm [resolvable:$true] %s74
      %s76 = sshll.u32 [#allocation10], 4
      %s77 = int_to_ptr.vmem [resolvable:$true] %s76
      %82 = dma.hbm_to_vmem [thread:$0]  %s75, 24576, %s77, [#allocation9], 192, 192, 12
    $region21: #{tpu_custom_call.1} parent=1 // pred_fallthru
      _
    // Predicated region
    $region22: #{tpu_custom_call.1} parent=1 // pred_check
      _
    $region23: #{tpu_custom_call.1} parent=1 // pred_check_branch
      %84 = sbr.rel (0) target = $region25
    $region24: #{tpu_custom_call.1} parent=1 // pred_region
      _
    $region25: #{tpu_custom_call.1} parent=1 // pred_fallthru
      _
    // Predicated region
    $region26: #{tpu_custom_call.1} parent=1 // pred_check
      _
    $region27: #{tpu_custom_call.1} parent=1 // pred_check_branch
      %86 = sbr.rel (0) target = $region29
    $region28: #{tpu_custom_call.1} parent=1 // pred_region
      %88 = vsyncadd [#allocation12], 0
      %s89 = sshll.u32 %s6, 4
      %s90 = int_to_ptr.hbm [resolvable:$true] %s89
      %s91 = sshll.u32 [#allocation11], 4
      %s92 = int_to_ptr.vmem [resolvable:$true] %s91
      %97 = dma.hbm_to_vmem [thread:$0]  %s90, 2048, %s92, [#allocation12], 128, 128, 8
    $region29: #{tpu_custom_call.1} parent=1 // pred_fallthru
      _
    // Predicated region
    $region30: #{tpu_custom_call.1} parent=1 // pred_check
      _
    $region31: #{tpu_custom_call.1} parent=1 // pred_check_branch
      %99 = sbr.rel (0) target = $region33
    $region32: #{tpu_custom_call.1} parent=1 // pred_region
      %101 = vsyncadd [#allocation12], 0
      %s102 = sshll.u32 %s7, 4
      %s103 = int_to_ptr.hbm [resolvable:$true] %s102
      %s104 = sshll.u32 [#allocation13], 4
      %s105 = int_to_ptr.vmem [resolvable:$true] %s104
      %110 = dma.hbm_to_vmem [thread:$0]  %s103, 2048, %s105, [#allocation12], 128, 128, 8
    $region33: #{tpu_custom_call.1} parent=1 // pred_fallthru
      _
    // Predicated region
    $region34: #{tpu_custom_call.1} parent=1 // pred_check
      _
    $region35: #{tpu_custom_call.1} parent=1 // pred_check_branch
      %112 = sbr.rel (0) target = $region37
    $region36: #{tpu_custom_call.1} parent=1 // pred_region
      _
    $region37: #{tpu_custom_call.1} parent=1 // pred_fallthru
      _
    // Predicated region
    $region38: #{tpu_custom_call.1} parent=1 // pred_check
      _
    $region39: #{tpu_custom_call.1} parent=1 // pred_check_branch
      %114 = sbr.rel (0) target = $region41
    $region40: #{tpu_custom_call.1} parent=1 // pred_region
      %116 = vsyncadd [#allocation15], 0
      %s117 = sshll.u32 %s9, 4
      %s118 = int_to_ptr.hbm [resolvable:$true] %s117
      %s119 = sshll.u32 [#allocation14], 4
      %s120 = int_to_ptr.vmem [resolvable:$true] %s119
      %125 = dma.hbm_to_vmem [thread:$0]  %s118, 4096, %s120, [#allocation15], 128, 128, 8
    $region41: #{tpu_custom_call.1} parent=1 // pred_fallthru
      _
    // Predicated region
    $region42: #{tpu_custom_call.1} parent=1 // pred_check
      _
    $region43: #{tpu_custom_call.1} parent=1 // pred_check_branch
      %127 = sbr.rel (0) target = $region45
    $region44: #{tpu_custom_call.1} parent=1 // pred_region
      _
    $region45: #{tpu_custom_call.1} parent=1 // pred_fallthru
      _
    // Predicated region
    $region46: #{tpu_custom_call.1} parent=1 // pred_check
      _
    $region47: #{tpu_custom_call.1} parent=1 // pred_check_branch
      %129 = sbr.rel (0) target = $region49
    $region48: #{tpu_custom_call.1} parent=1 // pred_region
      %131 = vsyncadd [#allocation15], 0
      %s132 = sshll.u32 %s11, 4
      %s133 = int_to_ptr.hbm [resolvable:$true] %s132
      %s134 = sshll.u32 [#allocation16], 4
      %s135 = int_to_ptr.vmem [resolvable:$true] %s134
      %140 = dma.hbm_to_vmem [thread:$0]  %s133, 2048, %s135, [#allocation15], 64, 64, 4
    $region49: #{tpu_custom_call.1} parent=1 // pred_fallthru
      _
    // Predicated region
    $region50: #{tpu_custom_call.1} parent=1 // pred_check
      _
    $region51: #{tpu_custom_call.1} parent=1 // pred_check_branch
      %142 = sbr.rel (0) target = $region53
    $region52: #{tpu_custom_call.1} parent=1 // pred_region
      _
    $region53: #{tpu_custom_call.1} parent=1 // pred_fallthru
      _
    // Predicated region
    $region54: #{tpu_custom_call.1} parent=1 // pred_check
      _
    $region55: #{tpu_custom_call.1} parent=1 // pred_check_branch
      %144 = sbr.rel (0) target = $region57
    $region56: #{tpu_custom_call.1} parent=1 // pred_region
      %146 = dma.done [#allocation3], 512
    $region57: #{tpu_custom_call.1} parent=1 // pred_fallthru
      _
    // Predicated region
    $region58: #{tpu_custom_call.1} parent=1 // pred_check
      _
    $region59: #{tpu_custom_call.1} parent=1 // pred_check_branch
      %148 = sbr.rel (0) target = $region61
    $region60: #{tpu_custom_call.1} parent=1 // pred_region
      %150 = dma.done [#allocation6], 512
    $region61: #{tpu_custom_call.1} parent=1 // pred_fallthru
      _
    // Predicated region
    $region62: #{tpu_custom_call.1} parent=1 // pred_check
      _
    $region63: #{tpu_custom_call.1} parent=1 // pred_check_branch
      %152 = sbr.rel (0) target = $region65
    $region64: #{tpu_custom_call.1} parent=1 // pred_region
      %154 = dma.done [#allocation6], 24576
    $region65: #{tpu_custom_call.1} parent=1 // pred_fallthru
      _
    // Predicated region
    $region66: #{tpu_custom_call.1} parent=1 // pred_check
      _
    $region67: #{tpu_custom_call.1} parent=1 // pred_check_branch
      %156 = sbr.rel (0) target = $region69
    $region68: #{tpu_custom_call.1} parent=1 // pred_region
      %158 = dma.done [#allocation9], 48
    $region69: #{tpu_custom_call.1} parent=1 // pred_fallthru
      _
    // Predicated region
    $region70: #{tpu_custom_call.1} parent=1 // pred_check
      _
    $region71: #{tpu_custom_call.1} parent=1 // pred_check_branch
      %160 = sbr.rel (0) target = $region73
    $region72: #{tpu_custom_call.1} parent=1 // pred_region
      %162 = dma.done [#allocation9], 24576
    $region73: #{tpu_custom_call.1} parent=1 // pred_fallthru
      _
    // Predicated region
    $region74: #{tpu_custom_call.1} parent=1 // pred_check
      _
    $region75: #{tpu_custom_call.1} parent=1 // pred_check_branch
      %164 = sbr.rel (0) target = $region77
    $region76: #{tpu_custom_call.1} parent=1 // pred_region
      %166 = dma.done [#allocation12], 2048
    $region77: #{tpu_custom_call.1} parent=1 // pred_fallthru
      _
    // Predicated region
    $region78: #{tpu_custom_call.1} parent=1 // pred_check
      _
    $region79: #{tpu_custom_call.1} parent=1 // pred_check_branch
      %168 = sbr.rel (0) target = $region81
    $region80: #{tpu_custom_call.1} parent=1 // pred_region
      %170 = dma.done [#allocation12], 2048
    $region81: #{tpu_custom_call.1} parent=1 // pred_fallthru
      _
    // Predicated region
    $region82: #{tpu_custom_call.1} parent=1 // pred_check
      _
    $region83: #{tpu_custom_call.1} parent=1 // pred_check_branch
      %172 = sbr.rel (0) target = $region85
    $region84: #{tpu_custom_call.1} parent=1 // pred_region
      %174 = dma.done [#allocation15], 4096
    $region85: #{tpu_custom_call.1} parent=1 // pred_fallthru
      _
    // Predicated region
    $region86: #{tpu_custom_call.1} parent=1 // pred_check
      _
    $region87: #{tpu_custom_call.1} parent=1 // pred_check_branch
      %176 = sbr.rel (0) target = $region89
    $region88: #{tpu_custom_call.1} parent=1 // pred_region
      %178 = dma.done [#allocation15], 2048
    $region89: #{tpu_custom_call.1} parent=1 // pred_fallthru
      _
    %v180 = vld [vmem:[#allocation2] sm:$0xff]
    %v181 = vld [vmem:[#allocation2 + $0x8] sm:$0xff]
    %v182 = vld [vmem:[#allocation2 + $0x10] sm:$0xff]
    %v183 = vld [vmem:[#allocation2 + $0x18] sm:$0xff]
    %v184 = vld [vmem:[#allocation5] sm:$0xff]
    %v185 = vld [vmem:[#allocation5 + $0x8] sm:$0xff]
    %v186 = vld [vmem:[#allocation5 + $0x10] sm:$0xff]
    %v187 = vld [vmem:[#allocation5 + $0x18] sm:$0xff]
    %v188 = vld [vmem:[#allocation7] sm:$0xff]
    %v189 = vld [vmem:[#allocation7 + $0x8] sm:$0xf]
    %v190 = vld [vmem:[#allocation7 + $0xc] sm:$0xff]
    %v191 = vld [vmem:[#allocation7 + $0x14] sm:$0xf]
    %v192 = vld [vmem:[#allocation7 + $0x18] sm:$0xff]
    %v193 = vld [vmem:[#allocation7 + $0x20] sm:$0xf]
    %v194 = vld [vmem:[#allocation7 + $0x24] sm:$0xff]
    %v195 = vld [vmem:[#allocation7 + $0x2c] sm:$0xf]
    %v196 = vld [vmem:[#allocation7 + $0x30] sm:$0xff]
    %v197 = vld [vmem:[#allocation7 + $0x38] sm:$0xf]
    %v198 = vld [vmem:[#allocation7 + $0x3c] sm:$0xff]
    %v199 = vld [vmem:[#allocation7 + $0x44] sm:$0xf]
    %v200 = vld [vmem:[#allocation7 + $0x48] sm:$0xff]
    %v201 = vld [vmem:[#allocation7 + $0x50] sm:$0xf]
    %v202 = vld [vmem:[#allocation7 + $0x54] sm:$0xff]
    %v203 = vld [vmem:[#allocation7 + $0x5c] sm:$0xf]
    %v204 = vld [vmem:[#allocation7 + $0x60] sm:$0xff]
    %v205 = vld [vmem:[#allocation7 + $0x68] sm:$0xf]
    %v206 = vld [vmem:[#allocation7 + $0x6c] sm:$0xff]
    %v207 = vld [vmem:[#allocation7 + $0x74] sm:$0xf]
    %v208 = vld [vmem:[#allocation7 + $0x78] sm:$0xff]
    %v209 = vld [vmem:[#allocation7 + $0x80] sm:$0xf]
    %v210 = vld [vmem:[#allocation7 + $0x84] sm:$0xff]
    %v211 = vld [vmem:[#allocation7 + $0x8c] sm:$0xf]
    %v212 = vld [vmem:[#allocation7 + $0x90] sm:$0xff]
    %v213 = vld [vmem:[#allocation7 + $0x98] sm:$0xf]
    %v214 = vld [vmem:[#allocation7 + $0x9c] sm:$0xff]
    %v215 = vld [vmem:[#allocation7 + $0xa4] sm:$0xf]
    %v216 = vld [vmem:[#allocation7 + $0xa8] sm:$0xff]
    %v217 = vld [vmem:[#allocation7 + $0xb0] sm:$0xf]
    %v218 = vld [vmem:[#allocation7 + $0xb4] sm:$0xff]
    %v219 = vld [vmem:[#allocation7 + $0xbc] sm:$0xf]
    %v220 = vld [vmem:[#allocation7 + $0xc0] sm:$0xff]
    %v221 = vld [vmem:[#allocation7 + $0xc8] sm:$0xf]
    %v222 = vld [vmem:[#allocation7 + $0xcc] sm:$0xff]
    %v223 = vld [vmem:[#allocation7 + $0xd4] sm:$0xf]
    %v224 = vld [vmem:[#allocation7 + $0xd8] sm:$0xff]
    %v225 = vld [vmem:[#allocation7 + $0xe0] sm:$0xf]
    %v226 = vld [vmem:[#allocation7 + $0xe4] sm:$0xff]
    %v227 = vld [vmem:[#allocation7 + $0xec] sm:$0xf]
    %v228 = vld [vmem:[#allocation7 + $0xf0] sm:$0xff]
    %v229 = vld [vmem:[#allocation7 + $0xf8] sm:$0xf]
    %v230 = vld [vmem:[#allocation7 + $0xfc] sm:$0xff]
    %v231 = vld [vmem:[#allocation7 + $0x104] sm:$0xf]
    %v232 = vld [vmem:[#allocation7 + $0x108] sm:$0xff]
    %v233 = vld [vmem:[#allocation7 + $0x110] sm:$0xf]
    %v234 = vld [vmem:[#allocation7 + $0x114] sm:$0xff]
    %v235 = vld [vmem:[#allocation7 + $0x11c] sm:$0xf]
    %v236 = vld [vmem:[#allocation7 + $0x120] sm:$0xff]
    %v237 = vld [vmem:[#allocation7 + $0x128] sm:$0xf]
    %v238 = vld [vmem:[#allocation7 + $0x12c] sm:$0xff]
    %v239 = vld [vmem:[#allocation7 + $0x134] sm:$0xf]
    %v240 = vld [vmem:[#allocation7 + $0x138] sm:$0xff]
    %v241 = vld [vmem:[#allocation7 + $0x140] sm:$0xf]
    %v242 = vld [vmem:[#allocation7 + $0x144] sm:$0xff]
    %v243 = vld [vmem:[#allocation7 + $0x14c] sm:$0xf]
    %v244 = vld [vmem:[#allocation7 + $0x150] sm:$0xff]
    %v245 = vld [vmem:[#allocation7 + $0x158] sm:$0xf]
    %v246 = vld [vmem:[#allocation7 + $0x15c] sm:$0xff]
    %v247 = vld [vmem:[#allocation7 + $0x164] sm:$0xf]
    %v248 = vld [vmem:[#allocation7 + $0x168] sm:$0xff]
    %v249 = vld [vmem:[#allocation7 + $0x170] sm:$0xf]
    %v250 = vld [vmem:[#allocation7 + $0x174] sm:$0xff]
    %v251 = vld [vmem:[#allocation7 + $0x17c] sm:$0xf]
    %v252 = vld [vmem:[#allocation7 + $0x180] sm:$0xff]
    %v253 = vld [vmem:[#allocation7 + $0x188] sm:$0xf]
    %v254 = vld [vmem:[#allocation7 + $0x18c] sm:$0xff]
    %v255 = vld [vmem:[#allocation7 + $0x194] sm:$0xf]
    %v256 = vld [vmem:[#allocation7 + $0x198] sm:$0xff]
    %v257 = vld [vmem:[#allocation7 + $0x1a0] sm:$0xf]
    %v258 = vld [vmem:[#allocation7 + $0x1a4] sm:$0xff]
    %v259 = vld [vmem:[#allocation7 + $0x1ac] sm:$0xf]
    %v260 = vld [vmem:[#allocation7 + $0x1b0] sm:$0xff]
    %v261 = vld [vmem:[#allocation7 + $0x1b8] sm:$0xf]
    %v262 = vld [vmem:[#allocation7 + $0x1bc] sm:$0xff]
    %v263 = vld [vmem:[#allocation7 + $0x1c4] sm:$0xf]
    %v264 = vld [vmem:[#allocation7 + $0x1c8] sm:$0xff]
    %v265 = vld [vmem:[#allocation7 + $0x1d0] sm:$0xf]
    %v266 = vld [vmem:[#allocation7 + $0x1d4] sm:$0xff]
    %v267 = vld [vmem:[#allocation7 + $0x1dc] sm:$0xf]
    %v268 = vld [vmem:[#allocation7 + $0x1e0] sm:$0xff]
    %v269 = vld [vmem:[#allocation7 + $0x1e8] sm:$0xf]
    %v270 = vld [vmem:[#allocation7 + $0x1ec] sm:$0xff]
    %v271 = vld [vmem:[#allocation7 + $0x1f4] sm:$0xf]
    %v272 = vld [vmem:[#allocation7 + $0x1f8] sm:$0xff]
    %v273 = vld [vmem:[#allocation7 + $0x200] sm:$0xf]
    %v274 = vld [vmem:[#allocation7 + $0x204] sm:$0xff]
    %v275 = vld [vmem:[#allocation7 + $0x20c] sm:$0xf]
    %v276 = vld [vmem:[#allocation7 + $0x210] sm:$0xff]
    %v277 = vld [vmem:[#allocation7 + $0x218] sm:$0xf]
    %v278 = vld [vmem:[#allocation7 + $0x21c] sm:$0xff]
    %v279 = vld [vmem:[#allocation7 + $0x224] sm:$0xf]
    %v280 = vld [vmem:[#allocation7 + $0x228] sm:$0xff]
    %v281 = vld [vmem:[#allocation7 + $0x230] sm:$0xf]
    %v282 = vld [vmem:[#allocation7 + $0x234] sm:$0xff]
    %v283 = vld [vmem:[#allocation7 + $0x23c] sm:$0xf]
    %v284 = vld [vmem:[#allocation7 + $0x240] sm:$0xff]
    %v285 = vld [vmem:[#allocation7 + $0x248] sm:$0xf]
    %v286 = vld [vmem:[#allocation7 + $0x24c] sm:$0xff]
    %v287 = vld [vmem:[#allocation7 + $0x254] sm:$0xf]
    %v288 = vld [vmem:[#allocation7 + $0x258] sm:$0xff]
    %v289 = vld [vmem:[#allocation7 + $0x260] sm:$0xf]
    %v290 = vld [vmem:[#allocation7 + $0x264] sm:$0xff]
    %v291 = vld [vmem:[#allocation7 + $0x26c] sm:$0xf]
    %v292 = vld [vmem:[#allocation7 + $0x270] sm:$0xff]
    %v293 = vld [vmem:[#allocation7 + $0x278] sm:$0xf]
    %v294 = vld [vmem:[#allocation7 + $0x27c] sm:$0xff]
    %v295 = vld [vmem:[#allocation7 + $0x284] sm:$0xf]
    %v296 = vld [vmem:[#allocation7 + $0x288] sm:$0xff]
    %v297 = vld [vmem:[#allocation7 + $0x290] sm:$0xf]
    %v298 = vld [vmem:[#allocation7 + $0x294] sm:$0xff]
    %v299 = vld [vmem:[#allocation7 + $0x29c] sm:$0xf]
    %v300 = vld [vmem:[#allocation7 + $0x2a0] sm:$0xff]
    %v301 = vld [vmem:[#allocation7 + $0x2a8] sm:$0xf]
    %v302 = vld [vmem:[#allocation7 + $0x2ac] sm:$0xff]
    %v303 = vld [vmem:[#allocation7 + $0x2b4] sm:$0xf]
    %v304 = vld [vmem:[#allocation7 + $0x2b8] sm:$0xff]
    %v305 = vld [vmem:[#allocation7 + $0x2c0] sm:$0xf]
    %v306 = vld [vmem:[#allocation7 + $0x2c4] sm:$0xff]
    %v307 = vld [vmem:[#allocation7 + $0x2cc] sm:$0xf]
    %v308 = vld [vmem:[#allocation7 + $0x2d0] sm:$0xff]
    %v309 = vld [vmem:[#allocation7 + $0x2d8] sm:$0xf]
    %v310 = vld [vmem:[#allocation7 + $0x2dc] sm:$0xff]
    %v311 = vld [vmem:[#allocation7 + $0x2e4] sm:$0xf]
    %v312 = vld [vmem:[#allocation7 + $0x2e8] sm:$0xff]
    %v313 = vld [vmem:[#allocation7 + $0x2f0] sm:$0xf]
    %v314 = vld [vmem:[#allocation7 + $0x2f4] sm:$0xff]
    %v315 = vld [vmem:[#allocation7 + $0x2fc] sm:$0xf]
    %v316 = vld [vmem:[#allocation7 + $0x300] sm:$0xff]
    %v317 = vld [vmem:[#allocation7 + $0x308] sm:$0xf]
    %v318 = vld [vmem:[#allocation7 + $0x30c] sm:$0xff]
    %v319 = vld [vmem:[#allocation7 + $0x314] sm:$0xf]
    %v320 = vld [vmem:[#allocation7 + $0x318] sm:$0xff]
    %v321 = vld [vmem:[#allocation7 + $0x320] sm:$0xf]
    %v322 = vld [vmem:[#allocation7 + $0x324] sm:$0xff]
    %v323 = vld [vmem:[#allocation7 + $0x32c] sm:$0xf]
    %v324 = vld [vmem:[#allocation7 + $0x330] sm:$0xff]
    %v325 = vld [vmem:[#allocation7 + $0x338] sm:$0xf]
    %v326 = vld [vmem:[#allocation7 + $0x33c] sm:$0xff]
    %v327 = vld [vmem:[#allocation7 + $0x344] sm:$0xf]
    %v328 = vld [vmem:[#allocation7 + $0x348] sm:$0xff]
    %v329 = vld [vmem:[#allocation7 + $0x350] sm:$0xf]
    %v330 = vld [vmem:[#allocation7 + $0x354] sm:$0xff]
    %v331 = vld [vmem:[#allocation7 + $0x35c] sm:$0xf]
    %v332 = vld [vmem:[#allocation7 + $0x360] sm:$0xff]
    %v333 = vld [vmem:[#allocation7 + $0x368] sm:$0xf]
    %v334 = vld [vmem:[#allocation7 + $0x36c] sm:$0xff]
    %v335 = vld [vmem:[#allocation7 + $0x374] sm:$0xf]
    %v336 = vld [vmem:[#allocation7 + $0x378] sm:$0xff]
    %v337 = vld [vmem:[#allocation7 + $0x380] sm:$0xf]
    %v338 = vld [vmem:[#allocation7 + $0x384] sm:$0xff]
    %v339 = vld [vmem:[#allocation7 + $0x38c] sm:$0xf]
    %v340 = vld [vmem:[#allocation7 + $0x390] sm:$0xff]
    %v341 = vld [vmem:[#allocation7 + $0x398] sm:$0xf]
    %v342 = vld [vmem:[#allocation7 + $0x39c] sm:$0xff]
    %v343 = vld [vmem:[#allocation7 + $0x3a4] sm:$0xf]
    %v344 = vld [vmem:[#allocation7 + $0x3a8] sm:$0xff]
    %v345 = vld [vmem:[#allocation7 + $0x3b0] sm:$0xf]
    %v346 = vld [vmem:[#allocation7 + $0x3b4] sm:$0xff]
    %v347 = vld [vmem:[#allocation7 + $0x3bc] sm:$0xf]
    %v348 = vld [vmem:[#allocation7 + $0x3c0] sm:$0xff]
    %v349 = vld [vmem:[#allocation7 + $0x3c8] sm:$0xf]
    %v350 = vld [vmem:[#allocation7 + $0x3cc] sm:$0xff]
    %v351 = vld [vmem:[#allocation7 + $0x3d4] sm:$0xf]
    %v352 = vld [vmem:[#allocation7 + $0x3d8] sm:$0xff]
    %v353 = vld [vmem:[#allocation7 + $0x3e0] sm:$0xf]
    %v354 = vld [vmem:[#allocation7 + $0x3e4] sm:$0xff]
    %v355 = vld [vmem:[#allocation7 + $0x3ec] sm:$0xf]
    %v356 = vld [vmem:[#allocation7 + $0x3f0] sm:$0xff]
    %v357 = vld [vmem:[#allocation7 + $0x3f8] sm:$0xf]
    %v358 = vld [vmem:[#allocation7 + $0x3fc] sm:$0xff]
    %v359 = vld [vmem:[#allocation7 + $0x404] sm:$0xf]
    %v360 = vld [vmem:[#allocation7 + $0x408] sm:$0xff]
    %v361 = vld [vmem:[#allocation7 + $0x410] sm:$0xf]
    %v362 = vld [vmem:[#allocation7 + $0x414] sm:$0xff]
    %v363 = vld [vmem:[#allocation7 + $0x41c] sm:$0xf]
    %v364 = vld [vmem:[#allocation7 + $0x420] sm:$0xff]
    %v365 = vld [vmem:[#allocation7 + $0x428] sm:$0xf]
    %v366 = vld [vmem:[#allocation7 + $0x42c] sm:$0xff]
    %v367 = vld [vmem:[#allocation7 + $0x434] sm:$0xf]
    %v368 = vld [vmem:[#allocation7 + $0x438] sm:$0xff]
    %v369 = vld [vmem:[#allocation7 + $0x440] sm:$0xf]
    %v370 = vld [vmem:[#allocation7 + $0x444] sm:$0xff]
    %v371 = vld [vmem:[#allocation7 + $0x44c] sm:$0xf]
    %v372 = vld [vmem:[#allocation7 + $0x450] sm:$0xff]
    %v373 = vld [vmem:[#allocation7 + $0x458] sm:$0xf]
    %v374 = vld [vmem:[#allocation7 + $0x45c] sm:$0xff]
    %v375 = vld [vmem:[#allocation7 + $0x464] sm:$0xf]
    %v376 = vld [vmem:[#allocation7 + $0x468] sm:$0xff]
    %v377 = vld [vmem:[#allocation7 + $0x470] sm:$0xf]
    %v378 = vld [vmem:[#allocation7 + $0x474] sm:$0xff]
    %v379 = vld [vmem:[#allocation7 + $0x47c] sm:$0xf]
    %v380 = vld [vmem:[#allocation7 + $0x480] sm:$0xff]
    %v381 = vld [vmem:[#allocation7 + $0x488] sm:$0xf]
    %v382 = vld [vmem:[#allocation7 + $0x48c] sm:$0xff]
    %v383 = vld [vmem:[#allocation7 + $0x494] sm:$0xf]
    %v384 = vld [vmem:[#allocation7 + $0x498] sm:$0xff]
    %v385 = vld [vmem:[#allocation7 + $0x4a0] sm:$0xf]
    %v386 = vld [vmem:[#allocation7 + $0x4a4] sm:$0xff]
    %v387 = vld [vmem:[#allocation7 + $0x4ac] sm:$0xf]
    %v388 = vld [vmem:[#allocation7 + $0x4b0] sm:$0xff]
    %v389 = vld [vmem:[#allocation7 + $0x4b8] sm:$0xf]
    %v390 = vld [vmem:[#allocation7 + $0x4bc] sm:$0xff]
    %v391 = vld [vmem:[#allocation7 + $0x4c4] sm:$0xf]
    %v392 = vld [vmem:[#allocation7 + $0x4c8] sm:$0xff]
    %v393 = vld [vmem:[#allocation7 + $0x4d0] sm:$0xf]
    %v394 = vld [vmem:[#allocation7 + $0x4d4] sm:$0xff]
    %v395 = vld [vmem:[#allocation7 + $0x4dc] sm:$0xf]
    %v396 = vld [vmem:[#allocation7 + $0x4e0] sm:$0xff]
    %v397 = vld [vmem:[#allocation7 + $0x4e8] sm:$0xf]
    %v398 = vld [vmem:[#allocation7 + $0x4ec] sm:$0xff]
    %v399 = vld [vmem:[#allocation7 + $0x4f4] sm:$0xf]
    %v400 = vld [vmem:[#allocation7 + $0x4f8] sm:$0xff]
    %v401 = vld [vmem:[#allocation7 + $0x500] sm:$0xf]
    %v402 = vld [vmem:[#allocation7 + $0x504] sm:$0xff]
    %v403 = vld [vmem:[#allocation7 + $0x50c] sm:$0xf]
    %v404 = vld [vmem:[#allocation7 + $0x510] sm:$0xff]
    %v405 = vld [vmem:[#allocation7 + $0x518] sm:$0xf]
    %v406 = vld [vmem:[#allocation7 + $0x51c] sm:$0xff]
    %v407 = vld [vmem:[#allocation7 + $0x524] sm:$0xf]
    %v408 = vld [vmem:[#allocation7 + $0x528] sm:$0xff]
    %v409 = vld [vmem:[#allocation7 + $0x530] sm:$0xf]
    %v410 = vld [vmem:[#allocation7 + $0x534] sm:$0xff]
    %v411 = vld [vmem:[#allocation7 + $0x53c] sm:$0xf]
    %v412 = vld [vmem:[#allocation7 + $0x540] sm:$0xff]
    %v413 = vld [vmem:[#allocation7 + $0x548] sm:$0xf]
    %v414 = vld [vmem:[#allocation7 + $0x54c] sm:$0xff]
    %v415 = vld [vmem:[#allocation7 + $0x554] sm:$0xf]
    %v416 = vld [vmem:[#allocation7 + $0x558] sm:$0xff]
    %v417 = vld [vmem:[#allocation7 + $0x560] sm:$0xf]
    %v418 = vld [vmem:[#allocation7 + $0x564] sm:$0xff]
    %v419 = vld [vmem:[#allocation7 + $0x56c] sm:$0xf]
    %v420 = vld [vmem:[#allocation7 + $0x570] sm:$0xff]
    %v421 = vld [vmem:[#allocation7 + $0x578] sm:$0xf]
    %v422 = vld [vmem:[#allocation7 + $0x57c] sm:$0xff]
    %v423 = vld [vmem:[#allocation7 + $0x584] sm:$0xf]
    %v424 = vld [vmem:[#allocation7 + $0x588] sm:$0xff]
    %v425 = vld [vmem:[#allocation7 + $0x590] sm:$0xf]
    %v426 = vld [vmem:[#allocation7 + $0x594] sm:$0xff]
    %v427 = vld [vmem:[#allocation7 + $0x59c] sm:$0xf]
    %v428 = vld [vmem:[#allocation7 + $0x5a0] sm:$0xff]
    %v429 = vld [vmem:[#allocation7 + $0x5a8] sm:$0xf]
    %v430 = vld [vmem:[#allocation7 + $0x5ac] sm:$0xff]
    %v431 = vld [vmem:[#allocation7 + $0x5b4] sm:$0xf]
    %v432 = vld [vmem:[#allocation7 + $0x5b8] sm:$0xff]
    %v433 = vld [vmem:[#allocation7 + $0x5c0] sm:$0xf]
    %v434 = vld [vmem:[#allocation7 + $0x5c4] sm:$0xff]
    %v435 = vld [vmem:[#allocation7 + $0x5cc] sm:$0xf]
    %v436 = vld [vmem:[#allocation7 + $0x5d0] sm:$0xff]
    %v437 = vld [vmem:[#allocation7 + $0x5d8] sm:$0xf]
    %v438 = vld [vmem:[#allocation7 + $0x5dc] sm:$0xff]
    %v439 = vld [vmem:[#allocation7 + $0x5e4] sm:$0xf]
    %v440 = vld [vmem:[#allocation7 + $0x5e8] sm:$0xff]
    %v441 = vld [vmem:[#allocation7 + $0x5f0] sm:$0xf]
    %v442 = vld [vmem:[#allocation7 + $0x5f4] sm:$0xff]
    %v443 = vld [vmem:[#allocation7 + $0x5fc] sm:$0xf]
    %v444 = vld [vmem:[#allocation8] sm:$0x7]
    %v446 = vperm.slane %v444, 0
    %v447 = vperm.slane %v444, 1
    %v448 = vperm.slane %v444, 2
    %v456 = vunpack.c.l.b16 %v180
    %v457 = vunpack.c.h.b16 %v180
    %v458 = vunpack.c.l.b16 %v181
    %v459 = vunpack.c.h.b16 %v181
    %v460 = vunpack.c.l.b16 %v182
    %v461 = vunpack.c.h.b16 %v182
    %v462 = vunpack.c.l.b16 %v183
    %v463 = vunpack.c.h.b16 %v183
    %v464 = vpack.c.b16 %v456, %v456
    %v465 = vpack.c.b16 %v457, %v457
    %v466 = vpack.c.b16 %v458, %v458
    %v467 = vpack.c.b16 %v459, %v459
    %v468 = vpack.c.b16 %v460, %v460
    %v469 = vpack.c.b16 %v461, %v461
    %v470 = vpack.c.b16 %v462, %v462
    %v471 = vpack.c.b16 %v463, %v463
    %v736 = vunpack.c.l.b16 %v188
    %v737 = vunpack.c.h.b16 %v188
    %v738 = vunpack.c.l.b16 %v189
    %v739 = vunpack.c.l.b16 %v190
    %v740 = vunpack.c.h.b16 %v190
    %v741 = vunpack.c.l.b16 %v191
    %v742 = vunpack.c.l.b16 %v192
    %v743 = vunpack.c.h.b16 %v192
    %v744 = vunpack.c.l.b16 %v193
    %v745 = vunpack.c.l.b16 %v194
    %v746 = vunpack.c.h.b16 %v194
    %v747 = vunpack.c.l.b16 %v195
    %v748 = vunpack.c.l.b16 %v196
    %v749 = vunpack.c.h.b16 %v196
    %v750 = vunpack.c.l.b16 %v197
    %v751 = vunpack.c.l.b16 %v198
    %v752 = vunpack.c.h.b16 %v198
    %v753 = vunpack.c.l.b16 %v199
    %v754 = vunpack.c.l.b16 %v200
    %v755 = vunpack.c.h.b16 %v200
    %v756 = vunpack.c.l.b16 %v201
    %v757 = vunpack.c.l.b16 %v202
    %v758 = vunpack.c.h.b16 %v202
    %v759 = vunpack.c.l.b16 %v203
    %v760 = vunpack.c.l.b16 %v204
    %v761 = vunpack.c.h.b16 %v204
    %v762 = vunpack.c.l.b16 %v205
    %v763 = vunpack.c.l.b16 %v206
    %v764 = vunpack.c.h.b16 %v206
    %v765 = vunpack.c.l.b16 %v207
    %v766 = vunpack.c.l.b16 %v208
    %v767 = vunpack.c.h.b16 %v208
    %v768 = vunpack.c.l.b16 %v209
    %v769 = vunpack.c.l.b16 %v210
    %v770 = vunpack.c.h.b16 %v210
    %v771 = vunpack.c.l.b16 %v211
    %v772 = vunpack.c.l.b16 %v212
    %v773 = vunpack.c.h.b16 %v212
    %v774 = vunpack.c.l.b16 %v213
    %v775 = vunpack.c.l.b16 %v214
    %v776 = vunpack.c.h.b16 %v214
    %v777 = vunpack.c.l.b16 %v215
    %v778 = vunpack.c.l.b16 %v216
    %v779 = vunpack.c.h.b16 %v216
    %v780 = vunpack.c.l.b16 %v217
    %v781 = vunpack.c.l.b16 %v218
    %v782 = vunpack.c.h.b16 %v218
    %v783 = vunpack.c.l.b16 %v219
    %v784 = vunpack.c.l.b16 %v220
    %v785 = vunpack.c.h.b16 %v220
    %v786 = vunpack.c.l.b16 %v221
    %v787 = vunpack.c.l.b16 %v222
    %v788 = vunpack.c.h.b16 %v222
    %v789 = vunpack.c.l.b16 %v223
    %v790 = vunpack.c.l.b16 %v224
    %v791 = vunpack.c.h.b16 %v224
    %v792 = vunpack.c.l.b16 %v225
    %v793 = vunpack.c.l.b16 %v226
    %v794 = vunpack.c.h.b16 %v226
    %v795 = vunpack.c.l.b16 %v227
    %v796 = vunpack.c.l.b16 %v228
    %v797 = vunpack.c.h.b16 %v228
    %v798 = vunpack.c.l.b16 %v229
    %v799 = vunpack.c.l.b16 %v230
    %v800 = vunpack.c.h.b16 %v230
    %v801 = vunpack.c.l.b16 %v231
    %v802 = vunpack.c.l.b16 %v232
    %v803 = vunpack.c.h.b16 %v232
    %v804 = vunpack.c.l.b16 %v233
    %v805 = vunpack.c.l.b16 %v234
    %v806 = vunpack.c.h.b16 %v234
    %v807 = vunpack.c.l.b16 %v235
    %v808 = vunpack.c.l.b16 %v236
    %v809 = vunpack.c.h.b16 %v236
    %v810 = vunpack.c.l.b16 %v237
    %v811 = vunpack.c.l.b16 %v238
    %v812 = vunpack.c.h.b16 %v238
    %v813 = vunpack.c.l.b16 %v239
    %v814 = vunpack.c.l.b16 %v240
    %v815 = vunpack.c.h.b16 %v240
    %v816 = vunpack.c.l.b16 %v241
    %v817 = vunpack.c.l.b16 %v242
    %v818 = vunpack.c.h.b16 %v242
    %v819 = vunpack.c.l.b16 %v243
    %v820 = vunpack.c.l.b16 %v244
    %v821 = vunpack.c.h.b16 %v244
    %v822 = vunpack.c.l.b16 %v245
    %v823 = vunpack.c.l.b16 %v246
    %v824 = vunpack.c.h.b16 %v246
    %v825 = vunpack.c.l.b16 %v247
    %v826 = vunpack.c.l.b16 %v248
    %v827 = vunpack.c.h.b16 %v248
    %v828 = vunpack.c.l.b16 %v249
    %v829 = vunpack.c.l.b16 %v250
    %v830 = vunpack.c.h.b16 %v250
    %v831 = vunpack.c.l.b16 %v251
    %v832 = vunpack.c.l.b16 %v252
    %v833 = vunpack.c.h.b16 %v252
    %v834 = vunpack.c.l.b16 %v253
    %v835 = vunpack.c.l.b16 %v254
    %v836 = vunpack.c.h.b16 %v254
    %v837 = vunpack.c.l.b16 %v255
    %v838 = vunpack.c.l.b16 %v256
    %v839 = vunpack.c.h.b16 %v256
    %v840 = vunpack.c.l.b16 %v257
    %v841 = vunpack.c.l.b16 %v258
    %v842 = vunpack.c.h.b16 %v258
    %v843 = vunpack.c.l.b16 %v259
    %v844 = vunpack.c.l.b16 %v260
    %v845 = vunpack.c.h.b16 %v260
    %v846 = vunpack.c.l.b16 %v261
    %v847 = vunpack.c.l.b16 %v262
    %v848 = vunpack.c.h.b16 %v262
    %v849 = vunpack.c.l.b16 %v263
    %v850 = vunpack.c.l.b16 %v264
    %v851 = vunpack.c.h.b16 %v264
    %v852 = vunpack.c.l.b16 %v265
    %v853 = vunpack.c.l.b16 %v266
    %v854 = vunpack.c.h.b16 %v266
    %v855 = vunpack.c.l.b16 %v267
    %v856 = vunpack.c.l.b16 %v268
    %v857 = vunpack.c.h.b16 %v268
    %v858 = vunpack.c.l.b16 %v269
    %v859 = vunpack.c.l.b16 %v270
    %v860 = vunpack.c.h.b16 %v270
    %v861 = vunpack.c.l.b16 %v271
    %v862 = vunpack.c.l.b16 %v272
    %v863 = vunpack.c.h.b16 %v272
    %v864 = vunpack.c.l.b16 %v273
    %v865 = vunpack.c.l.b16 %v274
    %v866 = vunpack.c.h.b16 %v274
    %v867 = vunpack.c.l.b16 %v275
    %v868 = vunpack.c.l.b16 %v276
    %v869 = vunpack.c.h.b16 %v276
    %v870 = vunpack.c.l.b16 %v277
    %v871 = vunpack.c.l.b16 %v278
    %v872 = vunpack.c.h.b16 %v278
    %v873 = vunpack.c.l.b16 %v279
    %v874 = vunpack.c.l.b16 %v280
    %v875 = vunpack.c.h.b16 %v280
    %v876 = vunpack.c.l.b16 %v281
    %v877 = vunpack.c.l.b16 %v282
    %v878 = vunpack.c.h.b16 %v282
    %v879 = vunpack.c.l.b16 %v283
    %v880 = vunpack.c.l.b16 %v284
    %v881 = vunpack.c.h.b16 %v284
    %v882 = vunpack.c.l.b16 %v285
    %v883 = vunpack.c.l.b16 %v286
    %v884 = vunpack.c.h.b16 %v286
    %v885 = vunpack.c.l.b16 %v287
    %v886 = vunpack.c.l.b16 %v288
    %v887 = vunpack.c.h.b16 %v288
    %v888 = vunpack.c.l.b16 %v289
    %v889 = vunpack.c.l.b16 %v290
    %v890 = vunpack.c.h.b16 %v290
    %v891 = vunpack.c.l.b16 %v291
    %v892 = vunpack.c.l.b16 %v292
    %v893 = vunpack.c.h.b16 %v292
    %v894 = vunpack.c.l.b16 %v293
    %v895 = vunpack.c.l.b16 %v294
    %v896 = vunpack.c.h.b16 %v294
    %v897 = vunpack.c.l.b16 %v295
    %v898 = vunpack.c.l.b16 %v296
    %v899 = vunpack.c.h.b16 %v296
    %v900 = vunpack.c.l.b16 %v297
    %v901 = vunpack.c.l.b16 %v298
    %v902 = vunpack.c.h.b16 %v298
    %v903 = vunpack.c.l.b16 %v299
    %v904 = vunpack.c.l.b16 %v300
    %v905 = vunpack.c.h.b16 %v300
    %v906 = vunpack.c.l.b16 %v301
    %v907 = vunpack.c.l.b16 %v302
    %v908 = vunpack.c.h.b16 %v302
    %v909 = vunpack.c.l.b16 %v303
    %v910 = vunpack.c.l.b16 %v304
    %v911 = vunpack.c.h.b16 %v304
    %v912 = vunpack.c.l.b16 %v305
    %v913 = vunpack.c.l.b16 %v306
    %v914 = vunpack.c.h.b16 %v306
    %v915 = vunpack.c.l.b16 %v307
    %v916 = vunpack.c.l.b16 %v308
    %v917 = vunpack.c.h.b16 %v308
    %v918 = vunpack.c.l.b16 %v309
    %v919 = vunpack.c.l.b16 %v310
    %v920 = vunpack.c.h.b16 %v310
    %v921 = vunpack.c.l.b16 %v311
    %v922 = vunpack.c.l.b16 %v312
    %v923 = vunpack.c.h.b16 %v312
    %v924 = vunpack.c.l.b16 %v313
    %v925 = vunpack.c.l.b16 %v314
    %v926 = vunpack.c.h.b16 %v314
    %v927 = vunpack.c.l.b16 %v315
    %v928 = vunpack.c.l.b16 %v316
    %v929 = vunpack.c.h.b16 %v316
    %v930 = vunpack.c.l.b16 %v317
    %v931 = vunpack.c.l.b16 %v318
    %v932 = vunpack.c.h.b16 %v318
    %v933 = vunpack.c.l.b16 %v319
    %v934 = vunpack.c.l.b16 %v320
    %v935 = vunpack.c.h.b16 %v320
    %v936 = vunpack.c.l.b16 %v321
    %v937 = vunpack.c.l.b16 %v322
    %v938 = vunpack.c.h.b16 %v322
    %v939 = vunpack.c.l.b16 %v323
    %v940 = vunpack.c.l.b16 %v324
    %v941 = vunpack.c.h.b16 %v324
    %v942 = vunpack.c.l.b16 %v325
    %v943 = vunpack.c.l.b16 %v326
    %v944 = vunpack.c.h.b16 %v326
    %v945 = vunpack.c.l.b16 %v327
    %v946 = vunpack.c.l.b16 %v328
    %v947 = vunpack.c.h.b16 %v328
    %v948 = vunpack.c.l.b16 %v329
    %v949 = vunpack.c.l.b16 %v330
    %v950 = vunpack.c.h.b16 %v330
    %v951 = vunpack.c.l.b16 %v331
    %v952 = vunpack.c.l.b16 %v332
    %v953 = vunpack.c.h.b16 %v332
    %v954 = vunpack.c.l.b16 %v333
    %v955 = vunpack.c.l.b16 %v334
    %v956 = vunpack.c.h.b16 %v334
    %v957 = vunpack.c.l.b16 %v335
    %v958 = vunpack.c.l.b16 %v336
    %v959 = vunpack.c.h.b16 %v336
    %v960 = vunpack.c.l.b16 %v337
    %v961 = vunpack.c.l.b16 %v338
    %v962 = vunpack.c.h.b16 %v338
    %v963 = vunpack.c.l.b16 %v339
    %v964 = vunpack.c.l.b16 %v340
    %v965 = vunpack.c.h.b16 %v340
    %v966 = vunpack.c.l.b16 %v341
    %v967 = vunpack.c.l.b16 %v342
    %v968 = vunpack.c.h.b16 %v342
    %v969 = vunpack.c.l.b16 %v343
    %v970 = vunpack.c.l.b16 %v344
    %v971 = vunpack.c.h.b16 %v344
    %v972 = vunpack.c.l.b16 %v345
    %v973 = vunpack.c.l.b16 %v346
    %v974 = vunpack.c.h.b16 %v346
    %v975 = vunpack.c.l.b16 %v347
    %v976 = vunpack.c.l.b16 %v348
    %v977 = vunpack.c.h.b16 %v348
    %v978 = vunpack.c.l.b16 %v349
    %v979 = vunpack.c.l.b16 %v350
    %v980 = vunpack.c.h.b16 %v350
    %v981 = vunpack.c.l.b16 %v351
    %v982 = vunpack.c.l.b16 %v352
    %v983 = vunpack.c.h.b16 %v352
    %v984 = vunpack.c.l.b16 %v353
    %v985 = vunpack.c.l.b16 %v354
    %v986 = vunpack.c.h.b16 %v354
    %v987 = vunpack.c.l.b16 %v355
    %v988 = vunpack.c.l.b16 %v356
    %v989 = vunpack.c.h.b16 %v356
    %v990 = vunpack.c.l.b16 %v357
    %v991 = vunpack.c.l.b16 %v358
    %v992 = vunpack.c.h.b16 %v358
    %v993 = vunpack.c.l.b16 %v359
    %v994 = vunpack.c.l.b16 %v360
    %v995 = vunpack.c.h.b16 %v360
    %v996 = vunpack.c.l.b16 %v361
    %v997 = vunpack.c.l.b16 %v362
    %v998 = vunpack.c.h.b16 %v362
    %v999 = vunpack.c.l.b16 %v363
    %v1000 = vunpack.c.l.b16 %v364
    %v1001 = vunpack.c.h.b16 %v364
    %v1002 = vunpack.c.l.b16 %v365
    %v1003 = vunpack.c.l.b16 %v366
    %v1004 = vunpack.c.h.b16 %v366
    %v1005 = vunpack.c.l.b16 %v367
    %v1006 = vunpack.c.l.b16 %v368
    %v1007 = vunpack.c.h.b16 %v368
    %v1008 = vunpack.c.l.b16 %v369
    %v1009 = vunpack.c.l.b16 %v370
    %v1010 = vunpack.c.h.b16 %v370
    %v1011 = vunpack.c.l.b16 %v371
    %v1012 = vunpack.c.l.b16 %v372
    %v1013 = vunpack.c.h.b16 %v372
    %v1014 = vunpack.c.l.b16 %v373
    %v1015 = vunpack.c.l.b16 %v374
    %v1016 = vunpack.c.h.b16 %v374
    %v1017 = vunpack.c.l.b16 %v375
    %v1018 = vunpack.c.l.b16 %v376
    %v1019 = vunpack.c.h.b16 %v376
    %v1020 = vunpack.c.l.b16 %v377
    %v1021 = vunpack.c.l.b16 %v378
    %v1022 = vunpack.c.h.b16 %v378
    %v1023 = vunpack.c.l.b16 %v379
    %v1024 = vunpack.c.l.b16 %v380
    %v1025 = vunpack.c.h.b16 %v380
    %v1026 = vunpack.c.l.b16 %v381
    %v1027 = vunpack.c.l.b16 %v382
    %v1028 = vunpack.c.h.b16 %v382
    %v1029 = vunpack.c.l.b16 %v383
    %v1030 = vunpack.c.l.b16 %v384
    %v1031 = vunpack.c.h.b16 %v384
    %v1032 = vunpack.c.l.b16 %v385
    %v1033 = vunpack.c.l.b16 %v386
    %v1034 = vunpack.c.h.b16 %v386
    %v1035 = vunpack.c.l.b16 %v387
    %v1036 = vunpack.c.l.b16 %v388
    %v1037 = vunpack.c.h.b16 %v388
    %v1038 = vunpack.c.l.b16 %v389
    %v1039 = vunpack.c.l.b16 %v390
    %v1040 = vunpack.c.h.b16 %v390
    %v1041 = vunpack.c.l.b16 %v391
    %v1042 = vunpack.c.l.b16 %v392
    %v1043 = vunpack.c.h.b16 %v392
    %v1044 = vunpack.c.l.b16 %v393
    %v1045 = vunpack.c.l.b16 %v394
    %v1046 = vunpack.c.h.b16 %v394
    %v1047 = vunpack.c.l.b16 %v395
    %v1048 = vunpack.c.l.b16 %v396
    %v1049 = vunpack.c.h.b16 %v396
    %v1050 = vunpack.c.l.b16 %v397
    %v1051 = vunpack.c.l.b16 %v398
    %v1052 = vunpack.c.h.b16 %v398
    %v1053 = vunpack.c.l.b16 %v399
    %v1054 = vunpack.c.l.b16 %v400
    %v1055 = vunpack.c.h.b16 %v400
    %v1056 = vunpack.c.l.b16 %v401
    %v1057 = vunpack.c.l.b16 %v402
    %v1058 = vunpack.c.h.b16 %v402
    %v1059 = vunpack.c.l.b16 %v403
    %v1060 = vunpack.c.l.b16 %v404
    %v1061 = vunpack.c.h.b16 %v404
    %v1062 = vunpack.c.l.b16 %v405
    %v1063 = vunpack.c.l.b16 %v406
    %v1064 = vunpack.c.h.b16 %v406
    %v1065 = vunpack.c.l.b16 %v407
    %v1066 = vunpack.c.l.b16 %v408
    %v1067 = vunpack.c.h.b16 %v408
    %v1068 = vunpack.c.l.b16 %v409
    %v1069 = vunpack.c.l.b16 %v410
    %v1070 = vunpack.c.h.b16 %v410
    %v1071 = vunpack.c.l.b16 %v411
    %v1072 = vunpack.c.l.b16 %v412
    %v1073 = vunpack.c.h.b16 %v412
    %v1074 = vunpack.c.l.b16 %v413
    %v1075 = vunpack.c.l.b16 %v414
    %v1076 = vunpack.c.h.b16 %v414
    %v1077 = vunpack.c.l.b16 %v415
    %v1078 = vunpack.c.l.b16 %v416
    %v1079 = vunpack.c.h.b16 %v416
    %v1080 = vunpack.c.l.b16 %v417
    %v1081 = vunpack.c.l.b16 %v418
    %v1082 = vunpack.c.h.b16 %v418
    %v1083 = vunpack.c.l.b16 %v419
    %v1084 = vunpack.c.l.b16 %v420
    %v1085 = vunpack.c.h.b16 %v420
    %v1086 = vunpack.c.l.b16 %v421
    %v1087 = vunpack.c.l.b16 %v422
    %v1088 = vunpack.c.h.b16 %v422
    %v1089 = vunpack.c.l.b16 %v423
    %v1090 = vunpack.c.l.b16 %v424
    %v1091 = vunpack.c.h.b16 %v424
    %v1092 = vunpack.c.l.b16 %v425
    %v1093 = vunpack.c.l.b16 %v426
    %v1094 = vunpack.c.h.b16 %v426
    %v1095 = vunpack.c.l.b16 %v427
    %v1096 = vunpack.c.l.b16 %v428
    %v1097 = vunpack.c.h.b16 %v428
    %v1098 = vunpack.c.l.b16 %v429
    %v1099 = vunpack.c.l.b16 %v430
    %v1100 = vunpack.c.h.b16 %v430
    %v1101 = vunpack.c.l.b16 %v431
    %v1102 = vunpack.c.l.b16 %v432
    %v1103 = vunpack.c.h.b16 %v432
    %v1104 = vunpack.c.l.b16 %v433
    %v1105 = vunpack.c.l.b16 %v434
    %v1106 = vunpack.c.h.b16 %v434
    %v1107 = vunpack.c.l.b16 %v435
    %v1108 = vunpack.c.l.b16 %v436
    %v1109 = vunpack.c.h.b16 %v436
    %v1110 = vunpack.c.l.b16 %v437
    %v1111 = vunpack.c.l.b16 %v438
    %v1112 = vunpack.c.h.b16 %v438
    %v1113 = vunpack.c.l.b16 %v439
    %v1114 = vunpack.c.l.b16 %v440
    %v1115 = vunpack.c.h.b16 %v440
    %v1116 = vunpack.c.l.b16 %v441
    %v1117 = vunpack.c.l.b16 %v442
    %v1118 = vunpack.c.h.b16 %v442
    %v1119 = vunpack.c.l.b16 %v443
    %v1120 = vpack.c.b16 %v739, %v736
    %v1121 = vpack.c.b16 %v740, %v737
    %v1122 = vpack.c.b16 %v741, %v738
    %v1123 = vpack.c.b16 %v745, %v742
    %v1124 = vpack.c.b16 %v746, %v743
    %v1125 = vpack.c.b16 %v747, %v744
    %v1126 = vpack.c.b16 %v751, %v748
    %v1127 = vpack.c.b16 %v752, %v749
    %v1128 = vpack.c.b16 %v753, %v750
    %v1129 = vpack.c.b16 %v757, %v754
    %v1130 = vpack.c.b16 %v758, %v755
    %v1131 = vpack.c.b16 %v759, %v756
    %v1132 = vpack.c.b16 %v763, %v760
    %v1133 = vpack.c.b16 %v764, %v761
    %v1134 = vpack.c.b16 %v765, %v762
    %v1135 = vpack.c.b16 %v769, %v766
    %v1136 = vpack.c.b16 %v770, %v767
    %v1137 = vpack.c.b16 %v771, %v768
    %v1138 = vpack.c.b16 %v775, %v772
    %v1139 = vpack.c.b16 %v776, %v773
    %v1140 = vpack.c.b16 %v777, %v774
    %v1141 = vpack.c.b16 %v781, %v778
    %v1142 = vpack.c.b16 %v782, %v779
    %v1143 = vpack.c.b16 %v783, %v780
    %v1144 = vpack.c.b16 %v787, %v784
    %v1145 = vpack.c.b16 %v788, %v785
    %v1146 = vpack.c.b16 %v789, %v786
    %v1147 = vpack.c.b16 %v793, %v790
    %v1148 = vpack.c.b16 %v794, %v791
    %v1149 = vpack.c.b16 %v795, %v792
    %v1150 = vpack.c.b16 %v799, %v796
    %v1151 = vpack.c.b16 %v800, %v797
    %v1152 = vpack.c.b16 %v801, %v798
    %v1153 = vpack.c.b16 %v805, %v802
    %v1154 = vpack.c.b16 %v806, %v803
    %v1155 = vpack.c.b16 %v807, %v804
    %v1156 = vpack.c.b16 %v811, %v808
    %v1157 = vpack.c.b16 %v812, %v809
    %v1158 = vpack.c.b16 %v813, %v810
    %v1159 = vpack.c.b16 %v817, %v814
    %v1160 = vpack.c.b16 %v818, %v815
    %v1161 = vpack.c.b16 %v819, %v816
    %v1162 = vpack.c.b16 %v823, %v820
    %v1163 = vpack.c.b16 %v824, %v821
    %v1164 = vpack.c.b16 %v825, %v822
    %v1165 = vpack.c.b16 %v829, %v826
    %v1166 = vpack.c.b16 %v830, %v827
    %v1167 = vpack.c.b16 %v831, %v828
    %v1168 = vpack.c.b16 %v835, %v832
    %v1169 = vpack.c.b16 %v836, %v833
    %v1170 = vpack.c.b16 %v837, %v834
    %v1171 = vpack.c.b16 %v841, %v838
    %v1172 = vpack.c.b16 %v842, %v839
    %v1173 = vpack.c.b16 %v843, %v840
    %v1174 = vpack.c.b16 %v847, %v844
    %v1175 = vpack.c.b16 %v848, %v845
    %v1176 = vpack.c.b16 %v849, %v846
    %v1177 = vpack.c.b16 %v853, %v850
    %v1178 = vpack.c.b16 %v854, %v851
    %v1179 = vpack.c.b16 %v855, %v852
    %v1180 = vpack.c.b16 %v859, %v856
    %v1181 = vpack.c.b16 %v860, %v857
    %v1182 = vpack.c.b16 %v861, %v858
    %v1183 = vpack.c.b16 %v865, %v862
    %v1184 = vpack.c.b16 %v866, %v863
    %v1185 = vpack.c.b16 %v867, %v864
    %v1186 = vpack.c.b16 %v871, %v868
    %v1187 = vpack.c.b16 %v872, %v869
    %v1188 = vpack.c.b16 %v873, %v870
    %v1189 = vpack.c.b16 %v877, %v874
    %v1190 = vpack.c.b16 %v878, %v875
    %v1191 = vpack.c.b16 %v879, %v876
    %v1192 = vpack.c.b16 %v883, %v880
    %v1193 = vpack.c.b16 %v884, %v881
    %v1194 = vpack.c.b16 %v885, %v882
    %v1195 = vpack.c.b16 %v889, %v886
    %v1196 = vpack.c.b16 %v890, %v887
    %v1197 = vpack.c.b16 %v891, %v888
    %v1198 = vpack.c.b16 %v895, %v892
    %v1199 = vpack.c.b16 %v896, %v893
    %v1200 = vpack.c.b16 %v897, %v894
    %v1201 = vpack.c.b16 %v901, %v898
    %v1202 = vpack.c.b16 %v902, %v899
    %v1203 = vpack.c.b16 %v903, %v900
    %v1204 = vpack.c.b16 %v907, %v904
    %v1205 = vpack.c.b16 %v908, %v905
    %v1206 = vpack.c.b16 %v909, %v906
    %v1207 = vpack.c.b16 %v913, %v910
    %v1208 = vpack.c.b16 %v914, %v911
    %v1209 = vpack.c.b16 %v915, %v912
    %v1210 = vpack.c.b16 %v919, %v916
    %v1211 = vpack.c.b16 %v920, %v917
    %v1212 = vpack.c.b16 %v921, %v918
    %v1213 = vpack.c.b16 %v925, %v922
    %v1214 = vpack.c.b16 %v926, %v923
    %v1215 = vpack.c.b16 %v927, %v924
    %v1216 = vpack.c.b16 %v931, %v928
    %v1217 = vpack.c.b16 %v932, %v929
    %v1218 = vpack.c.b16 %v933, %v930
    %v1219 = vpack.c.b16 %v937, %v934
    %v1220 = vpack.c.b16 %v938, %v935
    %v1221 = vpack.c.b16 %v939, %v936
    %v1222 = vpack.c.b16 %v943, %v940
    %v1223 = vpack.c.b16 %v944, %v941
    %v1224 = vpack.c.b16 %v945, %v942
    %v1225 = vpack.c.b16 %v949, %v946
    %v1226 = vpack.c.b16 %v950, %v947
    %v1227 = vpack.c.b16 %v951, %v948
    %v1228 = vpack.c.b16 %v955, %v952
    %v1229 = vpack.c.b16 %v956, %v953
    %v1230 = vpack.c.b16 %v957, %v954
    %v1231 = vpack.c.b16 %v961, %v958
    %v1232 = vpack.c.b16 %v962, %v959
    %v1233 = vpack.c.b16 %v963, %v960
    %v1234 = vpack.c.b16 %v967, %v964
    %v1235 = vpack.c.b16 %v968, %v965
    %v1236 = vpack.c.b16 %v969, %v966
    %v1237 = vpack.c.b16 %v973, %v970
    %v1238 = vpack.c.b16 %v974, %v971
    %v1239 = vpack.c.b16 %v975, %v972
    %v1240 = vpack.c.b16 %v979, %v976
    %v1241 = vpack.c.b16 %v980, %v977
    %v1242 = vpack.c.b16 %v981, %v978
    %v1243 = vpack.c.b16 %v985, %v982
    %v1244 = vpack.c.b16 %v986, %v983
    %v1245 = vpack.c.b16 %v987, %v984
    %v1246 = vpack.c.b16 %v991, %v988
    %v1247 = vpack.c.b16 %v992, %v989
    %v1248 = vpack.c.b16 %v993, %v990
    %v1249 = vpack.c.b16 %v997, %v994
    %v1250 = vpack.c.b16 %v998, %v995
    %v1251 = vpack.c.b16 %v999, %v996
    %v1252 = vpack.c.b16 %v1003, %v1000
    %v1253 = vpack.c.b16 %v1004, %v1001
    %v1254 = vpack.c.b16 %v1005, %v1002
    %v1255 = vpack.c.b16 %v1009, %v1006
    %v1256 = vpack.c.b16 %v1010, %v1007
    %v1257 = vpack.c.b16 %v1011, %v1008
    %v1258 = vpack.c.b16 %v1015, %v1012
    %v1259 = vpack.c.b16 %v1016, %v1013
    %v1260 = vpack.c.b16 %v1017, %v1014
    %v1261 = vpack.c.b16 %v1021, %v1018
    %v1262 = vpack.c.b16 %v1022, %v1019
    %v1263 = vpack.c.b16 %v1023, %v1020
    %v1264 = vpack.c.b16 %v1027, %v1024
    %v1265 = vpack.c.b16 %v1028, %v1025
    %v1266 = vpack.c.b16 %v1029, %v1026
    %v1267 = vpack.c.b16 %v1033, %v1030
    %v1268 = vpack.c.b16 %v1034, %v1031
    %v1269 = vpack.c.b16 %v1035, %v1032
    %v1270 = vpack.c.b16 %v1039, %v1036
    %v1271 = vpack.c.b16 %v1040, %v1037
    %v1272 = vpack.c.b16 %v1041, %v1038
    %v1273 = vpack.c.b16 %v1045, %v1042
    %v1274 = vpack.c.b16 %v1046, %v1043
    %v1275 = vpack.c.b16 %v1047, %v1044
    %v1276 = vpack.c.b16 %v1051, %v1048
    %v1277 = vpack.c.b16 %v1052, %v1049
    %v1278 = vpack.c.b16 %v1053, %v1050
    %v1279 = vpack.c.b16 %v1057, %v1054
    %v1280 = vpack.c.b16 %v1058, %v1055
    %v1281 = vpack.c.b16 %v1059, %v1056
    %v1282 = vpack.c.b16 %v1063, %v1060
    %v1283 = vpack.c.b16 %v1064, %v1061
    %v1284 = vpack.c.b16 %v1065, %v1062
    %v1285 = vpack.c.b16 %v1069, %v1066
    %v1286 = vpack.c.b16 %v1070, %v1067
    %v1287 = vpack.c.b16 %v1071, %v1068
    %v1288 = vpack.c.b16 %v1075, %v1072
    %v1289 = vpack.c.b16 %v1076, %v1073
    %v1290 = vpack.c.b16 %v1077, %v1074
    %v1291 = vpack.c.b16 %v1081, %v1078
    %v1292 = vpack.c.b16 %v1082, %v1079
    %v1293 = vpack.c.b16 %v1083, %v1080
    %v1294 = vpack.c.b16 %v1087, %v1084
    %v1295 = vpack.c.b16 %v1088, %v1085
    %v1296 = vpack.c.b16 %v1089, %v1086
    %v1297 = vpack.c.b16 %v1093, %v1090
    %v1298 = vpack.c.b16 %v1094, %v1091
    %v1299 = vpack.c.b16 %v1095, %v1092
    %v1300 = vpack.c.b16 %v1099, %v1096
    %v1301 = vpack.c.b16 %v1100, %v1097
    %v1302 = vpack.c.b16 %v1101, %v1098
    %v1303 = vpack.c.b16 %v1105, %v1102
    %v1304 = vpack.c.b16 %v1106, %v1103
    %v1305 = vpack.c.b16 %v1107, %v1104
    %v1306 = vpack.c.b16 %v1111, %v1108
    %v1307 = vpack.c.b16 %v1112, %v1109
    %v1308 = vpack.c.b16 %v1113, %v1110
    %v1309 = vpack.c.b16 %v1117, %v1114
    %v1310 = vpack.c.b16 %v1118, %v1115
    %v1311 = vpack.c.b16 %v1119, %v1116
    %1504 = vmatpush.bf16.msra.mxu0 %v1141
    %1505 = vmatpush.bf16.msra.mxu0 %v1138
    %1506 = vmatpush.bf16.msra.mxu0 %v1135
    %1507 = vmatpush.bf16.msra.mxu0 %v1132
    %1508 = vmatpush.bf16.msra.mxu0 %v1129
    %1509 = vmatpush.bf16.msra.mxu0 %v1126
    %1510 = vmatpush.bf16.msra.mxu0 %v1123
    %1511 = vmatpush.bf16.msra.mxu0 %v1120
    %1512 = vmatmul.bf16.gmra.mxu0 %v464
    %v1513 = vpop.f32.mrf.mxu0
    %v1514 = vadd.f32 %v446, %v1513
    %v1515 = vpop.f32.mrf.mxu0
    %1516 = vdwg.mxu0
    %1517 = vmatpush.bf16.msra.mxu0 %v1165
    %1518 = vmatpush.bf16.msra.mxu0 %v1162
    %1519 = vmatpush.bf16.msra.mxu0 %v1159
    %1520 = vmatpush.bf16.msra.mxu0 %v1156
    %1521 = vmatpush.bf16.msra.mxu0 %v1153
    %1522 = vmatpush.bf16.msra.mxu0 %v1150
    %1523 = vmatpush.bf16.msra.mxu0 %v1147
    %1524 = vmatpush.bf16.msra.mxu0 %v1144
    %1525 = vmatmul.bf16.gmra.mxu0 %v465
    %v1526 = vpop.f32.mrf.mxu0
    %v1527 = vadd.f32 %v1514, %v1526
    %v1528 = vpop.f32.mrf.mxu0
    %1529 = vdwg.mxu0
    %1530 = vmatpush.bf16.msra.mxu0 %v1189
    %1531 = vmatpush.bf16.msra.mxu0 %v1186
    %1532 = vmatpush.bf16.msra.mxu0 %v1183
    %1533 = vmatpush.bf16.msra.mxu0 %v1180
    %1534 = vmatpush.bf16.msra.mxu0 %v1177
    %1535 = vmatpush.bf16.msra.mxu0 %v1174
    %1536 = vmatpush.bf16.msra.mxu0 %v1171
    %1537 = vmatpush.bf16.msra.mxu0 %v1168
    %1538 = vmatmul.bf16.gmra.mxu0 %v466
    %v1539 = vpop.f32.mrf.mxu0
    %v1540 = vadd.f32 %v1527, %v1539
    %v1541 = vpop.f32.mrf.mxu0
    %1542 = vdwg.mxu0
    %1543 = vmatpush.bf16.msra.mxu0 %v1213
    %1544 = vmatpush.bf16.msra.mxu0 %v1210
    %1545 = vmatpush.bf16.msra.mxu0 %v1207
    %1546 = vmatpush.bf16.msra.mxu0 %v1204
    %1547 = vmatpush.bf16.msra.mxu0 %v1201
    %1548 = vmatpush.bf16.msra.mxu0 %v1198
    %1549 = vmatpush.bf16.msra.mxu0 %v1195
    %1550 = vmatpush.bf16.msra.mxu0 %v1192
    %1551 = vmatmul.bf16.gmra.mxu0 %v467
    %v1552 = vpop.f32.mrf.mxu0
    %v1553 = vadd.f32 %v1540, %v1552
    %v1554 = vpop.f32.mrf.mxu0
    %1555 = vdwg.mxu0
    %1556 = vmatpush.bf16.msra.mxu0 %v1237
    %1557 = vmatpush.bf16.msra.mxu0 %v1234
    %1558 = vmatpush.bf16.msra.mxu0 %v1231
    %1559 = vmatpush.bf16.msra.mxu0 %v1228
    %1560 = vmatpush.bf16.msra.mxu0 %v1225
    %1561 = vmatpush.bf16.msra.mxu0 %v1222
    %1562 = vmatpush.bf16.msra.mxu0 %v1219
    %1563 = vmatpush.bf16.msra.mxu0 %v1216
    %1564 = vmatmul.bf16.gmra.mxu0 %v468
    %v1565 = vpop.f32.mrf.mxu0
    %v1566 = vadd.f32 %v1553, %v1565
    %v1567 = vpop.f32.mrf.mxu0
    %1568 = vdwg.mxu0
    %1569 = vmatpush.bf16.msra.mxu0 %v1261
    %1570 = vmatpush.bf16.msra.mxu0 %v1258
    %1571 = vmatpush.bf16.msra.mxu0 %v1255
    %1572 = vmatpush.bf16.msra.mxu0 %v1252
    %1573 = vmatpush.bf16.msra.mxu0 %v1249
    %1574 = vmatpush.bf16.msra.mxu0 %v1246
    %1575 = vmatpush.bf16.msra.mxu0 %v1243
    %1576 = vmatpush.bf16.msra.mxu0 %v1240
    %1577 = vmatmul.bf16.gmra.mxu0 %v469
    %v1578 = vpop.f32.mrf.mxu0
    %v1579 = vadd.f32 %v1566, %v1578
    %v1580 = vpop.f32.mrf.mxu0
    %1581 = vdwg.mxu0
    %1582 = vmatpush.bf16.msra.mxu0 %v1285
    %1583 = vmatpush.bf16.msra.mxu0 %v1282
    %1584 = vmatpush.bf16.msra.mxu0 %v1279
    %1585 = vmatpush.bf16.msra.mxu0 %v1276
    %1586 = vmatpush.bf16.msra.mxu0 %v1273
    %1587 = vmatpush.bf16.msra.mxu0 %v1270
    %1588 = vmatpush.bf16.msra.mxu0 %v1267
    %1589 = vmatpush.bf16.msra.mxu0 %v1264
    %1590 = vmatmul.bf16.gmra.mxu0 %v470
    %v1591 = vpop.f32.mrf.mxu0
    %v1592 = vadd.f32 %v1579, %v1591
    %v1593 = vpop.f32.mrf.mxu0
    %1594 = vdwg.mxu0
    %1595 = vmatpush.bf16.msra.mxu0 %v1309
    %1596 = vmatpush.bf16.msra.mxu0 %v1306
    %1597 = vmatpush.bf16.msra.mxu0 %v1303
    %1598 = vmatpush.bf16.msra.mxu0 %v1300
    %1599 = vmatpush.bf16.msra.mxu0 %v1297
    %1600 = vmatpush.bf16.msra.mxu0 %v1294
    %1601 = vmatpush.bf16.msra.mxu0 %v1291
    %1602 = vmatpush.bf16.msra.mxu0 %v1288
    %1603 = vmatmul.bf16.gmra.mxu0 %v471
    %v1604 = vpop.f32.mrf.mxu0
    %v1605 = vadd.f32 %v1592, %v1604
    %v1606 = vpop.f32.mrf.mxu0
    %1607 = vdwg.mxu0
    %1608 = vmatpush.bf16.msra.mxu0 %v1142
    %1609 = vmatpush.bf16.msra.mxu0 %v1139
    %1610 = vmatpush.bf16.msra.mxu0 %v1136
    %1611 = vmatpush.bf16.msra.mxu0 %v1133
    %1612 = vmatpush.bf16.msra.mxu0 %v1130
    %1613 = vmatpush.bf16.msra.mxu0 %v1127
    %1614 = vmatpush.bf16.msra.mxu0 %v1124
    %1615 = vmatpush.bf16.msra.mxu0 %v1121
    %1616 = vmatmul.bf16.gmra.mxu0 %v464
    %v1617 = vpop.f32.mrf.mxu0
    %v1618 = vadd.f32 %v447, %v1617
    %v1619 = vpop.f32.mrf.mxu0
    %1620 = vdwg.mxu0
    %1621 = vmatpush.bf16.msra.mxu0 %v1166
    %1622 = vmatpush.bf16.msra.mxu0 %v1163
    %1623 = vmatpush.bf16.msra.mxu0 %v1160
    %1624 = vmatpush.bf16.msra.mxu0 %v1157
    %1625 = vmatpush.bf16.msra.mxu0 %v1154
    %1626 = vmatpush.bf16.msra.mxu0 %v1151
    %1627 = vmatpush.bf16.msra.mxu0 %v1148
    %1628 = vmatpush.bf16.msra.mxu0 %v1145
    %1629 = vmatmul.bf16.gmra.mxu0 %v465
    %v1630 = vpop.f32.mrf.mxu0
    %v1631 = vadd.f32 %v1618, %v1630
    %v1632 = vpop.f32.mrf.mxu0
    %1633 = vdwg.mxu0
    %1634 = vmatpush.bf16.msra.mxu0 %v1190
    %1635 = vmatpush.bf16.msra.mxu0 %v1187
    %1636 = vmatpush.bf16.msra.mxu0 %v1184
    %1637 = vmatpush.bf16.msra.mxu0 %v1181
    %1638 = vmatpush.bf16.msra.mxu0 %v1178
    %1639 = vmatpush.bf16.msra.mxu0 %v1175
    %1640 = vmatpush.bf16.msra.mxu0 %v1172
    %1641 = vmatpush.bf16.msra.mxu0 %v1169
    %1642 = vmatmul.bf16.gmra.mxu0 %v466
    %v1643 = vpop.f32.mrf.mxu0
    %v1644 = vadd.f32 %v1631, %v1643
    %v1645 = vpop.f32.mrf.mxu0
    %1646 = vdwg.mxu0
    %1647 = vmatpush.bf16.msra.mxu0 %v1214
    %1648 = vmatpush.bf16.msra.mxu0 %v1211
    %1649 = vmatpush.bf16.msra.mxu0 %v1208
    %1650 = vmatpush.bf16.msra.mxu0 %v1205
    %1651 = vmatpush.bf16.msra.mxu0 %v1202
    %1652 = vmatpush.bf16.msra.mxu0 %v1199
    %1653 = vmatpush.bf16.msra.mxu0 %v1196
    %1654 = vmatpush.bf16.msra.mxu0 %v1193
    %1655 = vmatmul.bf16.gmra.mxu0 %v467
    %v1656 = vpop.f32.mrf.mxu0
    %v1657 = vadd.f32 %v1644, %v1656
    %v1658 = vpop.f32.mrf.mxu0
    %1659 = vdwg.mxu0
    %1660 = vmatpush.bf16.msra.mxu0 %v1238
    %1661 = vmatpush.bf16.msra.mxu0 %v1235
    %1662 = vmatpush.bf16.msra.mxu0 %v1232
    %1663 = vmatpush.bf16.msra.mxu0 %v1229
    %1664 = vmatpush.bf16.msra.mxu0 %v1226
    %1665 = vmatpush.bf16.msra.mxu0 %v1223
    %1666 = vmatpush.bf16.msra.mxu0 %v1220
    %1667 = vmatpush.bf16.msra.mxu0 %v1217
    %1668 = vmatmul.bf16.gmra.mxu0 %v468
    %v1669 = vpop.f32.mrf.mxu0
    %v1670 = vadd.f32 %v1657, %v1669
    %v1671 = vpop.f32.mrf.mxu0
    %1672 = vdwg.mxu0
    %1673 = vmatpush.bf16.msra.mxu0 %v1262
    %1674 = vmatpush.bf16.msra.mxu0 %v1259
    %1675 = vmatpush.bf16.msra.mxu0 %v1256
    %1676 = vmatpush.bf16.msra.mxu0 %v1253
    %1677 = vmatpush.bf16.msra.mxu0 %v1250
    %1678 = vmatpush.bf16.msra.mxu0 %v1247
    %1679 = vmatpush.bf16.msra.mxu0 %v1244
    %1680 = vmatpush.bf16.msra.mxu0 %v1241
    %1681 = vmatmul.bf16.gmra.mxu0 %v469
    %v1682 = vpop.f32.mrf.mxu0
    %v1683 = vadd.f32 %v1670, %v1682
    %v1684 = vpop.f32.mrf.mxu0
    %1685 = vdwg.mxu0
    %1686 = vmatpush.bf16.msra.mxu0 %v1286
    %1687 = vmatpush.bf16.msra.mxu0 %v1283
    %1688 = vmatpush.bf16.msra.mxu0 %v1280
    %1689 = vmatpush.bf16.msra.mxu0 %v1277
    %1690 = vmatpush.bf16.msra.mxu0 %v1274
    %1691 = vmatpush.bf16.msra.mxu0 %v1271
    %1692 = vmatpush.bf16.msra.mxu0 %v1268
    %1693 = vmatpush.bf16.msra.mxu0 %v1265
    %1694 = vmatmul.bf16.gmra.mxu0 %v470
    %v1695 = vpop.f32.mrf.mxu0
    %v1696 = vadd.f32 %v1683, %v1695
    %v1697 = vpop.f32.mrf.mxu0
    %1698 = vdwg.mxu0
    %1699 = vmatpush.bf16.msra.mxu0 %v1310
    %1700 = vmatpush.bf16.msra.mxu0 %v1307
    %1701 = vmatpush.bf16.msra.mxu0 %v1304
    %1702 = vmatpush.bf16.msra.mxu0 %v1301
    %1703 = vmatpush.bf16.msra.mxu0 %v1298
    %1704 = vmatpush.bf16.msra.mxu0 %v1295
    %1705 = vmatpush.bf16.msra.mxu0 %v1292
    %1706 = vmatpush.bf16.msra.mxu0 %v1289
    %1707 = vmatmul.bf16.gmra.mxu0 %v471
    %v1708 = vpop.f32.mrf.mxu0
    %v1709 = vadd.f32 %v1696, %v1708
    %v1710 = vpop.f32.mrf.mxu0
    %1711 = vdwg.mxu0
    %1712 = vmatpush.bf16.msra.mxu0 %v1143
    %1713 = vmatpush.bf16.msra.mxu0 %v1140
    %1714 = vmatpush.bf16.msra.mxu0 %v1137
    %1715 = vmatpush.bf16.msra.mxu0 %v1134
    %1716 = vmatpush.bf16.msra.mxu0 %v1131
    %1717 = vmatpush.bf16.msra.mxu0 %v1128
    %1718 = vmatpush.bf16.msra.mxu0 %v1125
    %1719 = vmatpush.bf16.msra.mxu0 %v1122
    %1720 = vmatmul.bf16.gmra.mxu0 %v464
    %v1721 = vpop.f32.mrf.mxu0
    %v1722 = vadd.f32 %v448, %v1721
    %v1723 = vpop.f32.mrf.mxu0
    %1724 = vdwg.mxu0
    %1725 = vmatpush.bf16.msra.mxu0 %v1167
    %1726 = vmatpush.bf16.msra.mxu0 %v1164
    %1727 = vmatpush.bf16.msra.mxu0 %v1161
    %1728 = vmatpush.bf16.msra.mxu0 %v1158
    %1729 = vmatpush.bf16.msra.mxu0 %v1155
    %1730 = vmatpush.bf16.msra.mxu0 %v1152
    %1731 = vmatpush.bf16.msra.mxu0 %v1149
    %1732 = vmatpush.bf16.msra.mxu0 %v1146
    %1733 = vmatmul.bf16.gmra.mxu0 %v465
    %v1734 = vpop.f32.mrf.mxu0
    %v1735 = vadd.f32 %v1722, %v1734
    %v1736 = vpop.f32.mrf.mxu0
    %1737 = vdwg.mxu0
    %1738 = vmatpush.bf16.msra.mxu0 %v1191
    %1739 = vmatpush.bf16.msra.mxu0 %v1188
    %1740 = vmatpush.bf16.msra.mxu0 %v1185
    %1741 = vmatpush.bf16.msra.mxu0 %v1182
    %1742 = vmatpush.bf16.msra.mxu0 %v1179
    %1743 = vmatpush.bf16.msra.mxu0 %v1176
    %1744 = vmatpush.bf16.msra.mxu0 %v1173
    %1745 = vmatpush.bf16.msra.mxu0 %v1170
    %1746 = vmatmul.bf16.gmra.mxu0 %v466
    %v1747 = vpop.f32.mrf.mxu0
    %v1748 = vadd.f32 %v1735, %v1747
    %v1749 = vpop.f32.mrf.mxu0
    %1750 = vdwg.mxu0
    %1751 = vmatpush.bf16.msra.mxu0 %v1215
    %1752 = vmatpush.bf16.msra.mxu0 %v1212
    %1753 = vmatpush.bf16.msra.mxu0 %v1209
    %1754 = vmatpush.bf16.msra.mxu0 %v1206
    %1755 = vmatpush.bf16.msra.mxu0 %v1203
    %1756 = vmatpush.bf16.msra.mxu0 %v1200
    %1757 = vmatpush.bf16.msra.mxu0 %v1197
    %1758 = vmatpush.bf16.msra.mxu0 %v1194
    %1759 = vmatmul.bf16.gmra.mxu0 %v467
    %v1760 = vpop.f32.mrf.mxu0
    %v1761 = vadd.f32 %v1748, %v1760
    %v1762 = vpop.f32.mrf.mxu0
    %1763 = vdwg.mxu0
    %1764 = vmatpush.bf16.msra.mxu0 %v1239
    %1765 = vmatpush.bf16.msra.mxu0 %v1236
    %1766 = vmatpush.bf16.msra.mxu0 %v1233
    %1767 = vmatpush.bf16.msra.mxu0 %v1230
    %1768 = vmatpush.bf16.msra.mxu0 %v1227
    %1769 = vmatpush.bf16.msra.mxu0 %v1224
    %1770 = vmatpush.bf16.msra.mxu0 %v1221
    %1771 = vmatpush.bf16.msra.mxu0 %v1218
    %1772 = vmatmul.bf16.gmra.mxu0 %v468
    %v1773 = vpop.f32.mrf.mxu0
    %v1774 = vadd.f32 %v1761, %v1773
    %v1775 = vpop.f32.mrf.mxu0
    %1776 = vdwg.mxu0
    %1777 = vmatpush.bf16.msra.mxu0 %v1263
    %1778 = vmatpush.bf16.msra.mxu0 %v1260
    %1779 = vmatpush.bf16.msra.mxu0 %v1257
    %1780 = vmatpush.bf16.msra.mxu0 %v1254
    %1781 = vmatpush.bf16.msra.mxu0 %v1251
    %1782 = vmatpush.bf16.msra.mxu0 %v1248
    %1783 = vmatpush.bf16.msra.mxu0 %v1245
    %1784 = vmatpush.bf16.msra.mxu0 %v1242
    %1785 = vmatmul.bf16.gmra.mxu0 %v469
    %v1786 = vpop.f32.mrf.mxu0
    %v1787 = vadd.f32 %v1774, %v1786
    %v1788 = vpop.f32.mrf.mxu0
    %1789 = vdwg.mxu0
    %1790 = vmatpush.bf16.msra.mxu0 %v1287
    %1791 = vmatpush.bf16.msra.mxu0 %v1284
    %1792 = vmatpush.bf16.msra.mxu0 %v1281
    %1793 = vmatpush.bf16.msra.mxu0 %v1278
    %1794 = vmatpush.bf16.msra.mxu0 %v1275
    %1795 = vmatpush.bf16.msra.mxu0 %v1272
    %1796 = vmatpush.bf16.msra.mxu0 %v1269
    %1797 = vmatpush.bf16.msra.mxu0 %v1266
    %1798 = vmatmul.bf16.gmra.mxu0 %v470
    %v1799 = vpop.f32.mrf.mxu0
    %v1800 = vadd.f32 %v1787, %v1799
    %v1801 = vpop.f32.mrf.mxu0
    %1802 = vdwg.mxu0
    %1803 = vmatpush.bf16.msra.mxu0 %v1311
    %1804 = vmatpush.bf16.msra.mxu0 %v1308
    %1805 = vmatpush.bf16.msra.mxu0 %v1305
    %1806 = vmatpush.bf16.msra.mxu0 %v1302
    %1807 = vmatpush.bf16.msra.mxu0 %v1299
    %1808 = vmatpush.bf16.msra.mxu0 %v1296
    %1809 = vmatpush.bf16.msra.mxu0 %v1293
    %1810 = vmatpush.bf16.msra.mxu0 %v1290
    %1811 = vmatmul.bf16.gmra.mxu0 %v471
    %v1812 = vpop.f32.mrf.mxu0
    %v1813 = vadd.f32 %v1800, %v1812
    %v1814 = vpop.f32.mrf.mxu0
    %1815 = vdwg.mxu0
    %v1816 = vld [vmem:[#allocation10] sm:$0xff]
    %v1817 = vld [vmem:[#allocation10 + $0x8] sm:$0xf]
    %v1818 = vld [vmem:[#allocation10 + $0xc] sm:$0xff]
    %v1819 = vld [vmem:[#allocation10 + $0x14] sm:$0xf]
    %v1820 = vld [vmem:[#allocation10 + $0x18] sm:$0xff]
    %v1821 = vld [vmem:[#allocation10 + $0x20] sm:$0xf]
    %v1822 = vld [vmem:[#allocation10 + $0x24] sm:$0xff]
    %v1823 = vld [vmem:[#allocation10 + $0x2c] sm:$0xf]
    %v1824 = vld [vmem:[#allocation10 + $0x30] sm:$0xff]
    %v1825 = vld [vmem:[#allocation10 + $0x38] sm:$0xf]
    %v1826 = vld [vmem:[#allocation10 + $0x3c] sm:$0xff]
    %v1827 = vld [vmem:[#allocation10 + $0x44] sm:$0xf]
    %v1828 = vld [vmem:[#allocation10 + $0x48] sm:$0xff]
    %v1829 = vld [vmem:[#allocation10 + $0x50] sm:$0xf]
    %v1830 = vld [vmem:[#allocation10 + $0x54] sm:$0xff]
    %v1831 = vld [vmem:[#allocation10 + $0x5c] sm:$0xf]
    %v1832 = vld [vmem:[#allocation10 + $0x60] sm:$0xff]
    %v1833 = vld [vmem:[#allocation10 + $0x68] sm:$0xf]
    %v1834 = vld [vmem:[#allocation10 + $0x6c] sm:$0xff]
    %v1835 = vld [vmem:[#allocation10 + $0x74] sm:$0xf]
    %v1836 = vld [vmem:[#allocation10 + $0x78] sm:$0xff]
    %v1837 = vld [vmem:[#allocation10 + $0x80] sm:$0xf]
    %v1838 = vld [vmem:[#allocation10 + $0x84] sm:$0xff]
    %v1839 = vld [vmem:[#allocation10 + $0x8c] sm:$0xf]
    %v1840 = vld [vmem:[#allocation10 + $0x90] sm:$0xff]
    %v1841 = vld [vmem:[#allocation10 + $0x98] sm:$0xf]
    %v1842 = vld [vmem:[#allocation10 + $0x9c] sm:$0xff]
    %v1843 = vld [vmem:[#allocation10 + $0xa4] sm:$0xf]
    %v1844 = vld [vmem:[#allocation10 + $0xa8] sm:$0xff]
    %v1845 = vld [vmem:[#allocation10 + $0xb0] sm:$0xf]
    %v1846 = vld [vmem:[#allocation10 + $0xb4] sm:$0xff]
    %v1847 = vld [vmem:[#allocation10 + $0xbc] sm:$0xf]
    %v1848 = vld [vmem:[#allocation10 + $0xc0] sm:$0xff]
    %v1849 = vld [vmem:[#allocation10 + $0xc8] sm:$0xf]
    %v1850 = vld [vmem:[#allocation10 + $0xcc] sm:$0xff]
    %v1851 = vld [vmem:[#allocation10 + $0xd4] sm:$0xf]
    %v1852 = vld [vmem:[#allocation10 + $0xd8] sm:$0xff]
    %v1853 = vld [vmem:[#allocation10 + $0xe0] sm:$0xf]
    %v1854 = vld [vmem:[#allocation10 + $0xe4] sm:$0xff]
    %v1855 = vld [vmem:[#allocation10 + $0xec] sm:$0xf]
    %v1856 = vld [vmem:[#allocation10 + $0xf0] sm:$0xff]
    %v1857 = vld [vmem:[#allocation10 + $0xf8] sm:$0xf]
    %v1858 = vld [vmem:[#allocation10 + $0xfc] sm:$0xff]
    %v1859 = vld [vmem:[#allocation10 + $0x104] sm:$0xf]
    %v1860 = vld [vmem:[#allocation10 + $0x108] sm:$0xff]
    %v1861 = vld [vmem:[#allocation10 + $0x110] sm:$0xf]
    %v1862 = vld [vmem:[#allocation10 + $0x114] sm:$0xff]
    %v1863 = vld [vmem:[#allocation10 + $0x11c] sm:$0xf]
    %v1864 = vld [vmem:[#allocation10 + $0x120] sm:$0xff]
    %v1865 = vld [vmem:[#allocation10 + $0x128] sm:$0xf]
    %v1866 = vld [vmem:[#allocation10 + $0x12c] sm:$0xff]
    %v1867 = vld [vmem:[#allocation10 + $0x134] sm:$0xf]
    %v1868 = vld [vmem:[#allocation10 + $0x138] sm:$0xff]
    %v1869 = vld [vmem:[#allocation10 + $0x140] sm:$0xf]
    %v1870 = vld [vmem:[#allocation10 + $0x144] sm:$0xff]
    %v1871 = vld [vmem:[#allocation10 + $0x14c] sm:$0xf]
    %v1872 = vld [vmem:[#allocation10 + $0x150] sm:$0xff]
    %v1873 = vld [vmem:[#allocation10 + $0x158] sm:$0xf]
    %v1874 = vld [vmem:[#allocation10 + $0x15c] sm:$0xff]
    %v1875 = vld [vmem:[#allocation10 + $0x164] sm:$0xf]
    %v1876 = vld [vmem:[#allocation10 + $0x168] sm:$0xff]
    %v1877 = vld [vmem:[#allocation10 + $0x170] sm:$0xf]
    %v1878 = vld [vmem:[#allocation10 + $0x174] sm:$0xff]
    %v1879 = vld [vmem:[#allocation10 + $0x17c] sm:$0xf]
    %v1880 = vld [vmem:[#allocation10 + $0x180] sm:$0xff]
    %v1881 = vld [vmem:[#allocation10 + $0x188] sm:$0xf]
    %v1882 = vld [vmem:[#allocation10 + $0x18c] sm:$0xff]
    %v1883 = vld [vmem:[#allocation10 + $0x194] sm:$0xf]
    %v1884 = vld [vmem:[#allocation10 + $0x198] sm:$0xff]
    %v1885 = vld [vmem:[#allocation10 + $0x1a0] sm:$0xf]
    %v1886 = vld [vmem:[#allocation10 + $0x1a4] sm:$0xff]
    %v1887 = vld [vmem:[#allocation10 + $0x1ac] sm:$0xf]
    %v1888 = vld [vmem:[#allocation10 + $0x1b0] sm:$0xff]
    %v1889 = vld [vmem:[#allocation10 + $0x1b8] sm:$0xf]
    %v1890 = vld [vmem:[#allocation10 + $0x1bc] sm:$0xff]
    %v1891 = vld [vmem:[#allocation10 + $0x1c4] sm:$0xf]
    %v1892 = vld [vmem:[#allocation10 + $0x1c8] sm:$0xff]
    %v1893 = vld [vmem:[#allocation10 + $0x1d0] sm:$0xf]
    %v1894 = vld [vmem:[#allocation10 + $0x1d4] sm:$0xff]
    %v1895 = vld [vmem:[#allocation10 + $0x1dc] sm:$0xf]
    %v1896 = vld [vmem:[#allocation10 + $0x1e0] sm:$0xff]
    %v1897 = vld [vmem:[#allocation10 + $0x1e8] sm:$0xf]
    %v1898 = vld [vmem:[#allocation10 + $0x1ec] sm:$0xff]
    %v1899 = vld [vmem:[#allocation10 + $0x1f4] sm:$0xf]
    %v1900 = vld [vmem:[#allocation10 + $0x1f8] sm:$0xff]
    %v1901 = vld [vmem:[#allocation10 + $0x200] sm:$0xf]
    %v1902 = vld [vmem:[#allocation10 + $0x204] sm:$0xff]
    %v1903 = vld [vmem:[#allocation10 + $0x20c] sm:$0xf]
    %v1904 = vld [vmem:[#allocation10 + $0x210] sm:$0xff]
    %v1905 = vld [vmem:[#allocation10 + $0x218] sm:$0xf]
    %v1906 = vld [vmem:[#allocation10 + $0x21c] sm:$0xff]
    %v1907 = vld [vmem:[#allocation10 + $0x224] sm:$0xf]
    %v1908 = vld [vmem:[#allocation10 + $0x228] sm:$0xff]
    %v1909 = vld [vmem:[#allocation10 + $0x230] sm:$0xf]
    %v1910 = vld [vmem:[#allocation10 + $0x234] sm:$0xff]
    %v1911 = vld [vmem:[#allocation10 + $0x23c] sm:$0xf]
    %v1912 = vld [vmem:[#allocation10 + $0x240] sm:$0xff]
    %v1913 = vld [vmem:[#allocation10 + $0x248] sm:$0xf]
    %v1914 = vld [vmem:[#allocation10 + $0x24c] sm:$0xff]
    %v1915 = vld [vmem:[#allocation10 + $0x254] sm:$0xf]
    %v1916 = vld [vmem:[#allocation10 + $0x258] sm:$0xff]
    %v1917 = vld [vmem:[#allocation10 + $0x260] sm:$0xf]
    %v1918 = vld [vmem:[#allocation10 + $0x264] sm:$0xff]
    %v1919 = vld [vmem:[#allocation10 + $0x26c] sm:$0xf]
    %v1920 = vld [vmem:[#allocation10 + $0x270] sm:$0xff]
    %v1921 = vld [vmem:[#allocation10 + $0x278] sm:$0xf]
    %v1922 = vld [vmem:[#allocation10 + $0x27c] sm:$0xff]
    %v1923 = vld [vmem:[#allocation10 + $0x284] sm:$0xf]
    %v1924 = vld [vmem:[#allocation10 + $0x288] sm:$0xff]
    %v1925 = vld [vmem:[#allocation10 + $0x290] sm:$0xf]
    %v1926 = vld [vmem:[#allocation10 + $0x294] sm:$0xff]
    %v1927 = vld [vmem:[#allocation10 + $0x29c] sm:$0xf]
    %v1928 = vld [vmem:[#allocation10 + $0x2a0] sm:$0xff]
    %v1929 = vld [vmem:[#allocation10 + $0x2a8] sm:$0xf]
    %v1930 = vld [vmem:[#allocation10 + $0x2ac] sm:$0xff]
    %v1931 = vld [vmem:[#allocation10 + $0x2b4] sm:$0xf]
    %v1932 = vld [vmem:[#allocation10 + $0x2b8] sm:$0xff]
    %v1933 = vld [vmem:[#allocation10 + $0x2c0] sm:$0xf]
    %v1934 = vld [vmem:[#allocation10 + $0x2c4] sm:$0xff]
    %v1935 = vld [vmem:[#allocation10 + $0x2cc] sm:$0xf]
    %v1936 = vld [vmem:[#allocation10 + $0x2d0] sm:$0xff]
    %v1937 = vld [vmem:[#allocation10 + $0x2d8] sm:$0xf]
    %v1938 = vld [vmem:[#allocation10 + $0x2dc] sm:$0xff]
    %v1939 = vld [vmem:[#allocation10 + $0x2e4] sm:$0xf]
    %v1940 = vld [vmem:[#allocation10 + $0x2e8] sm:$0xff]
    %v1941 = vld [vmem:[#allocation10 + $0x2f0] sm:$0xf]
    %v1942 = vld [vmem:[#allocation10 + $0x2f4] sm:$0xff]
    %v1943 = vld [vmem:[#allocation10 + $0x2fc] sm:$0xf]
    %v1944 = vld [vmem:[#allocation10 + $0x300] sm:$0xff]
    %v1945 = vld [vmem:[#allocation10 + $0x308] sm:$0xf]
    %v1946 = vld [vmem:[#allocation10 + $0x30c] sm:$0xff]
    %v1947 = vld [vmem:[#allocation10 + $0x314] sm:$0xf]
    %v1948 = vld [vmem:[#allocation10 + $0x318] sm:$0xff]
    %v1949 = vld [vmem:[#allocation10 + $0x320] sm:$0xf]
    %v1950 = vld [vmem:[#allocation10 + $0x324] sm:$0xff]
    %v1951 = vld [vmem:[#allocation10 + $0x32c] sm:$0xf]
    %v1952 = vld [vmem:[#allocation10 + $0x330] sm:$0xff]
    %v1953 = vld [vmem:[#allocation10 + $0x338] sm:$0xf]
    %v1954 = vld [vmem:[#allocation10 + $0x33c] sm:$0xff]
    %v1955 = vld [vmem:[#allocation10 + $0x344] sm:$0xf]
    %v1956 = vld [vmem:[#allocation10 + $0x348] sm:$0xff]
    %v1957 = vld [vmem:[#allocation10 + $0x350] sm:$0xf]
    %v1958 = vld [vmem:[#allocation10 + $0x354] sm:$0xff]
    %v1959 = vld [vmem:[#allocation10 + $0x35c] sm:$0xf]
    %v1960 = vld [vmem:[#allocation10 + $0x360] sm:$0xff]
    %v1961 = vld [vmem:[#allocation10 + $0x368] sm:$0xf]
    %v1962 = vld [vmem:[#allocation10 + $0x36c] sm:$0xff]
    %v1963 = vld [vmem:[#allocation10 + $0x374] sm:$0xf]
    %v1964 = vld [vmem:[#allocation10 + $0x378] sm:$0xff]
    %v1965 = vld [vmem:[#allocation10 + $0x380] sm:$0xf]
    %v1966 = vld [vmem:[#allocation10 + $0x384] sm:$0xff]
    %v1967 = vld [vmem:[#allocation10 + $0x38c] sm:$0xf]
    %v1968 = vld [vmem:[#allocation10 + $0x390] sm:$0xff]
    %v1969 = vld [vmem:[#allocation10 + $0x398] sm:$0xf]
    %v1970 = vld [vmem:[#allocation10 + $0x39c] sm:$0xff]
    %v1971 = vld [vmem:[#allocation10 + $0x3a4] sm:$0xf]
    %v1972 = vld [vmem:[#allocation10 + $0x3a8] sm:$0xff]
    %v1973 = vld [vmem:[#allocation10 + $0x3b0] sm:$0xf]
    %v1974 = vld [vmem:[#allocation10 + $0x3b4] sm:$0xff]
    %v1975 = vld [vmem:[#allocation10 + $0x3bc] sm:$0xf]
    %v1976 = vld [vmem:[#allocation10 + $0x3c0] sm:$0xff]
    %v1977 = vld [vmem:[#allocation10 + $0x3c8] sm:$0xf]
    %v1978 = vld [vmem:[#allocation10 + $0x3cc] sm:$0xff]
    %v1979 = vld [vmem:[#allocation10 + $0x3d4] sm:$0xf]
    %v1980 = vld [vmem:[#allocation10 + $0x3d8] sm:$0xff]
    %v1981 = vld [vmem:[#allocation10 + $0x3e0] sm:$0xf]
    %v1982 = vld [vmem:[#allocation10 + $0x3e4] sm:$0xff]
    %v1983 = vld [vmem:[#allocation10 + $0x3ec] sm:$0xf]
    %v1984 = vld [vmem:[#allocation10 + $0x3f0] sm:$0xff]
    %v1985 = vld [vmem:[#allocation10 + $0x3f8] sm:$0xf]
    %v1986 = vld [vmem:[#allocation10 + $0x3fc] sm:$0xff]
    %v1987 = vld [vmem:[#allocation10 + $0x404] sm:$0xf]
    %v1988 = vld [vmem:[#allocation10 + $0x408] sm:$0xff]
    %v1989 = vld [vmem:[#allocation10 + $0x410] sm:$0xf]
    %v1990 = vld [vmem:[#allocation10 + $0x414] sm:$0xff]
    %v1991 = vld [vmem:[#allocation10 + $0x41c] sm:$0xf]
    %v1992 = vld [vmem:[#allocation10 + $0x420] sm:$0xff]
    %v1993 = vld [vmem:[#allocation10 + $0x428] sm:$0xf]
    %v1994 = vld [vmem:[#allocation10 + $0x42c] sm:$0xff]
    %v1995 = vld [vmem:[#allocation10 + $0x434] sm:$0xf]
    %v1996 = vld [vmem:[#allocation10 + $0x438] sm:$0xff]
    %v1997 = vld [vmem:[#allocation10 + $0x440] sm:$0xf]
    %v1998 = vld [vmem:[#allocation10 + $0x444] sm:$0xff]
    %v1999 = vld [vmem:[#allocation10 + $0x44c] sm:$0xf]
    %v2000 = vld [vmem:[#allocation10 + $0x450] sm:$0xff]
    %v2001 = vld [vmem:[#allocation10 + $0x458] sm:$0xf]
    %v2002 = vld [vmem:[#allocation10 + $0x45c] sm:$0xff]
    %v2003 = vld [vmem:[#allocation10 + $0x464] sm:$0xf]
    %v2004 = vld [vmem:[#allocation10 + $0x468] sm:$0xff]
    %v2005 = vld [vmem:[#allocation10 + $0x470] sm:$0xf]
    %v2006 = vld [vmem:[#allocation10 + $0x474] sm:$0xff]
    %v2007 = vld [vmem:[#allocation10 + $0x47c] sm:$0xf]
    %v2008 = vld [vmem:[#allocation10 + $0x480] sm:$0xff]
    %v2009 = vld [vmem:[#allocation10 + $0x488] sm:$0xf]
    %v2010 = vld [vmem:[#allocation10 + $0x48c] sm:$0xff]
    %v2011 = vld [vmem:[#allocation10 + $0x494] sm:$0xf]
    %v2012 = vld [vmem:[#allocation10 + $0x498] sm:$0xff]
    %v2013 = vld [vmem:[#allocation10 + $0x4a0] sm:$0xf]
    %v2014 = vld [vmem:[#allocation10 + $0x4a4] sm:$0xff]
    %v2015 = vld [vmem:[#allocation10 + $0x4ac] sm:$0xf]
    %v2016 = vld [vmem:[#allocation10 + $0x4b0] sm:$0xff]
    %v2017 = vld [vmem:[#allocation10 + $0x4b8] sm:$0xf]
    %v2018 = vld [vmem:[#allocation10 + $0x4bc] sm:$0xff]
    %v2019 = vld [vmem:[#allocation10 + $0x4c4] sm:$0xf]
    %v2020 = vld [vmem:[#allocation10 + $0x4c8] sm:$0xff]
    %v2021 = vld [vmem:[#allocation10 + $0x4d0] sm:$0xf]
    %v2022 = vld [vmem:[#allocation10 + $0x4d4] sm:$0xff]
    %v2023 = vld [vmem:[#allocation10 + $0x4dc] sm:$0xf]
    %v2024 = vld [vmem:[#allocation10 + $0x4e0] sm:$0xff]
    %v2025 = vld [vmem:[#allocation10 + $0x4e8] sm:$0xf]
    %v2026 = vld [vmem:[#allocation10 + $0x4ec] sm:$0xff]
    %v2027 = vld [vmem:[#allocation10 + $0x4f4] sm:$0xf]
    %v2028 = vld [vmem:[#allocation10 + $0x4f8] sm:$0xff]
    %v2029 = vld [vmem:[#allocation10 + $0x500] sm:$0xf]
    %v2030 = vld [vmem:[#allocation10 + $0x504] sm:$0xff]
    %v2031 = vld [vmem:[#allocation10 + $0x50c] sm:$0xf]
    %v2032 = vld [vmem:[#allocation10 + $0x510] sm:$0xff]
    %v2033 = vld [vmem:[#allocation10 + $0x518] sm:$0xf]
    %v2034 = vld [vmem:[#allocation10 + $0x51c] sm:$0xff]
    %v2035 = vld [vmem:[#allocation10 + $0x524] sm:$0xf]
    %v2036 = vld [vmem:[#allocation10 + $0x528] sm:$0xff]
    %v2037 = vld [vmem:[#allocation10 + $0x530] sm:$0xf]
    %v2038 = vld [vmem:[#allocation10 + $0x534] sm:$0xff]
    %v2039 = vld [vmem:[#allocation10 + $0x53c] sm:$0xf]
    %v2040 = vld [vmem:[#allocation10 + $0x540] sm:$0xff]
    %v2041 = vld [vmem:[#allocation10 + $0x548] sm:$0xf]
    %v2042 = vld [vmem:[#allocation10 + $0x54c] sm:$0xff]
    %v2043 = vld [vmem:[#allocation10 + $0x554] sm:$0xf]
    %v2044 = vld [vmem:[#allocation10 + $0x558] sm:$0xff]
    %v2045 = vld [vmem:[#allocation10 + $0x560] sm:$0xf]
    %v2046 = vld [vmem:[#allocation10 + $0x564] sm:$0xff]
    %v2047 = vld [vmem:[#allocation10 + $0x56c] sm:$0xf]
    %v2048 = vld [vmem:[#allocation10 + $0x570] sm:$0xff]
    %v2049 = vld [vmem:[#allocation10 + $0x578] sm:$0xf]
    %v2050 = vld [vmem:[#allocation10 + $0x57c] sm:$0xff]
    %v2051 = vld [vmem:[#allocation10 + $0x584] sm:$0xf]
    %v2052 = vld [vmem:[#allocation10 + $0x588] sm:$0xff]
    %v2053 = vld [vmem:[#allocation10 + $0x590] sm:$0xf]
    %v2054 = vld [vmem:[#allocation10 + $0x594] sm:$0xff]
    %v2055 = vld [vmem:[#allocation10 + $0x59c] sm:$0xf]
    %v2056 = vld [vmem:[#allocation10 + $0x5a0] sm:$0xff]
    %v2057 = vld [vmem:[#allocation10 + $0x5a8] sm:$0xf]
    %v2058 = vld [vmem:[#allocation10 + $0x5ac] sm:$0xff]
    %v2059 = vld [vmem:[#allocation10 + $0x5b4] sm:$0xf]
    %v2060 = vld [vmem:[#allocation10 + $0x5b8] sm:$0xff]
    %v2061 = vld [vmem:[#allocation10 + $0x5c0] sm:$0xf]
    %v2062 = vld [vmem:[#allocation10 + $0x5c4] sm:$0xff]
    %v2063 = vld [vmem:[#allocation10 + $0x5cc] sm:$0xf]
    %v2064 = vld [vmem:[#allocation10 + $0x5d0] sm:$0xff]
    %v2065 = vld [vmem:[#allocation10 + $0x5d8] sm:$0xf]
    %v2066 = vld [vmem:[#allocation10 + $0x5dc] sm:$0xff]
    %v2067 = vld [vmem:[#allocation10 + $0x5e4] sm:$0xf]
    %v2068 = vld [vmem:[#allocation10 + $0x5e8] sm:$0xff]
    %v2069 = vld [vmem:[#allocation10 + $0x5f0] sm:$0xf]
    %v2070 = vld [vmem:[#allocation10 + $0x5f4] sm:$0xff]
    %v2071 = vld [vmem:[#allocation10 + $0x5fc] sm:$0xf]
    %v2072 = vld [vmem:[%s5] sm:$0x7]
    %v2074 = vperm.slane %v2072, 0
    %v2075 = vperm.slane %v2072, 1
    %v2076 = vperm.slane %v2072, 2
    %v2084 = vunpack.c.l.b16 %v184
    %v2085 = vunpack.c.h.b16 %v184
    %v2086 = vunpack.c.l.b16 %v185
    %v2087 = vunpack.c.h.b16 %v185
    %v2088 = vunpack.c.l.b16 %v186
    %v2089 = vunpack.c.h.b16 %v186
    %v2090 = vunpack.c.l.b16 %v187
    %v2091 = vunpack.c.h.b16 %v187
    %v2092 = vpack.c.b16 %v2084, %v2084
    %v2093 = vpack.c.b16 %v2085, %v2085
    %v2094 = vpack.c.b16 %v2086, %v2086
    %v2095 = vpack.c.b16 %v2087, %v2087
    %v2096 = vpack.c.b16 %v2088, %v2088
    %v2097 = vpack.c.b16 %v2089, %v2089
    %v2098 = vpack.c.b16 %v2090, %v2090
    %v2099 = vpack.c.b16 %v2091, %v2091
    %v2364 = vunpack.c.l.b16 %v1816
    %v2365 = vunpack.c.h.b16 %v1816
    %v2366 = vunpack.c.l.b16 %v1817
    %v2367 = vunpack.c.l.b16 %v1818
    %v2368 = vunpack.c.h.b16 %v1818
    %v2369 = vunpack.c.l.b16 %v1819
    %v2370 = vunpack.c.l.b16 %v1820
    %v2371 = vunpack.c.h.b16 %v1820
    %v2372 = vunpack.c.l.b16 %v1821
    %v2373 = vunpack.c.l.b16 %v1822
    %v2374 = vunpack.c.h.b16 %v1822
    %v2375 = vunpack.c.l.b16 %v1823
    %v2376 = vunpack.c.l.b16 %v1824
    %v2377 = vunpack.c.h.b16 %v1824
    %v2378 = vunpack.c.l.b16 %v1825
    %v2379 = vunpack.c.l.b16 %v1826
    %v2380 = vunpack.c.h.b16 %v1826
    %v2381 = vunpack.c.l.b16 %v1827
    %v2382 = vunpack.c.l.b16 %v1828
    %v2383 = vunpack.c.h.b16 %v1828
    %v2384 = vunpack.c.l.b16 %v1829
    %v2385 = vunpack.c.l.b16 %v1830
    %v2386 = vunpack.c.h.b16 %v1830
    %v2387 = vunpack.c.l.b16 %v1831
    %v2388 = vunpack.c.l.b16 %v1832
    %v2389 = vunpack.c.h.b16 %v1832
    %v2390 = vunpack.c.l.b16 %v1833
    %v2391 = vunpack.c.l.b16 %v1834
    %v2392 = vunpack.c.h.b16 %v1834
    %v2393 = vunpack.c.l.b16 %v1835
    %v2394 = vunpack.c.l.b16 %v1836
    %v2395 = vunpack.c.h.b16 %v1836
    %v2396 = vunpack.c.l.b16 %v1837
    %v2397 = vunpack.c.l.b16 %v1838
    %v2398 = vunpack.c.h.b16 %v1838
    %v2399 = vunpack.c.l.b16 %v1839
    %v2400 = vunpack.c.l.b16 %v1840
    %v2401 = vunpack.c.h.b16 %v1840
    %v2402 = vunpack.c.l.b16 %v1841
    %v2403 = vunpack.c.l.b16 %v1842
    %v2404 = vunpack.c.h.b16 %v1842
    %v2405 = vunpack.c.l.b16 %v1843
    %v2406 = vunpack.c.l.b16 %v1844
    %v2407 = vunpack.c.h.b16 %v1844
    %v2408 = vunpack.c.l.b16 %v1845
    %v2409 = vunpack.c.l.b16 %v1846
    %v2410 = vunpack.c.h.b16 %v1846
    %v2411 = vunpack.c.l.b16 %v1847
    %v2412 = vunpack.c.l.b16 %v1848
    %v2413 = vunpack.c.h.b16 %v1848
    %v2414 = vunpack.c.l.b16 %v1849
    %v2415 = vunpack.c.l.b16 %v1850
    %v2416 = vunpack.c.h.b16 %v1850
    %v2417 = vunpack.c.l.b16 %v1851
    %v2418 = vunpack.c.l.b16 %v1852
    %v2419 = vunpack.c.h.b16 %v1852
    %v2420 = vunpack.c.l.b16 %v1853
    %v2421 = vunpack.c.l.b16 %v1854
    %v2422 = vunpack.c.h.b16 %v1854
    %v2423 = vunpack.c.l.b16 %v1855
    %v2424 = vunpack.c.l.b16 %v1856
    %v2425 = vunpack.c.h.b16 %v1856
    %v2426 = vunpack.c.l.b16 %v1857
    %v2427 = vunpack.c.l.b16 %v1858
    %v2428 = vunpack.c.h.b16 %v1858
    %v2429 = vunpack.c.l.b16 %v1859
    %v2430 = vunpack.c.l.b16 %v1860
    %v2431 = vunpack.c.h.b16 %v1860
    %v2432 = vunpack.c.l.b16 %v1861
    %v2433 = vunpack.c.l.b16 %v1862
    %v2434 = vunpack.c.h.b16 %v1862
    %v2435 = vunpack.c.l.b16 %v1863
    %v2436 = vunpack.c.l.b16 %v1864
    %v2437 = vunpack.c.h.b16 %v1864
    %v2438 = vunpack.c.l.b16 %v1865
    %v2439 = vunpack.c.l.b16 %v1866
    %v2440 = vunpack.c.h.b16 %v1866
    %v2441 = vunpack.c.l.b16 %v1867
    %v2442 = vunpack.c.l.b16 %v1868
    %v2443 = vunpack.c.h.b16 %v1868
    %v2444 = vunpack.c.l.b16 %v1869
    %v2445 = vunpack.c.l.b16 %v1870
    %v2446 = vunpack.c.h.b16 %v1870
    %v2447 = vunpack.c.l.b16 %v1871
    %v2448 = vunpack.c.l.b16 %v1872
    %v2449 = vunpack.c.h.b16 %v1872
    %v2450 = vunpack.c.l.b16 %v1873
    %v2451 = vunpack.c.l.b16 %v1874
    %v2452 = vunpack.c.h.b16 %v1874
    %v2453 = vunpack.c.l.b16 %v1875
    %v2454 = vunpack.c.l.b16 %v1876
    %v2455 = vunpack.c.h.b16 %v1876
    %v2456 = vunpack.c.l.b16 %v1877
    %v2457 = vunpack.c.l.b16 %v1878
    %v2458 = vunpack.c.h.b16 %v1878
    %v2459 = vunpack.c.l.b16 %v1879
    %v2460 = vunpack.c.l.b16 %v1880
    %v2461 = vunpack.c.h.b16 %v1880
    %v2462 = vunpack.c.l.b16 %v1881
    %v2463 = vunpack.c.l.b16 %v1882
    %v2464 = vunpack.c.h.b16 %v1882
    %v2465 = vunpack.c.l.b16 %v1883
    %v2466 = vunpack.c.l.b16 %v1884
    %v2467 = vunpack.c.h.b16 %v1884
    %v2468 = vunpack.c.l.b16 %v1885
    %v2469 = vunpack.c.l.b16 %v1886
    %v2470 = vunpack.c.h.b16 %v1886
    %v2471 = vunpack.c.l.b16 %v1887
    %v2472 = vunpack.c.l.b16 %v1888
    %v2473 = vunpack.c.h.b16 %v1888
    %v2474 = vunpack.c.l.b16 %v1889
    %v2475 = vunpack.c.l.b16 %v1890
    %v2476 = vunpack.c.h.b16 %v1890
    %v2477 = vunpack.c.l.b16 %v1891
    %v2478 = vunpack.c.l.b16 %v1892
    %v2479 = vunpack.c.h.b16 %v1892
    %v2480 = vunpack.c.l.b16 %v1893
    %v2481 = vunpack.c.l.b16 %v1894
    %v2482 = vunpack.c.h.b16 %v1894
    %v2483 = vunpack.c.l.b16 %v1895
    %v2484 = vunpack.c.l.b16 %v1896
    %v2485 = vunpack.c.h.b16 %v1896
    %v2486 = vunpack.c.l.b16 %v1897
    %v2487 = vunpack.c.l.b16 %v1898
    %v2488 = vunpack.c.h.b16 %v1898
    %v2489 = vunpack.c.l.b16 %v1899
    %v2490 = vunpack.c.l.b16 %v1900
    %v2491 = vunpack.c.h.b16 %v1900
    %v2492 = vunpack.c.l.b16 %v1901
    %v2493 = vunpack.c.l.b16 %v1902
    %v2494 = vunpack.c.h.b16 %v1902
    %v2495 = vunpack.c.l.b16 %v1903
    %v2496 = vunpack.c.l.b16 %v1904
    %v2497 = vunpack.c.h.b16 %v1904
    %v2498 = vunpack.c.l.b16 %v1905
    %v2499 = vunpack.c.l.b16 %v1906
    %v2500 = vunpack.c.h.b16 %v1906
    %v2501 = vunpack.c.l.b16 %v1907
    %v2502 = vunpack.c.l.b16 %v1908
    %v2503 = vunpack.c.h.b16 %v1908
    %v2504 = vunpack.c.l.b16 %v1909
    %v2505 = vunpack.c.l.b16 %v1910
    %v2506 = vunpack.c.h.b16 %v1910
    %v2507 = vunpack.c.l.b16 %v1911
    %v2508 = vunpack.c.l.b16 %v1912
    %v2509 = vunpack.c.h.b16 %v1912
    %v2510 = vunpack.c.l.b16 %v1913
    %v2511 = vunpack.c.l.b16 %v1914
    %v2512 = vunpack.c.h.b16 %v1914
    %v2513 = vunpack.c.l.b16 %v1915
    %v2514 = vunpack.c.l.b16 %v1916
    %v2515 = vunpack.c.h.b16 %v1916
    %v2516 = vunpack.c.l.b16 %v1917
    %v2517 = vunpack.c.l.b16 %v1918
    %v2518 = vunpack.c.h.b16 %v1918
    %v2519 = vunpack.c.l.b16 %v1919
    %v2520 = vunpack.c.l.b16 %v1920
    %v2521 = vunpack.c.h.b16 %v1920
    %v2522 = vunpack.c.l.b16 %v1921
    %v2523 = vunpack.c.l.b16 %v1922
    %v2524 = vunpack.c.h.b16 %v1922
    %v2525 = vunpack.c.l.b16 %v1923
    %v2526 = vunpack.c.l.b16 %v1924
    %v2527 = vunpack.c.h.b16 %v1924
    %v2528 = vunpack.c.l.b16 %v1925
    %v2529 = vunpack.c.l.b16 %v1926
    %v2530 = vunpack.c.h.b16 %v1926
    %v2531 = vunpack.c.l.b16 %v1927
    %v2532 = vunpack.c.l.b16 %v1928
    %v2533 = vunpack.c.h.b16 %v1928
    %v2534 = vunpack.c.l.b16 %v1929
    %v2535 = vunpack.c.l.b16 %v1930
    %v2536 = vunpack.c.h.b16 %v1930
    %v2537 = vunpack.c.l.b16 %v1931
    %v2538 = vunpack.c.l.b16 %v1932
    %v2539 = vunpack.c.h.b16 %v1932
    %v2540 = vunpack.c.l.b16 %v1933
    %v2541 = vunpack.c.l.b16 %v1934
    %v2542 = vunpack.c.h.b16 %v1934
    %v2543 = vunpack.c.l.b16 %v1935
    %v2544 = vunpack.c.l.b16 %v1936
    %v2545 = vunpack.c.h.b16 %v1936
    %v2546 = vunpack.c.l.b16 %v1937
    %v2547 = vunpack.c.l.b16 %v1938
    %v2548 = vunpack.c.h.b16 %v1938
    %v2549 = vunpack.c.l.b16 %v1939
    %v2550 = vunpack.c.l.b16 %v1940
    %v2551 = vunpack.c.h.b16 %v1940
    %v2552 = vunpack.c.l.b16 %v1941
    %v2553 = vunpack.c.l.b16 %v1942
    %v2554 = vunpack.c.h.b16 %v1942
    %v2555 = vunpack.c.l.b16 %v1943
    %v2556 = vunpack.c.l.b16 %v1944
    %v2557 = vunpack.c.h.b16 %v1944
    %v2558 = vunpack.c.l.b16 %v1945
    %v2559 = vunpack.c.l.b16 %v1946
    %v2560 = vunpack.c.h.b16 %v1946
    %v2561 = vunpack.c.l.b16 %v1947
    %v2562 = vunpack.c.l.b16 %v1948
    %v2563 = vunpack.c.h.b16 %v1948
    %v2564 = vunpack.c.l.b16 %v1949
    %v2565 = vunpack.c.l.b16 %v1950
    %v2566 = vunpack.c.h.b16 %v1950
    %v2567 = vunpack.c.l.b16 %v1951
    %v2568 = vunpack.c.l.b16 %v1952
    %v2569 = vunpack.c.h.b16 %v1952
    %v2570 = vunpack.c.l.b16 %v1953
    %v2571 = vunpack.c.l.b16 %v1954
    %v2572 = vunpack.c.h.b16 %v1954
    %v2573 = vunpack.c.l.b16 %v1955
    %v2574 = vunpack.c.l.b16 %v1956
    %v2575 = vunpack.c.h.b16 %v1956
    %v2576 = vunpack.c.l.b16 %v1957
    %v2577 = vunpack.c.l.b16 %v1958
    %v2578 = vunpack.c.h.b16 %v1958
    %v2579 = vunpack.c.l.b16 %v1959
    %v2580 = vunpack.c.l.b16 %v1960
    %v2581 = vunpack.c.h.b16 %v1960
    %v2582 = vunpack.c.l.b16 %v1961
    %v2583 = vunpack.c.l.b16 %v1962
    %v2584 = vunpack.c.h.b16 %v1962
    %v2585 = vunpack.c.l.b16 %v1963
    %v2586 = vunpack.c.l.b16 %v1964
    %v2587 = vunpack.c.h.b16 %v1964
    %v2588 = vunpack.c.l.b16 %v1965
    %v2589 = vunpack.c.l.b16 %v1966
    %v2590 = vunpack.c.h.b16 %v1966
    %v2591 = vunpack.c.l.b16 %v1967
    %v2592 = vunpack.c.l.b16 %v1968
    %v2593 = vunpack.c.h.b16 %v1968
    %v2594 = vunpack.c.l.b16 %v1969
    %v2595 = vunpack.c.l.b16 %v1970
    %v2596 = vunpack.c.h.b16 %v1970
    %v2597 = vunpack.c.l.b16 %v1971
    %v2598 = vunpack.c.l.b16 %v1972
    %v2599 = vunpack.c.h.b16 %v1972
    %v2600 = vunpack.c.l.b16 %v1973
    %v2601 = vunpack.c.l.b16 %v1974
    %v2602 = vunpack.c.h.b16 %v1974
    %v2603 = vunpack.c.l.b16 %v1975
    %v2604 = vunpack.c.l.b16 %v1976
    %v2605 = vunpack.c.h.b16 %v1976
    %v2606 = vunpack.c.l.b16 %v1977
    %v2607 = vunpack.c.l.b16 %v1978
    %v2608 = vunpack.c.h.b16 %v1978
    %v2609 = vunpack.c.l.b16 %v1979
    %v2610 = vunpack.c.l.b16 %v1980
    %v2611 = vunpack.c.h.b16 %v1980
    %v2612 = vunpack.c.l.b16 %v1981
    %v2613 = vunpack.c.l.b16 %v1982
    %v2614 = vunpack.c.h.b16 %v1982
    %v2615 = vunpack.c.l.b16 %v1983
    %v2616 = vunpack.c.l.b16 %v1984
    %v2617 = vunpack.c.h.b16 %v1984
    %v2618 = vunpack.c.l.b16 %v1985
    %v2619 = vunpack.c.l.b16 %v1986
    %v2620 = vunpack.c.h.b16 %v1986
    %v2621 = vunpack.c.l.b16 %v1987
    %v2622 = vunpack.c.l.b16 %v1988
    %v2623 = vunpack.c.h.b16 %v1988
    %v2624 = vunpack.c.l.b16 %v1989
    %v2625 = vunpack.c.l.b16 %v1990
    %v2626 = vunpack.c.h.b16 %v1990
    %v2627 = vunpack.c.l.b16 %v1991
    %v2628 = vunpack.c.l.b16 %v1992
    %v2629 = vunpack.c.h.b16 %v1992
    %v2630 = vunpack.c.l.b16 %v1993
    %v2631 = vunpack.c.l.b16 %v1994
    %v2632 = vunpack.c.h.b16 %v1994
    %v2633 = vunpack.c.l.b16 %v1995
    %v2634 = vunpack.c.l.b16 %v1996
    %v2635 = vunpack.c.h.b16 %v1996
    %v2636 = vunpack.c.l.b16 %v1997
    %v2637 = vunpack.c.l.b16 %v1998
    %v2638 = vunpack.c.h.b16 %v1998
    %v2639 = vunpack.c.l.b16 %v1999
    %v2640 = vunpack.c.l.b16 %v2000
    %v2641 = vunpack.c.h.b16 %v2000
    %v2642 = vunpack.c.l.b16 %v2001
    %v2643 = vunpack.c.l.b16 %v2002
    %v2644 = vunpack.c.h.b16 %v2002
    %v2645 = vunpack.c.l.b16 %v2003
    %v2646 = vunpack.c.l.b16 %v2004
    %v2647 = vunpack.c.h.b16 %v2004
    %v2648 = vunpack.c.l.b16 %v2005
    %v2649 = vunpack.c.l.b16 %v2006
    %v2650 = vunpack.c.h.b16 %v2006
    %v2651 = vunpack.c.l.b16 %v2007
    %v2652 = vunpack.c.l.b16 %v2008
    %v2653 = vunpack.c.h.b16 %v2008
    %v2654 = vunpack.c.l.b16 %v2009
    %v2655 = vunpack.c.l.b16 %v2010
    %v2656 = vunpack.c.h.b16 %v2010
    %v2657 = vunpack.c.l.b16 %v2011
    %v2658 = vunpack.c.l.b16 %v2012
    %v2659 = vunpack.c.h.b16 %v2012
    %v2660 = vunpack.c.l.b16 %v2013
    %v2661 = vunpack.c.l.b16 %v2014
    %v2662 = vunpack.c.h.b16 %v2014
    %v2663 = vunpack.c.l.b16 %v2015
    %v2664 = vunpack.c.l.b16 %v2016
    %v2665 = vunpack.c.h.b16 %v2016
    %v2666 = vunpack.c.l.b16 %v2017
    %v2667 = vunpack.c.l.b16 %v2018
    %v2668 = vunpack.c.h.b16 %v2018
    %v2669 = vunpack.c.l.b16 %v2019
    %v2670 = vunpack.c.l.b16 %v2020
    %v2671 = vunpack.c.h.b16 %v2020
    %v2672 = vunpack.c.l.b16 %v2021
    %v2673 = vunpack.c.l.b16 %v2022
    %v2674 = vunpack.c.h.b16 %v2022
    %v2675 = vunpack.c.l.b16 %v2023
    %v2676 = vunpack.c.l.b16 %v2024
    %v2677 = vunpack.c.h.b16 %v2024
    %v2678 = vunpack.c.l.b16 %v2025
    %v2679 = vunpack.c.l.b16 %v2026
    %v2680 = vunpack.c.h.b16 %v2026
    %v2681 = vunpack.c.l.b16 %v2027
    %v2682 = vunpack.c.l.b16 %v2028
    %v2683 = vunpack.c.h.b16 %v2028
    %v2684 = vunpack.c.l.b16 %v2029
    %v2685 = vunpack.c.l.b16 %v2030
    %v2686 = vunpack.c.h.b16 %v2030
    %v2687 = vunpack.c.l.b16 %v2031
    %v2688 = vunpack.c.l.b16 %v2032
    %v2689 = vunpack.c.h.b16 %v2032
    %v2690 = vunpack.c.l.b16 %v2033
    %v2691 = vunpack.c.l.b16 %v2034
    %v2692 = vunpack.c.h.b16 %v2034
    %v2693 = vunpack.c.l.b16 %v2035
    %v2694 = vunpack.c.l.b16 %v2036
    %v2695 = vunpack.c.h.b16 %v2036
    %v2696 = vunpack.c.l.b16 %v2037
    %v2697 = vunpack.c.l.b16 %v2038
    %v2698 = vunpack.c.h.b16 %v2038
    %v2699 = vunpack.c.l.b16 %v2039
    %v2700 = vunpack.c.l.b16 %v2040
    %v2701 = vunpack.c.h.b16 %v2040
    %v2702 = vunpack.c.l.b16 %v2041
    %v2703 = vunpack.c.l.b16 %v2042
    %v2704 = vunpack.c.h.b16 %v2042
    %v2705 = vunpack.c.l.b16 %v2043
    %v2706 = vunpack.c.l.b16 %v2044
    %v2707 = vunpack.c.h.b16 %v2044
    %v2708 = vunpack.c.l.b16 %v2045
    %v2709 = vunpack.c.l.b16 %v2046
    %v2710 = vunpack.c.h.b16 %v2046
    %v2711 = vunpack.c.l.b16 %v2047
    %v2712 = vunpack.c.l.b16 %v2048
    %v2713 = vunpack.c.h.b16 %v2048
    %v2714 = vunpack.c.l.b16 %v2049
    %v2715 = vunpack.c.l.b16 %v2050
    %v2716 = vunpack.c.h.b16 %v2050
    %v2717 = vunpack.c.l.b16 %v2051
    %v2718 = vunpack.c.l.b16 %v2052
    %v2719 = vunpack.c.h.b16 %v2052
    %v2720 = vunpack.c.l.b16 %v2053
    %v2721 = vunpack.c.l.b16 %v2054
    %v2722 = vunpack.c.h.b16 %v2054
    %v2723 = vunpack.c.l.b16 %v2055
    %v2724 = vunpack.c.l.b16 %v2056
    %v2725 = vunpack.c.h.b16 %v2056
    %v2726 = vunpack.c.l.b16 %v2057
    %v2727 = vunpack.c.l.b16 %v2058
    %v2728 = vunpack.c.h.b16 %v2058
    %v2729 = vunpack.c.l.b16 %v2059
    %v2730 = vunpack.c.l.b16 %v2060
    %v2731 = vunpack.c.h.b16 %v2060
    %v2732 = vunpack.c.l.b16 %v2061
    %v2733 = vunpack.c.l.b16 %v2062
    %v2734 = vunpack.c.h.b16 %v2062
    %v2735 = vunpack.c.l.b16 %v2063
    %v2736 = vunpack.c.l.b16 %v2064
    %v2737 = vunpack.c.h.b16 %v2064
    %v2738 = vunpack.c.l.b16 %v2065
    %v2739 = vunpack.c.l.b16 %v2066
    %v2740 = vunpack.c.h.b16 %v2066
    %v2741 = vunpack.c.l.b16 %v2067
    %v2742 = vunpack.c.l.b16 %v2068
    %v2743 = vunpack.c.h.b16 %v2068
    %v2744 = vunpack.c.l.b16 %v2069
    %v2745 = vunpack.c.l.b16 %v2070
    %v2746 = vunpack.c.h.b16 %v2070
    %v2747 = vunpack.c.l.b16 %v2071
    %v2748 = vpack.c.b16 %v2367, %v2364
    %v2749 = vpack.c.b16 %v2368, %v2365
    %v2750 = vpack.c.b16 %v2369, %v2366
    %v2751 = vpack.c.b16 %v2373, %v2370
    %v2752 = vpack.c.b16 %v2374, %v2371
    %v2753 = vpack.c.b16 %v2375, %v2372
    %v2754 = vpack.c.b16 %v2379, %v2376
    %v2755 = vpack.c.b16 %v2380, %v2377
    %v2756 = vpack.c.b16 %v2381, %v2378
    %v2757 = vpack.c.b16 %v2385, %v2382
    %v2758 = vpack.c.b16 %v2386, %v2383
    %v2759 = vpack.c.b16 %v2387, %v2384
    %v2760 = vpack.c.b16 %v2391, %v2388
    %v2761 = vpack.c.b16 %v2392, %v2389
    %v2762 = vpack.c.b16 %v2393, %v2390
    %v2763 = vpack.c.b16 %v2397, %v2394
    %v2764 = vpack.c.b16 %v2398, %v2395
    %v2765 = vpack.c.b16 %v2399, %v2396
    %v2766 = vpack.c.b16 %v2403, %v2400
    %v2767 = vpack.c.b16 %v2404, %v2401
    %v2768 = vpack.c.b16 %v2405, %v2402
    %v2769 = vpack.c.b16 %v2409, %v2406
    %v2770 = vpack.c.b16 %v2410, %v2407
    %v2771 = vpack.c.b16 %v2411, %v2408
    %v2772 = vpack.c.b16 %v2415, %v2412
    %v2773 = vpack.c.b16 %v2416, %v2413
    %v2774 = vpack.c.b16 %v2417, %v2414
    %v2775 = vpack.c.b16 %v2421, %v2418
    %v2776 = vpack.c.b16 %v2422, %v2419
    %v2777 = vpack.c.b16 %v2423, %v2420
    %v2778 = vpack.c.b16 %v2427, %v2424
    %v2779 = vpack.c.b16 %v2428, %v2425
    %v2780 = vpack.c.b16 %v2429, %v2426
    %v2781 = vpack.c.b16 %v2433, %v2430
    %v2782 = vpack.c.b16 %v2434, %v2431
    %v2783 = vpack.c.b16 %v2435, %v2432
    %v2784 = vpack.c.b16 %v2439, %v2436
    %v2785 = vpack.c.b16 %v2440, %v2437
    %v2786 = vpack.c.b16 %v2441, %v2438
    %v2787 = vpack.c.b16 %v2445, %v2442
    %v2788 = vpack.c.b16 %v2446, %v2443
    %v2789 = vpack.c.b16 %v2447, %v2444
    %v2790 = vpack.c.b16 %v2451, %v2448
    %v2791 = vpack.c.b16 %v2452, %v2449
    %v2792 = vpack.c.b16 %v2453, %v2450
    %v2793 = vpack.c.b16 %v2457, %v2454
    %v2794 = vpack.c.b16 %v2458, %v2455
    %v2795 = vpack.c.b16 %v2459, %v2456
    %v2796 = vpack.c.b16 %v2463, %v2460
    %v2797 = vpack.c.b16 %v2464, %v2461
    %v2798 = vpack.c.b16 %v2465, %v2462
    %v2799 = vpack.c.b16 %v2469, %v2466
    %v2800 = vpack.c.b16 %v2470, %v2467
    %v2801 = vpack.c.b16 %v2471, %v2468
    %v2802 = vpack.c.b16 %v2475, %v2472
    %v2803 = vpack.c.b16 %v2476, %v2473
    %v2804 = vpack.c.b16 %v2477, %v2474
    %v2805 = vpack.c.b16 %v2481, %v2478
    %v2806 = vpack.c.b16 %v2482, %v2479
    %v2807 = vpack.c.b16 %v2483, %v2480
    %v2808 = vpack.c.b16 %v2487, %v2484
    %v2809 = vpack.c.b16 %v2488, %v2485
    %v2810 = vpack.c.b16 %v2489, %v2486
    %v2811 = vpack.c.b16 %v2493, %v2490
    %v2812 = vpack.c.b16 %v2494, %v2491
    %v2813 = vpack.c.b16 %v2495, %v2492
    %v2814 = vpack.c.b16 %v2499, %v2496
    %v2815 = vpack.c.b16 %v2500, %v2497
    %v2816 = vpack.c.b16 %v2501, %v2498
    %v2817 = vpack.c.b16 %v2505, %v2502
    %v2818 = vpack.c.b16 %v2506, %v2503
    %v2819 = vpack.c.b16 %v2507, %v2504
    %v2820 = vpack.c.b16 %v2511, %v2508
    %v2821 = vpack.c.b16 %v2512, %v2509
    %v2822 = vpack.c.b16 %v2513, %v2510
    %v2823 = vpack.c.b16 %v2517, %v2514
    %v2824 = vpack.c.b16 %v2518, %v2515
    %v2825 = vpack.c.b16 %v2519, %v2516
    %v2826 = vpack.c.b16 %v2523, %v2520
    %v2827 = vpack.c.b16 %v2524, %v2521
    %v2828 = vpack.c.b16 %v2525, %v2522
    %v2829 = vpack.c.b16 %v2529, %v2526
    %v2830 = vpack.c.b16 %v2530, %v2527
    %v2831 = vpack.c.b16 %v2531, %v2528
    %v2832 = vpack.c.b16 %v2535, %v2532
    %v2833 = vpack.c.b16 %v2536, %v2533
    %v2834 = vpack.c.b16 %v2537, %v2534
    %v2835 = vpack.c.b16 %v2541, %v2538
    %v2836 = vpack.c.b16 %v2542, %v2539
    %v2837 = vpack.c.b16 %v2543, %v2540
    %v2838 = vpack.c.b16 %v2547, %v2544
    %v2839 = vpack.c.b16 %v2548, %v2545
    %v2840 = vpack.c.b16 %v2549, %v2546
    %v2841 = vpack.c.b16 %v2553, %v2550
    %v2842 = vpack.c.b16 %v2554, %v2551
    %v2843 = vpack.c.b16 %v2555, %v2552
    %v2844 = vpack.c.b16 %v2559, %v2556
    %v2845 = vpack.c.b16 %v2560, %v2557
    %v2846 = vpack.c.b16 %v2561, %v2558
    %v2847 = vpack.c.b16 %v2565, %v2562
    %v2848 = vpack.c.b16 %v2566, %v2563
    %v2849 = vpack.c.b16 %v2567, %v2564
    %v2850 = vpack.c.b16 %v2571, %v2568
    %v2851 = vpack.c.b16 %v2572, %v2569
    %v2852 = vpack.c.b16 %v2573, %v2570
    %v2853 = vpack.c.b16 %v2577, %v2574
    %v2854 = vpack.c.b16 %v2578, %v2575
    %v2855 = vpack.c.b16 %v2579, %v2576
    %v2856 = vpack.c.b16 %v2583, %v2580
    %v2857 = vpack.c.b16 %v2584, %v2581
    %v2858 = vpack.c.b16 %v2585, %v2582
    %v2859 = vpack.c.b16 %v2589, %v2586
    %v2860 = vpack.c.b16 %v2590, %v2587
    %v2861 = vpack.c.b16 %v2591, %v2588
    %v2862 = vpack.c.b16 %v2595, %v2592
    %v2863 = vpack.c.b16 %v2596, %v2593
    %v2864 = vpack.c.b16 %v2597, %v2594
    %v2865 = vpack.c.b16 %v2601, %v2598
    %v2866 = vpack.c.b16 %v2602, %v2599
    %v2867 = vpack.c.b16 %v2603, %v2600
    %v2868 = vpack.c.b16 %v2607, %v2604
    %v2869 = vpack.c.b16 %v2608, %v2605
    %v2870 = vpack.c.b16 %v2609, %v2606
    %v2871 = vpack.c.b16 %v2613, %v2610
    %v2872 = vpack.c.b16 %v2614, %v2611
    %v2873 = vpack.c.b16 %v2615, %v2612
    %v2874 = vpack.c.b16 %v2619, %v2616
    %v2875 = vpack.c.b16 %v2620, %v2617
    %v2876 = vpack.c.b16 %v2621, %v2618
    %v2877 = vpack.c.b16 %v2625, %v2622
    %v2878 = vpack.c.b16 %v2626, %v2623
    %v2879 = vpack.c.b16 %v2627, %v2624
    %v2880 = vpack.c.b16 %v2631, %v2628
    %v2881 = vpack.c.b16 %v2632, %v2629
    %v2882 = vpack.c.b16 %v2633, %v2630
    %v2883 = vpack.c.b16 %v2637, %v2634
    %v2884 = vpack.c.b16 %v2638, %v2635
    %v2885 = vpack.c.b16 %v2639, %v2636
    %v2886 = vpack.c.b16 %v2643, %v2640
    %v2887 = vpack.c.b16 %v2644, %v2641
    %v2888 = vpack.c.b16 %v2645, %v2642
    %v2889 = vpack.c.b16 %v2649, %v2646
    %v2890 = vpack.c.b16 %v2650, %v2647
    %v2891 = vpack.c.b16 %v2651, %v2648
    %v2892 = vpack.c.b16 %v2655, %v2652
    %v2893 = vpack.c.b16 %v2656, %v2653
    %v2894 = vpack.c.b16 %v2657, %v2654
    %v2895 = vpack.c.b16 %v2661, %v2658
    %v2896 = vpack.c.b16 %v2662, %v2659
    %v2897 = vpack.c.b16 %v2663, %v2660
    %v2898 = vpack.c.b16 %v2667, %v2664
    %v2899 = vpack.c.b16 %v2668, %v2665
    %v2900 = vpack.c.b16 %v2669, %v2666
    %v2901 = vpack.c.b16 %v2673, %v2670
    %v2902 = vpack.c.b16 %v2674, %v2671
    %v2903 = vpack.c.b16 %v2675, %v2672
    %v2904 = vpack.c.b16 %v2679, %v2676
    %v2905 = vpack.c.b16 %v2680, %v2677
    %v2906 = vpack.c.b16 %v2681, %v2678
    %v2907 = vpack.c.b16 %v2685, %v2682
    %v2908 = vpack.c.b16 %v2686, %v2683
    %v2909 = vpack.c.b16 %v2687, %v2684
    %v2910 = vpack.c.b16 %v2691, %v2688
    %v2911 = vpack.c.b16 %v2692, %v2689
    %v2912 = vpack.c.b16 %v2693, %v2690
    %v2913 = vpack.c.b16 %v2697, %v2694
    %v2914 = vpack.c.b16 %v2698, %v2695
    %v2915 = vpack.c.b16 %v2699, %v2696
    %v2916 = vpack.c.b16 %v2703, %v2700
    %v2917 = vpack.c.b16 %v2704, %v2701
    %v2918 = vpack.c.b16 %v2705, %v2702
    %v2919 = vpack.c.b16 %v2709, %v2706
    %v2920 = vpack.c.b16 %v2710, %v2707
    %v2921 = vpack.c.b16 %v2711, %v2708
    %v2922 = vpack.c.b16 %v2715, %v2712
    %v2923 = vpack.c.b16 %v2716, %v2713
    %v2924 = vpack.c.b16 %v2717, %v2714
    %v2925 = vpack.c.b16 %v2721, %v2718
    %v2926 = vpack.c.b16 %v2722, %v2719
    %v2927 = vpack.c.b16 %v2723, %v2720
    %v2928 = vpack.c.b16 %v2727, %v2724
    %v2929 = vpack.c.b16 %v2728, %v2725
    %v2930 = vpack.c.b16 %v2729, %v2726
    %v2931 = vpack.c.b16 %v2733, %v2730
    %v2932 = vpack.c.b16 %v2734, %v2731
    %v2933 = vpack.c.b16 %v2735, %v2732
    %v2934 = vpack.c.b16 %v2739, %v2736
    %v2935 = vpack.c.b16 %v2740, %v2737
    %v2936 = vpack.c.b16 %v2741, %v2738
    %v2937 = vpack.c.b16 %v2745, %v2742
    %v2938 = vpack.c.b16 %v2746, %v2743
    %v2939 = vpack.c.b16 %v2747, %v2744
    %3132 = vmatpush.bf16.msra.mxu0 %v2769
    %3133 = vmatpush.bf16.msra.mxu0 %v2766
    %3134 = vmatpush.bf16.msra.mxu0 %v2763
    %3135 = vmatpush.bf16.msra.mxu0 %v2760
    %3136 = vmatpush.bf16.msra.mxu0 %v2757
    %3137 = vmatpush.bf16.msra.mxu0 %v2754
    %3138 = vmatpush.bf16.msra.mxu0 %v2751
    %3139 = vmatpush.bf16.msra.mxu0 %v2748
    %3140 = vmatmul.bf16.gmra.mxu0 %v2092
    %v3141 = vpop.f32.mrf.mxu0
    %v3142 = vadd.f32 %v2074, %v3141
    %v3143 = vpop.f32.mrf.mxu0
    %3144 = vdwg.mxu0
    %3145 = vmatpush.bf16.msra.mxu0 %v2793
    %3146 = vmatpush.bf16.msra.mxu0 %v2790
    %3147 = vmatpush.bf16.msra.mxu0 %v2787
    %3148 = vmatpush.bf16.msra.mxu0 %v2784
    %3149 = vmatpush.bf16.msra.mxu0 %v2781
    %3150 = vmatpush.bf16.msra.mxu0 %v2778
    %3151 = vmatpush.bf16.msra.mxu0 %v2775
    %3152 = vmatpush.bf16.msra.mxu0 %v2772
    %3153 = vmatmul.bf16.gmra.mxu0 %v2093
    %v3154 = vpop.f32.mrf.mxu0
    %v3155 = vadd.f32 %v3142, %v3154
    %v3156 = vpop.f32.mrf.mxu0
    %3157 = vdwg.mxu0
    %3158 = vmatpush.bf16.msra.mxu0 %v2817
    %3159 = vmatpush.bf16.msra.mxu0 %v2814
    %3160 = vmatpush.bf16.msra.mxu0 %v2811
    %3161 = vmatpush.bf16.msra.mxu0 %v2808
    %3162 = vmatpush.bf16.msra.mxu0 %v2805
    %3163 = vmatpush.bf16.msra.mxu0 %v2802
    %3164 = vmatpush.bf16.msra.mxu0 %v2799
    %3165 = vmatpush.bf16.msra.mxu0 %v2796
    %3166 = vmatmul.bf16.gmra.mxu0 %v2094
    %v3167 = vpop.f32.mrf.mxu0
    %v3168 = vadd.f32 %v3155, %v3167
    %v3169 = vpop.f32.mrf.mxu0
    %3170 = vdwg.mxu0
    %3171 = vmatpush.bf16.msra.mxu0 %v2841
    %3172 = vmatpush.bf16.msra.mxu0 %v2838
    %3173 = vmatpush.bf16.msra.mxu0 %v2835
    %3174 = vmatpush.bf16.msra.mxu0 %v2832
    %3175 = vmatpush.bf16.msra.mxu0 %v2829
    %3176 = vmatpush.bf16.msra.mxu0 %v2826
    %3177 = vmatpush.bf16.msra.mxu0 %v2823
    %3178 = vmatpush.bf16.msra.mxu0 %v2820
    %3179 = vmatmul.bf16.gmra.mxu0 %v2095
    %v3180 = vpop.f32.mrf.mxu0
    %v3181 = vadd.f32 %v3168, %v3180
    %v3182 = vpop.f32.mrf.mxu0
    %3183 = vdwg.mxu0
    %3184 = vmatpush.bf16.msra.mxu0 %v2865
    %3185 = vmatpush.bf16.msra.mxu0 %v2862
    %3186 = vmatpush.bf16.msra.mxu0 %v2859
    %3187 = vmatpush.bf16.msra.mxu0 %v2856
    %3188 = vmatpush.bf16.msra.mxu0 %v2853
    %3189 = vmatpush.bf16.msra.mxu0 %v2850
    %3190 = vmatpush.bf16.msra.mxu0 %v2847
    %3191 = vmatpush.bf16.msra.mxu0 %v2844
    %3192 = vmatmul.bf16.gmra.mxu0 %v2096
    %v3193 = vpop.f32.mrf.mxu0
    %v3194 = vadd.f32 %v3181, %v3193
    %v3195 = vpop.f32.mrf.mxu0
    %3196 = vdwg.mxu0
    %3197 = vmatpush.bf16.msra.mxu0 %v2889
    %3198 = vmatpush.bf16.msra.mxu0 %v2886
    %3199 = vmatpush.bf16.msra.mxu0 %v2883
    %3200 = vmatpush.bf16.msra.mxu0 %v2880
    %3201 = vmatpush.bf16.msra.mxu0 %v2877
    %3202 = vmatpush.bf16.msra.mxu0 %v2874
    %3203 = vmatpush.bf16.msra.mxu0 %v2871
    %3204 = vmatpush.bf16.msra.mxu0 %v2868
    %3205 = vmatmul.bf16.gmra.mxu0 %v2097
    %v3206 = vpop.f32.mrf.mxu0
    %v3207 = vadd.f32 %v3194, %v3206
    %v3208 = vpop.f32.mrf.mxu0
    %3209 = vdwg.mxu0
    %3210 = vmatpush.bf16.msra.mxu0 %v2913
    %3211 = vmatpush.bf16.msra.mxu0 %v2910
    %3212 = vmatpush.bf16.msra.mxu0 %v2907
    %3213 = vmatpush.bf16.msra.mxu0 %v2904
    %3214 = vmatpush.bf16.msra.mxu0 %v2901
    %3215 = vmatpush.bf16.msra.mxu0 %v2898
    %3216 = vmatpush.bf16.msra.mxu0 %v2895
    %3217 = vmatpush.bf16.msra.mxu0 %v2892
    %3218 = vmatmul.bf16.gmra.mxu0 %v2098
    %v3219 = vpop.f32.mrf.mxu0
    %v3220 = vadd.f32 %v3207, %v3219
    %v3221 = vpop.f32.mrf.mxu0
    %3222 = vdwg.mxu0
    %3223 = vmatpush.bf16.msra.mxu0 %v2937
    %3224 = vmatpush.bf16.msra.mxu0 %v2934
    %3225 = vmatpush.bf16.msra.mxu0 %v2931
    %3226 = vmatpush.bf16.msra.mxu0 %v2928
    %3227 = vmatpush.bf16.msra.mxu0 %v2925
    %3228 = vmatpush.bf16.msra.mxu0 %v2922
    %3229 = vmatpush.bf16.msra.mxu0 %v2919
    %3230 = vmatpush.bf16.msra.mxu0 %v2916
    %3231 = vmatmul.bf16.gmra.mxu0 %v2099
    %v3232 = vpop.f32.mrf.mxu0
    %v3233 = vadd.f32 %v3220, %v3232
    %v3234 = vpop.f32.mrf.mxu0
    %3235 = vdwg.mxu0
    %3236 = vmatpush.bf16.msra.mxu0 %v2770
    %3237 = vmatpush.bf16.msra.mxu0 %v2767
    %3238 = vmatpush.bf16.msra.mxu0 %v2764
    %3239 = vmatpush.bf16.msra.mxu0 %v2761
    %3240 = vmatpush.bf16.msra.mxu0 %v2758
    %3241 = vmatpush.bf16.msra.mxu0 %v2755
    %3242 = vmatpush.bf16.msra.mxu0 %v2752
    %3243 = vmatpush.bf16.msra.mxu0 %v2749
    %3244 = vmatmul.bf16.gmra.mxu0 %v2092
    %v3245 = vpop.f32.mrf.mxu0
    %v3246 = vadd.f32 %v2075, %v3245
    %v3247 = vpop.f32.mrf.mxu0
    %3248 = vdwg.mxu0
    %3249 = vmatpush.bf16.msra.mxu0 %v2794
    %3250 = vmatpush.bf16.msra.mxu0 %v2791
    %3251 = vmatpush.bf16.msra.mxu0 %v2788
    %3252 = vmatpush.bf16.msra.mxu0 %v2785
    %3253 = vmatpush.bf16.msra.mxu0 %v2782
    %3254 = vmatpush.bf16.msra.mxu0 %v2779
    %3255 = vmatpush.bf16.msra.mxu0 %v2776
    %3256 = vmatpush.bf16.msra.mxu0 %v2773
    %3257 = vmatmul.bf16.gmra.mxu0 %v2093
    %v3258 = vpop.f32.mrf.mxu0
    %v3259 = vadd.f32 %v3246, %v3258
    %v3260 = vpop.f32.mrf.mxu0
    %3261 = vdwg.mxu0
    %3262 = vmatpush.bf16.msra.mxu0 %v2818
    %3263 = vmatpush.bf16.msra.mxu0 %v2815
    %3264 = vmatpush.bf16.msra.mxu0 %v2812
    %3265 = vmatpush.bf16.msra.mxu0 %v2809
    %3266 = vmatpush.bf16.msra.mxu0 %v2806
    %3267 = vmatpush.bf16.msra.mxu0 %v2803
    %3268 = vmatpush.bf16.msra.mxu0 %v2800
    %3269 = vmatpush.bf16.msra.mxu0 %v2797
    %3270 = vmatmul.bf16.gmra.mxu0 %v2094
    %v3271 = vpop.f32.mrf.mxu0
    %v3272 = vadd.f32 %v3259, %v3271
    %v3273 = vpop.f32.mrf.mxu0
    %3274 = vdwg.mxu0
    %3275 = vmatpush.bf16.msra.mxu0 %v2842
    %3276 = vmatpush.bf16.msra.mxu0 %v2839
    %3277 = vmatpush.bf16.msra.mxu0 %v2836
    %3278 = vmatpush.bf16.msra.mxu0 %v2833
    %3279 = vmatpush.bf16.msra.mxu0 %v2830
    %3280 = vmatpush.bf16.msra.mxu0 %v2827
    %3281 = vmatpush.bf16.msra.mxu0 %v2824
    %3282 = vmatpush.bf16.msra.mxu0 %v2821
    %3283 = vmatmul.bf16.gmra.mxu0 %v2095
    %v3284 = vpop.f32.mrf.mxu0
    %v3285 = vadd.f32 %v3272, %v3284
    %v3286 = vpop.f32.mrf.mxu0
    %3287 = vdwg.mxu0
    %3288 = vmatpush.bf16.msra.mxu0 %v2866
    %3289 = vmatpush.bf16.msra.mxu0 %v2863
    %3290 = vmatpush.bf16.msra.mxu0 %v2860
    %3291 = vmatpush.bf16.msra.mxu0 %v2857
    %3292 = vmatpush.bf16.msra.mxu0 %v2854
    %3293 = vmatpush.bf16.msra.mxu0 %v2851
    %3294 = vmatpush.bf16.msra.mxu0 %v2848
    %3295 = vmatpush.bf16.msra.mxu0 %v2845
    %3296 = vmatmul.bf16.gmra.mxu0 %v2096
    %v3297 = vpop.f32.mrf.mxu0
    %v3298 = vadd.f32 %v3285, %v3297
    %v3299 = vpop.f32.mrf.mxu0
    %3300 = vdwg.mxu0
    %3301 = vmatpush.bf16.msra.mxu0 %v2890
    %3302 = vmatpush.bf16.msra.mxu0 %v2887
    %3303 = vmatpush.bf16.msra.mxu0 %v2884
    %3304 = vmatpush.bf16.msra.mxu0 %v2881
    %3305 = vmatpush.bf16.msra.mxu0 %v2878
    %3306 = vmatpush.bf16.msra.mxu0 %v2875
    %3307 = vmatpush.bf16.msra.mxu0 %v2872
    %3308 = vmatpush.bf16.msra.mxu0 %v2869
    %3309 = vmatmul.bf16.gmra.mxu0 %v2097
    %v3310 = vpop.f32.mrf.mxu0
    %v3311 = vadd.f32 %v3298, %v3310
    %v3312 = vpop.f32.mrf.mxu0
    %3313 = vdwg.mxu0
    %3314 = vmatpush.bf16.msra.mxu0 %v2914
    %3315 = vmatpush.bf16.msra.mxu0 %v2911
    %3316 = vmatpush.bf16.msra.mxu0 %v2908
    %3317 = vmatpush.bf16.msra.mxu0 %v2905
    %3318 = vmatpush.bf16.msra.mxu0 %v2902
    %3319 = vmatpush.bf16.msra.mxu0 %v2899
    %3320 = vmatpush.bf16.msra.mxu0 %v2896
    %3321 = vmatpush.bf16.msra.mxu0 %v2893
    %3322 = vmatmul.bf16.gmra.mxu0 %v2098
    %v3323 = vpop.f32.mrf.mxu0
    %v3324 = vadd.f32 %v3311, %v3323
    %v3325 = vpop.f32.mrf.mxu0
    %3326 = vdwg.mxu0
    %3327 = vmatpush.bf16.msra.mxu0 %v2938
    %3328 = vmatpush.bf16.msra.mxu0 %v2935
    %3329 = vmatpush.bf16.msra.mxu0 %v2932
    %3330 = vmatpush.bf16.msra.mxu0 %v2929
    %3331 = vmatpush.bf16.msra.mxu0 %v2926
    %3332 = vmatpush.bf16.msra.mxu0 %v2923
    %3333 = vmatpush.bf16.msra.mxu0 %v2920
    %3334 = vmatpush.bf16.msra.mxu0 %v2917
    %3335 = vmatmul.bf16.gmra.mxu0 %v2099
    %v3336 = vpop.f32.mrf.mxu0
    %v3337 = vadd.f32 %v3324, %v3336
    %v3338 = vpop.f32.mrf.mxu0
    %3339 = vdwg.mxu0
    %3340 = vmatpush.bf16.msra.mxu0 %v2771
    %3341 = vmatpush.bf16.msra.mxu0 %v2768
    %3342 = vmatpush.bf16.msra.mxu0 %v2765
    %3343 = vmatpush.bf16.msra.mxu0 %v2762
    %3344 = vmatpush.bf16.msra.mxu0 %v2759
    %3345 = vmatpush.bf16.msra.mxu0 %v2756
    %3346 = vmatpush.bf16.msra.mxu0 %v2753
    %3347 = vmatpush.bf16.msra.mxu0 %v2750
    %3348 = vmatmul.bf16.gmra.mxu0 %v2092
    %v3349 = vpop.f32.mrf.mxu0
    %v3350 = vadd.f32 %v2076, %v3349
    %v3351 = vpop.f32.mrf.mxu0
    %3352 = vdwg.mxu0
    %3353 = vmatpush.bf16.msra.mxu0 %v2795
    %3354 = vmatpush.bf16.msra.mxu0 %v2792
    %3355 = vmatpush.bf16.msra.mxu0 %v2789
    %3356 = vmatpush.bf16.msra.mxu0 %v2786
    %3357 = vmatpush.bf16.msra.mxu0 %v2783
    %3358 = vmatpush.bf16.msra.mxu0 %v2780
    %3359 = vmatpush.bf16.msra.mxu0 %v2777
    %3360 = vmatpush.bf16.msra.mxu0 %v2774
    %3361 = vmatmul.bf16.gmra.mxu0 %v2093
    %v3362 = vpop.f32.mrf.mxu0
    %v3363 = vadd.f32 %v3350, %v3362
    %v3364 = vpop.f32.mrf.mxu0
    %3365 = vdwg.mxu0
    %3366 = vmatpush.bf16.msra.mxu0 %v2819
    %3367 = vmatpush.bf16.msra.mxu0 %v2816
    %3368 = vmatpush.bf16.msra.mxu0 %v2813
    %3369 = vmatpush.bf16.msra.mxu0 %v2810
    %3370 = vmatpush.bf16.msra.mxu0 %v2807
    %3371 = vmatpush.bf16.msra.mxu0 %v2804
    %3372 = vmatpush.bf16.msra.mxu0 %v2801
    %3373 = vmatpush.bf16.msra.mxu0 %v2798
    %3374 = vmatmul.bf16.gmra.mxu0 %v2094
    %v3375 = vpop.f32.mrf.mxu0
    %v3376 = vadd.f32 %v3363, %v3375
    %v3377 = vpop.f32.mrf.mxu0
    %3378 = vdwg.mxu0
    %3379 = vmatpush.bf16.msra.mxu0 %v2843
    %3380 = vmatpush.bf16.msra.mxu0 %v2840
    %3381 = vmatpush.bf16.msra.mxu0 %v2837
    %3382 = vmatpush.bf16.msra.mxu0 %v2834
    %3383 = vmatpush.bf16.msra.mxu0 %v2831
    %3384 = vmatpush.bf16.msra.mxu0 %v2828
    %3385 = vmatpush.bf16.msra.mxu0 %v2825
    %3386 = vmatpush.bf16.msra.mxu0 %v2822
    %3387 = vmatmul.bf16.gmra.mxu0 %v2095
    %v3388 = vpop.f32.mrf.mxu0
    %v3389 = vadd.f32 %v3376, %v3388
    %v3390 = vpop.f32.mrf.mxu0
    %3391 = vdwg.mxu0
    %3392 = vmatpush.bf16.msra.mxu0 %v2867
    %3393 = vmatpush.bf16.msra.mxu0 %v2864
    %3394 = vmatpush.bf16.msra.mxu0 %v2861
    %3395 = vmatpush.bf16.msra.mxu0 %v2858
    %3396 = vmatpush.bf16.msra.mxu0 %v2855
    %3397 = vmatpush.bf16.msra.mxu0 %v2852
    %3398 = vmatpush.bf16.msra.mxu0 %v2849
    %3399 = vmatpush.bf16.msra.mxu0 %v2846
    %3400 = vmatmul.bf16.gmra.mxu0 %v2096
    %v3401 = vpop.f32.mrf.mxu0
    %v3402 = vadd.f32 %v3389, %v3401
    %v3403 = vpop.f32.mrf.mxu0
    %3404 = vdwg.mxu0
    %3405 = vmatpush.bf16.msra.mxu0 %v2891
    %3406 = vmatpush.bf16.msra.mxu0 %v2888
    %3407 = vmatpush.bf16.msra.mxu0 %v2885
    %3408 = vmatpush.bf16.msra.mxu0 %v2882
    %3409 = vmatpush.bf16.msra.mxu0 %v2879
    %3410 = vmatpush.bf16.msra.mxu0 %v2876
    %3411 = vmatpush.bf16.msra.mxu0 %v2873
    %3412 = vmatpush.bf16.msra.mxu0 %v2870
    %3413 = vmatmul.bf16.gmra.mxu0 %v2097
    %v3414 = vpop.f32.mrf.mxu0
    %v3415 = vadd.f32 %v3402, %v3414
    %v3416 = vpop.f32.mrf.mxu0
    %3417 = vdwg.mxu0
    %3418 = vmatpush.bf16.msra.mxu0 %v2915
    %3419 = vmatpush.bf16.msra.mxu0 %v2912
    %3420 = vmatpush.bf16.msra.mxu0 %v2909
    %3421 = vmatpush.bf16.msra.mxu0 %v2906
    %3422 = vmatpush.bf16.msra.mxu0 %v2903
    %3423 = vmatpush.bf16.msra.mxu0 %v2900
    %3424 = vmatpush.bf16.msra.mxu0 %v2897
    %3425 = vmatpush.bf16.msra.mxu0 %v2894
    %3426 = vmatmul.bf16.gmra.mxu0 %v2098
    %v3427 = vpop.f32.mrf.mxu0
    %v3428 = vadd.f32 %v3415, %v3427
    %v3429 = vpop.f32.mrf.mxu0
    %3430 = vdwg.mxu0
    %3431 = vmatpush.bf16.msra.mxu0 %v2939
    %3432 = vmatpush.bf16.msra.mxu0 %v2936
    %3433 = vmatpush.bf16.msra.mxu0 %v2933
    %3434 = vmatpush.bf16.msra.mxu0 %v2930
    %3435 = vmatpush.bf16.msra.mxu0 %v2927
    %3436 = vmatpush.bf16.msra.mxu0 %v2924
    %3437 = vmatpush.bf16.msra.mxu0 %v2921
    %3438 = vmatpush.bf16.msra.mxu0 %v2918
    %3439 = vmatmul.bf16.gmra.mxu0 %v2099
    %v3440 = vpop.f32.mrf.mxu0
    %v3441 = vadd.f32 %v3428, %v3440
    %v3442 = vpop.f32.mrf.mxu0
    %3443 = vdwg.mxu0
    %v3444 = vpack.c.bf16 %v3233, %v3233
    %v3445 = vpack.c.bf16 %v1709, %v1709
    %3446 = vmatpush.bf16.xpose.msra.mxu0 0
    %3447 = vmatpush.bf16.xpose.msra.mxu0 0
    %3448 = vmatpush.bf16.xpose.msra.mxu0 0
    %3449 = vmatpush.bf16.xpose.msra.mxu0 0
    %3450 = vmatpush.bf16.xpose.msra.mxu0 0
    %3451 = vmatpush.bf16.xpose.msra.mxu0 0
    %3452 = vmatpush.bf16.xpose.msra.mxu0 0
    %3453 = vmatpush.bf16.xpose.msra.mxu0 %v3445
    %3454 = vmatmul.bf16.gmra.mxu0 %v3444
    %v3455 = vpop.f32.mrf.mxu0
    %v3456 = vadd.f32 0.0, %v3455
    %v3457 = vpop.f32.mrf.mxu0
    %3458 = vdwg.mxu0
    %v3459 = vmul.f32 %v3456, 0.088388346
    %v3460 = vpack.c.bf16 %v1605, %v1605
    %v3461 = vpack.c.bf16 %v3337, %v3337
    %3462 = vmatpush.bf16.xpose.msra.mxu0 0
    %3463 = vmatpush.bf16.xpose.msra.mxu0 0
    %3464 = vmatpush.bf16.xpose.msra.mxu0 0
    %3465 = vmatpush.bf16.xpose.msra.mxu0 0
    %3466 = vmatpush.bf16.xpose.msra.mxu0 0
    %3467 = vmatpush.bf16.xpose.msra.mxu0 0
    %3468 = vmatpush.bf16.xpose.msra.mxu0 0
    %3469 = vmatpush.bf16.xpose.msra.mxu0 %v3461
    %3470 = vmatmul.bf16.gmra.mxu0 %v3460
    %v3471 = vpop.f32.mrf.mxu0
    %v3472 = vadd.f32 0.0, %v3471
    %v3473 = vpop.f32.mrf.mxu0
    %3474 = vdwg.mxu0
    %v3475 = vmul.f32 %v3472, 0.088388346
    %vm3476 = vcmask 64512
    %v3477 = vsel %vm3476, %v3459, -inf
    %3478 = vmax.xlane.f32.xlu0 %v3477
    %v3479 = vpop.xlane.xlu0 %3478
    %v3480 = vsub.f32 %v3459, %v3479
    %v3481 = vmul.f32 %v3480, 1.442695
    %v3482 = vpow.pop %v3481
    %v3483 = vsel %vm3476, %v3482, 0.0
    %3484 = vadd.xlane.f32.xlu0 %v3483
    %v3485 = vpop.xlane.xlu0 %3484
    %v3486 = vrcp.pop %v3485
    %v3487 = vmul.f32 %v3485, %v3486
    %v3488 = vsub.f32 1.0, %v3487
    %v3489 = vmul.f32 %v3486, %v3488
    %v3490 = vadd.f32 %v3486, %v3489
    %vm3491 = vweird.f32 %v3485
    %vm3492 = vweird.f32 %v3486
    %vm3493 = vmor %vm3491, %vm3492
    %v3494 = vsel %vm3493, %v3486, %v3490
    %v3495 = vand.u32 2147483647, %v3485
    %vm3496 = vcmp.eq.f32.partialorder %v3495, 8.507059e+37
    %v3497 = vand.u32 %v3485, 2147483648
    %v3498 = vor.u32 1.1754944e-38, %v3497
    %v3499 = vsel %vm3496, %v3498, %v3494
    %v3500 = vmul.f32 %v3482, %v3499
    %v3501 = vsel %vm3476, %v3475, -inf
    %3502 = vmax.xlane.f32.xlu0 %v3501
    %v3503 = vpop.xlane.xlu0 %3502
    %v3504 = vsub.f32 %v3475, %v3503
    %v3505 = vmul.f32 %v3504, 1.442695
    %v3506 = vpow.pop %v3505
    %v3507 = vsel %vm3476, %v3506, 0.0
    %3508 = vadd.xlane.f32.xlu0 %v3507
    %v3509 = vpop.xlane.xlu0 %3508
    %v3510 = vrcp.pop %v3509
    %v3511 = vmul.f32 %v3509, %v3510
    %v3512 = vsub.f32 1.0, %v3511
    %v3513 = vmul.f32 %v3510, %v3512
    %v3514 = vadd.f32 %v3510, %v3513
    %vm3515 = vweird.f32 %v3509
    %vm3516 = vweird.f32 %v3510
    %vm3517 = vmor %vm3515, %vm3516
    %v3518 = vsel %vm3517, %v3510, %v3514
    %v3519 = vand.u32 2147483647, %v3509
    %vm3520 = vcmp.eq.f32.partialorder %v3519, 8.507059e+37
    %v3521 = vand.u32 %v3509, 2147483648
    %v3522 = vor.u32 1.1754944e-38, %v3521
    %v3523 = vsel %vm3520, %v3522, %v3518
    %v3524 = vmul.f32 %v3506, %v3523
    %v3525 = vpack.c.bf16 %v3500, %v3500
    %v3526 = vpack.c.bf16 %v1813, %v1813
    %v3528 = vsel %vm3476, %v3525, 0
    %vm3530 = vcmask 1043456
    %v3532 = vsel %vm3530, %v3526, 0
    %3534 = vmatpush.bf16.msra.mxu0 0
    %3535 = vmatpush.bf16.msra.mxu0 0
    %3536 = vmatpush.bf16.msra.mxu0 0
    %3537 = vmatpush.bf16.msra.mxu0 0
    %3538 = vmatpush.bf16.msra.mxu0 0
    %3539 = vmatpush.bf16.msra.mxu0 0
    %3540 = vmatpush.bf16.msra.mxu0 0
    %3541 = vmatpush.bf16.msra.mxu0 %v3532
    %3542 = vmatmul.bf16.gmra.mxu0 %v3528
    %v3543 = vpop.f32.mrf.mxu0
    %v3544 = vadd.f32 0.0, %v3543
    %v3545 = vpop.f32.mrf.mxu0
    %3546 = vdwg.mxu0
    %v3547 = vpack.c.bf16 %v3524, %v3524
    %v3548 = vpack.c.bf16 %v3441, %v3441
    %v3550 = vsel %vm3476, %v3547, 0
    %v3553 = vsel %vm3530, %v3548, 0
    %3555 = vmatpush.bf16.msra.mxu0 0
    %3556 = vmatpush.bf16.msra.mxu0 0
    %3557 = vmatpush.bf16.msra.mxu0 0
    %3558 = vmatpush.bf16.msra.mxu0 0
    %3559 = vmatpush.bf16.msra.mxu0 0
    %3560 = vmatpush.bf16.msra.mxu0 0
    %3561 = vmatpush.bf16.msra.mxu0 0
    %3562 = vmatpush.bf16.msra.mxu0 %v3553
    %3563 = vmatmul.bf16.gmra.mxu0 %v3550
    %v3564 = vpop.f32.mrf.mxu0
    %v3565 = vadd.f32 0.0, %v3564
    %v3566 = vpop.f32.mrf.mxu0
    %3567 = vdwg.mxu0
    %v3568 = vpack.c.bf16 %v3544, %v3544
    %v3569 = vld [vmem:[#allocation11] sm:$0xff]
    %v3570 = vld [vmem:[#allocation11 + $0x8] sm:$0xff]
    %v3571 = vld [vmem:[#allocation11 + $0x10] sm:$0xff]
    %v3572 = vld [vmem:[#allocation11 + $0x18] sm:$0xff]
    %v3573 = vld [vmem:[#allocation11 + $0x20] sm:$0xff]
    %v3574 = vld [vmem:[#allocation11 + $0x28] sm:$0xff]
    %v3575 = vld [vmem:[#allocation11 + $0x30] sm:$0xff]
    %v3576 = vld [vmem:[#allocation11 + $0x38] sm:$0xff]
    %v3577 = vld [vmem:[#allocation11 + $0x40] sm:$0xff]
    %v3578 = vld [vmem:[#allocation11 + $0x48] sm:$0xff]
    %v3579 = vld [vmem:[#allocation11 + $0x50] sm:$0xff]
    %v3580 = vld [vmem:[#allocation11 + $0x58] sm:$0xff]
    %v3581 = vld [vmem:[#allocation11 + $0x60] sm:$0xff]
    %v3582 = vld [vmem:[#allocation11 + $0x68] sm:$0xff]
    %v3583 = vld [vmem:[#allocation11 + $0x70] sm:$0xff]
    %v3584 = vld [vmem:[#allocation11 + $0x78] sm:$0xff]
    %v3585 = vpack.c.bf16 %v3565, %v3565
    %v3586 = vld [vmem:[#allocation13] sm:$0xff]
    %v3587 = vld [vmem:[#allocation13 + $0x8] sm:$0xff]
    %v3588 = vld [vmem:[#allocation13 + $0x10] sm:$0xff]
    %v3589 = vld [vmem:[#allocation13 + $0x18] sm:$0xff]
    %v3590 = vld [vmem:[#allocation13 + $0x20] sm:$0xff]
    %v3591 = vld [vmem:[#allocation13 + $0x28] sm:$0xff]
    %v3592 = vld [vmem:[#allocation13 + $0x30] sm:$0xff]
    %v3593 = vld [vmem:[#allocation13 + $0x38] sm:$0xff]
    %v3594 = vld [vmem:[#allocation13 + $0x40] sm:$0xff]
    %v3595 = vld [vmem:[#allocation13 + $0x48] sm:$0xff]
    %v3596 = vld [vmem:[#allocation13 + $0x50] sm:$0xff]
    %v3597 = vld [vmem:[#allocation13 + $0x58] sm:$0xff]
    %v3598 = vld [vmem:[#allocation13 + $0x60] sm:$0xff]
    %v3599 = vld [vmem:[#allocation13 + $0x68] sm:$0xff]
    %v3600 = vld [vmem:[#allocation13 + $0x70] sm:$0xff]
    %v3601 = vld [vmem:[#allocation13 + $0x78] sm:$0xff]
    %v3618 = vunpack.c.l.b16 %v3586
    %v3619 = vunpack.c.h.b16 %v3586
    %v3620 = vunpack.c.l.b16 %v3587
    %v3621 = vunpack.c.h.b16 %v3587
    %v3622 = vunpack.c.l.b16 %v3588
    %v3623 = vunpack.c.h.b16 %v3588
    %v3624 = vunpack.c.l.b16 %v3589
    %v3625 = vunpack.c.h.b16 %v3589
    %v3626 = vunpack.c.l.b16 %v3590
    %v3627 = vunpack.c.h.b16 %v3590
    %v3628 = vunpack.c.l.b16 %v3591
    %v3629 = vunpack.c.h.b16 %v3591
    %v3630 = vunpack.c.l.b16 %v3592
    %v3631 = vunpack.c.h.b16 %v3592
    %v3632 = vunpack.c.l.b16 %v3593
    %v3633 = vunpack.c.h.b16 %v3593
    %v3634 = vunpack.c.l.b16 %v3594
    %v3635 = vunpack.c.h.b16 %v3594
    %v3636 = vunpack.c.l.b16 %v3595
    %v3637 = vunpack.c.h.b16 %v3595
    %v3638 = vunpack.c.l.b16 %v3596
    %v3639 = vunpack.c.h.b16 %v3596
    %v3640 = vunpack.c.l.b16 %v3597
    %v3641 = vunpack.c.h.b16 %v3597
    %v3642 = vunpack.c.l.b16 %v3598
    %v3643 = vunpack.c.h.b16 %v3598
    %v3644 = vunpack.c.l.b16 %v3599
    %v3645 = vunpack.c.h.b16 %v3599
    %v3646 = vunpack.c.l.b16 %v3600
    %v3647 = vunpack.c.h.b16 %v3600
    %v3648 = vunpack.c.l.b16 %v3601
    %v3649 = vunpack.c.h.b16 %v3601
    %v3650 = vpack.c.b16 %v3620, %v3618
    %v3651 = vpack.c.b16 %v3621, %v3619
    %v3652 = vpack.c.b16 %v3624, %v3622
    %v3653 = vpack.c.b16 %v3625, %v3623
    %v3654 = vpack.c.b16 %v3628, %v3626
    %v3655 = vpack.c.b16 %v3629, %v3627
    %v3656 = vpack.c.b16 %v3632, %v3630
    %v3657 = vpack.c.b16 %v3633, %v3631
    %v3658 = vpack.c.b16 %v3636, %v3634
    %v3659 = vpack.c.b16 %v3637, %v3635
    %v3660 = vpack.c.b16 %v3640, %v3638
    %v3661 = vpack.c.b16 %v3641, %v3639
    %v3662 = vpack.c.b16 %v3644, %v3642
    %v3663 = vpack.c.b16 %v3645, %v3643
    %v3664 = vpack.c.b16 %v3648, %v3646
    %v3665 = vpack.c.b16 %v3649, %v3647
    %3682 = vmatpush.bf16.msra.mxu0 %v3664
    %3683 = vmatpush.bf16.msra.mxu0 %v3662
    %3684 = vmatpush.bf16.msra.mxu0 %v3660
    %3685 = vmatpush.bf16.msra.mxu0 %v3658
    %3686 = vmatpush.bf16.msra.mxu0 %v3656
    %3687 = vmatpush.bf16.msra.mxu0 %v3654
    %3688 = vmatpush.bf16.msra.mxu0 %v3652
    %3689 = vmatpush.bf16.msra.mxu0 %v3650
    %3690 = vmatmul.bf16.gmra.mxu0 %v3585
    %v3691 = vpop.f32.mrf.mxu0
    %v3692 = vadd.f32 0.0, %v3691
    %v3693 = vpop.f32.mrf.mxu0
    %3694 = vdwg.mxu0
    %3695 = vmatpush.bf16.msra.mxu0 %v3665
    %3696 = vmatpush.bf16.msra.mxu0 %v3663
    %3697 = vmatpush.bf16.msra.mxu0 %v3661
    %3698 = vmatpush.bf16.msra.mxu0 %v3659
    %3699 = vmatpush.bf16.msra.mxu0 %v3657
    %3700 = vmatpush.bf16.msra.mxu0 %v3655
    %3701 = vmatpush.bf16.msra.mxu0 %v3653
    %3702 = vmatpush.bf16.msra.mxu0 %v3651
    %3703 = vmatmul.bf16.gmra.mxu0 %v3585
    %v3704 = vpop.f32.mrf.mxu0
    %v3705 = vadd.f32 0.0, %v3704
    %v3706 = vpop.f32.mrf.mxu0
    %3707 = vdwg.mxu0
    %v3724 = vunpack.c.l.b16 %v3569
    %v3725 = vunpack.c.h.b16 %v3569
    %v3726 = vunpack.c.l.b16 %v3570
    %v3727 = vunpack.c.h.b16 %v3570
    %v3728 = vunpack.c.l.b16 %v3571
    %v3729 = vunpack.c.h.b16 %v3571
    %v3730 = vunpack.c.l.b16 %v3572
    %v3731 = vunpack.c.h.b16 %v3572
    %v3732 = vunpack.c.l.b16 %v3573
    %v3733 = vunpack.c.h.b16 %v3573
    %v3734 = vunpack.c.l.b16 %v3574
    %v3735 = vunpack.c.h.b16 %v3574
    %v3736 = vunpack.c.l.b16 %v3575
    %v3737 = vunpack.c.h.b16 %v3575
    %v3738 = vunpack.c.l.b16 %v3576
    %v3739 = vunpack.c.h.b16 %v3576
    %v3740 = vunpack.c.l.b16 %v3577
    %v3741 = vunpack.c.h.b16 %v3577
    %v3742 = vunpack.c.l.b16 %v3578
    %v3743 = vunpack.c.h.b16 %v3578
    %v3744 = vunpack.c.l.b16 %v3579
    %v3745 = vunpack.c.h.b16 %v3579
    %v3746 = vunpack.c.l.b16 %v3580
    %v3747 = vunpack.c.h.b16 %v3580
    %v3748 = vunpack.c.l.b16 %v3581
    %v3749 = vunpack.c.h.b16 %v3581
    %v3750 = vunpack.c.l.b16 %v3582
    %v3751 = vunpack.c.h.b16 %v3582
    %v3752 = vunpack.c.l.b16 %v3583
    %v3753 = vunpack.c.h.b16 %v3583
    %v3754 = vunpack.c.l.b16 %v3584
    %v3755 = vunpack.c.h.b16 %v3584
    %v3756 = vpack.c.b16 %v3726, %v3724
    %v3757 = vpack.c.b16 %v3727, %v3725
    %v3758 = vpack.c.b16 %v3730, %v3728
    %v3759 = vpack.c.b16 %v3731, %v3729
    %v3760 = vpack.c.b16 %v3734, %v3732
    %v3761 = vpack.c.b16 %v3735, %v3733
    %v3762 = vpack.c.b16 %v3738, %v3736
    %v3763 = vpack.c.b16 %v3739, %v3737
    %v3764 = vpack.c.b16 %v3742, %v3740
    %v3765 = vpack.c.b16 %v3743, %v3741
    %v3766 = vpack.c.b16 %v3746, %v3744
    %v3767 = vpack.c.b16 %v3747, %v3745
    %v3768 = vpack.c.b16 %v3750, %v3748
    %v3769 = vpack.c.b16 %v3751, %v3749
    %v3770 = vpack.c.b16 %v3754, %v3752
    %v3771 = vpack.c.b16 %v3755, %v3753
    %3788 = vmatpush.bf16.msra.mxu0 %v3770
    %3789 = vmatpush.bf16.msra.mxu0 %v3768
    %3790 = vmatpush.bf16.msra.mxu0 %v3766
    %3791 = vmatpush.bf16.msra.mxu0 %v3764
    %3792 = vmatpush.bf16.msra.mxu0 %v3762
    %3793 = vmatpush.bf16.msra.mxu0 %v3760
    %3794 = vmatpush.bf16.msra.mxu0 %v3758
    %3795 = vmatpush.bf16.msra.mxu0 %v3756
    %3796 = vmatmul.bf16.gmra.mxu0 %v3568
    %v3797 = vpop.f32.mrf.mxu0
    %v3798 = vadd.f32 %v3692, %v3797
    %v3799 = vpop.f32.mrf.mxu0
    %3800 = vdwg.mxu0
    %3801 = vmatpush.bf16.msra.mxu0 %v3771
    %3802 = vmatpush.bf16.msra.mxu0 %v3769
    %3803 = vmatpush.bf16.msra.mxu0 %v3767
    %3804 = vmatpush.bf16.msra.mxu0 %v3765
    %3805 = vmatpush.bf16.msra.mxu0 %v3763
    %3806 = vmatpush.bf16.msra.mxu0 %v3761
    %3807 = vmatpush.bf16.msra.mxu0 %v3759
    %3808 = vmatpush.bf16.msra.mxu0 %v3757
    %3809 = vmatmul.bf16.gmra.mxu0 %v3568
    %v3810 = vpop.f32.mrf.mxu0
    %v3811 = vadd.f32 %v3705, %v3810
    %v3812 = vpop.f32.mrf.mxu0
    %3813 = vdwg.mxu0
    %v3814 = vld [vmem:[%s8] sm:$0x3]
    %v3816 = vperm.slane %v3814, 0
    %v3817 = vperm.slane %v3814, 1
    %v3820 = vadd.f32 %v3798, %v3816
    %v3821 = vadd.f32 %v3811, %v3817
    %v3822 = vmax.f32 %v3820, 0.0
    %v3823 = vmax.f32 %v3821, 0.0
    %vm3824 = vcmp.ne.f32.partialorder %v3820, %v3820
    %vm3825 = vcmp.ne.f32.partialorder %v3821, %v3821
    %v3826 = vadd.f32 %v3820, 0.0
    %v3827 = vadd.f32 %v3821, 0.0
    %v3828 = vand.u32 2147483647, %v3820
    %v3829 = vand.u32 2147483647, %v3821
    %v3830 = vsub.f32 0.0, %v3828
    %v3831 = vsub.f32 0.0, %v3829
    %v3832 = vmul.f32 %v3830, 1.442695
    %v3833 = vpow.pop %v3832
    %v3834 = vmul.f32 %v3831, 1.442695
    %v3835 = vpow.pop %v3834
    %v3836 = vadd.f32 %v3833, 1.0
    %v3837 = vlog2.pop %v3836
    %v3838 = vmul.f32 %v3837, 0.6931472
    %v3839 = vmul.f32 -0.5, %v3833
    %v3840 = vadd.f32 %v3839, 1.0
    %v3841 = vmul.f32 %v3840, %v3833
    %v3842 = vand.u32 2147483647, %v3833
    %vm3843 = vcmp.lt.f32.partialorder %v3842, 0.0004427343
    %v3844 = vsel %vm3843, %v3841, %v3838
    %v3845 = vadd.f32 %v3835, 1.0
    %v3846 = vlog2.pop %v3845
    %v3847 = vmul.f32 %v3846, 0.6931472
    %v3848 = vmul.f32 -0.5, %v3835
    %v3849 = vadd.f32 %v3848, 1.0
    %v3850 = vmul.f32 %v3849, %v3835
    %v3851 = vand.u32 2147483647, %v3835
    %vm3852 = vcmp.lt.f32.partialorder %v3851, 0.0004427343
    %v3853 = vsel %vm3852, %v3850, %v3847
    %v3854 = vadd.f32 %v3822, %v3844
    %v3855 = vadd.f32 %v3823, %v3853
    %v3856 = vsel %vm3824, %v3826, %v3854
    %v3857 = vsel %vm3825, %v3827, %v3855
    %v3858 = vtanh.pop %v3856
    %v3859 = vtanh.pop %v3857
    %v3860 = vmul.f32 %v3820, %v3858
    %v3861 = vmul.f32 %v3821, %v3859
    %v3862 = vpack.c.bf16 %v3860, %v3860
    %v3863 = vpack.c.bf16 %v3861, %v3861
    %v3864 = vld [vmem:[#allocation14] sm:$0xff]
    %v3865 = vld [vmem:[#allocation14 + $0x8] sm:$0xff]
    %v3866 = vld [vmem:[#allocation14 + $0x10] sm:$0xff]
    %v3867 = vld [vmem:[#allocation14 + $0x18] sm:$0xff]
    %v3868 = vld [vmem:[#allocation14 + $0x20] sm:$0xff]
    %v3869 = vld [vmem:[#allocation14 + $0x28] sm:$0xff]
    %v3870 = vld [vmem:[#allocation14 + $0x30] sm:$0xff]
    %v3871 = vld [vmem:[#allocation14 + $0x38] sm:$0xff]
    %v3872 = vld [vmem:[#allocation14 + $0x40] sm:$0xff]
    %v3873 = vld [vmem:[#allocation14 + $0x48] sm:$0xff]
    %v3874 = vld [vmem:[#allocation14 + $0x50] sm:$0xff]
    %v3875 = vld [vmem:[#allocation14 + $0x58] sm:$0xff]
    %v3876 = vld [vmem:[#allocation14 + $0x60] sm:$0xff]
    %v3877 = vld [vmem:[#allocation14 + $0x68] sm:$0xff]
    %v3878 = vld [vmem:[#allocation14 + $0x70] sm:$0xff]
    %v3879 = vld [vmem:[#allocation14 + $0x78] sm:$0xff]
    %v3880 = vld [vmem:[#allocation14 + $0x80] sm:$0xff]
    %v3881 = vld [vmem:[#allocation14 + $0x88] sm:$0xff]
    %v3882 = vld [vmem:[#allocation14 + $0x90] sm:$0xff]
    %v3883 = vld [vmem:[#allocation14 + $0x98] sm:$0xff]
    %v3884 = vld [vmem:[#allocation14 + $0xa0] sm:$0xff]
    %v3885 = vld [vmem:[#allocation14 + $0xa8] sm:$0xff]
    %v3886 = vld [vmem:[#allocation14 + $0xb0] sm:$0xff]
    %v3887 = vld [vmem:[#allocation14 + $0xb8] sm:$0xff]
    %v3888 = vld [vmem:[#allocation14 + $0xc0] sm:$0xff]
    %v3889 = vld [vmem:[#allocation14 + $0xc8] sm:$0xff]
    %v3890 = vld [vmem:[#allocation14 + $0xd0] sm:$0xff]
    %v3891 = vld [vmem:[#allocation14 + $0xd8] sm:$0xff]
    %v3892 = vld [vmem:[#allocation14 + $0xe0] sm:$0xff]
    %v3893 = vld [vmem:[#allocation14 + $0xe8] sm:$0xff]
    %v3894 = vld [vmem:[#allocation14 + $0xf0] sm:$0xff]
    %v3895 = vld [vmem:[#allocation14 + $0xf8] sm:$0xff]
    %v3896 = vld [vmem:[%s10] sm:$0x3]
    %v3898 = vperm.slane %v3896, 0
    %v3899 = vperm.slane %v3896, 1
    %v3934 = vunpack.c.l.b16 %v3864
    %v3935 = vunpack.c.h.b16 %v3864
    %v3936 = vunpack.c.l.b16 %v3865
    %v3937 = vunpack.c.h.b16 %v3865
    %v3938 = vunpack.c.l.b16 %v3866
    %v3939 = vunpack.c.h.b16 %v3866
    %v3940 = vunpack.c.l.b16 %v3867
    %v3941 = vunpack.c.h.b16 %v3867
    %v3942 = vunpack.c.l.b16 %v3868
    %v3943 = vunpack.c.h.b16 %v3868
    %v3944 = vunpack.c.l.b16 %v3869
    %v3945 = vunpack.c.h.b16 %v3869
    %v3946 = vunpack.c.l.b16 %v3870
    %v3947 = vunpack.c.h.b16 %v3870
    %v3948 = vunpack.c.l.b16 %v3871
    %v3949 = vunpack.c.h.b16 %v3871
    %v3950 = vunpack.c.l.b16 %v3872
    %v3951 = vunpack.c.h.b16 %v3872
    %v3952 = vunpack.c.l.b16 %v3873
    %v3953 = vunpack.c.h.b16 %v3873
    %v3954 = vunpack.c.l.b16 %v3874
    %v3955 = vunpack.c.h.b16 %v3874
    %v3956 = vunpack.c.l.b16 %v3875
    %v3957 = vunpack.c.h.b16 %v3875
    %v3958 = vunpack.c.l.b16 %v3876
    %v3959 = vunpack.c.h.b16 %v3876
    %v3960 = vunpack.c.l.b16 %v3877
    %v3961 = vunpack.c.h.b16 %v3877
    %v3962 = vunpack.c.l.b16 %v3878
    %v3963 = vunpack.c.h.b16 %v3878
    %v3964 = vunpack.c.l.b16 %v3879
    %v3965 = vunpack.c.h.b16 %v3879
    %v3966 = vunpack.c.l.b16 %v3880
    %v3967 = vunpack.c.h.b16 %v3880
    %v3968 = vunpack.c.l.b16 %v3881
    %v3969 = vunpack.c.h.b16 %v3881
    %v3970 = vunpack.c.l.b16 %v3882
    %v3971 = vunpack.c.h.b16 %v3882
    %v3972 = vunpack.c.l.b16 %v3883
    %v3973 = vunpack.c.h.b16 %v3883
    %v3974 = vunpack.c.l.b16 %v3884
    %v3975 = vunpack.c.h.b16 %v3884
    %v3976 = vunpack.c.l.b16 %v3885
    %v3977 = vunpack.c.h.b16 %v3885
    %v3978 = vunpack.c.l.b16 %v3886
    %v3979 = vunpack.c.h.b16 %v3886
    %v3980 = vunpack.c.l.b16 %v3887
    %v3981 = vunpack.c.h.b16 %v3887
    %v3982 = vunpack.c.l.b16 %v3888
    %v3983 = vunpack.c.h.b16 %v3888
    %v3984 = vunpack.c.l.b16 %v3889
    %v3985 = vunpack.c.h.b16 %v3889
    %v3986 = vunpack.c.l.b16 %v3890
    %v3987 = vunpack.c.h.b16 %v3890
    %v3988 = vunpack.c.l.b16 %v3891
    %v3989 = vunpack.c.h.b16 %v3891
    %v3990 = vunpack.c.l.b16 %v3892
    %v3991 = vunpack.c.h.b16 %v3892
    %v3992 = vunpack.c.l.b16 %v3893
    %v3993 = vunpack.c.h.b16 %v3893
    %v3994 = vunpack.c.l.b16 %v3894
    %v3995 = vunpack.c.h.b16 %v3894
    %v3996 = vunpack.c.l.b16 %v3895
    %v3997 = vunpack.c.h.b16 %v3895
    %v3998 = vpack.c.b16 %v3936, %v3934
    %v3999 = vpack.c.b16 %v3937, %v3935
    %v4000 = vpack.c.b16 %v3940, %v3938
    %v4001 = vpack.c.b16 %v3941, %v3939
    %v4002 = vpack.c.b16 %v3944, %v3942
    %v4003 = vpack.c.b16 %v3945, %v3943
    %v4004 = vpack.c.b16 %v3948, %v3946
    %v4005 = vpack.c.b16 %v3949, %v3947
    %v4006 = vpack.c.b16 %v3952, %v3950
    %v4007 = vpack.c.b16 %v3953, %v3951
    %v4008 = vpack.c.b16 %v3956, %v3954
    %v4009 = vpack.c.b16 %v3957, %v3955
    %v4010 = vpack.c.b16 %v3960, %v3958
    %v4011 = vpack.c.b16 %v3961, %v3959
    %v4012 = vpack.c.b16 %v3964, %v3962
    %v4013 = vpack.c.b16 %v3965, %v3963
    %v4014 = vpack.c.b16 %v3968, %v3966
    %v4015 = vpack.c.b16 %v3969, %v3967
    %v4016 = vpack.c.b16 %v3972, %v3970
    %v4017 = vpack.c.b16 %v3973, %v3971
    %v4018 = vpack.c.b16 %v3976, %v3974
    %v4019 = vpack.c.b16 %v3977, %v3975
    %v4020 = vpack.c.b16 %v3980, %v3978
    %v4021 = vpack.c.b16 %v3981, %v3979
    %v4022 = vpack.c.b16 %v3984, %v3982
    %v4023 = vpack.c.b16 %v3985, %v3983
    %v4024 = vpack.c.b16 %v3988, %v3986
    %v4025 = vpack.c.b16 %v3989, %v3987
    %v4026 = vpack.c.b16 %v3992, %v3990
    %v4027 = vpack.c.b16 %v3993, %v3991
    %v4028 = vpack.c.b16 %v3996, %v3994
    %v4029 = vpack.c.b16 %v3997, %v3995
    %4062 = vmatpush.bf16.msra.mxu0 %v4012
    %4063 = vmatpush.bf16.msra.mxu0 %v4010
    %4064 = vmatpush.bf16.msra.mxu0 %v4008
    %4065 = vmatpush.bf16.msra.mxu0 %v4006
    %4066 = vmatpush.bf16.msra.mxu0 %v4004
    %4067 = vmatpush.bf16.msra.mxu0 %v4002
    %4068 = vmatpush.bf16.msra.mxu0 %v4000
    %4069 = vmatpush.bf16.msra.mxu0 %v3998
    %4070 = vmatmul.bf16.gmra.mxu0 %v3862
    %v4071 = vpop.f32.mrf.mxu0
    %v4072 = vadd.f32 %v3898, %v4071
    %v4073 = vpop.f32.mrf.mxu0
    %4074 = vdwg.mxu0
    %4075 = vmatpush.bf16.msra.mxu0 %v4028
    %4076 = vmatpush.bf16.msra.mxu0 %v4026
    %4077 = vmatpush.bf16.msra.mxu0 %v4024
    %4078 = vmatpush.bf16.msra.mxu0 %v4022
    %4079 = vmatpush.bf16.msra.mxu0 %v4020
    %4080 = vmatpush.bf16.msra.mxu0 %v4018
    %4081 = vmatpush.bf16.msra.mxu0 %v4016
    %4082 = vmatpush.bf16.msra.mxu0 %v4014
    %4083 = vmatmul.bf16.gmra.mxu0 %v3863
    %v4084 = vpop.f32.mrf.mxu0
    %v4085 = vadd.f32 %v4072, %v4084
    %v4086 = vpop.f32.mrf.mxu0
    %4087 = vdwg.mxu0
    %4088 = vmatpush.bf16.msra.mxu0 %v4013
    %4089 = vmatpush.bf16.msra.mxu0 %v4011
    %4090 = vmatpush.bf16.msra.mxu0 %v4009
    %4091 = vmatpush.bf16.msra.mxu0 %v4007
    %4092 = vmatpush.bf16.msra.mxu0 %v4005
    %4093 = vmatpush.bf16.msra.mxu0 %v4003
    %4094 = vmatpush.bf16.msra.mxu0 %v4001
    %4095 = vmatpush.bf16.msra.mxu0 %v3999
    %4096 = vmatmul.bf16.gmra.mxu0 %v3862
    %v4097 = vpop.f32.mrf.mxu0
    %v4098 = vadd.f32 %v3899, %v4097
    %v4099 = vpop.f32.mrf.mxu0
    %4100 = vdwg.mxu0
    %4101 = vmatpush.bf16.msra.mxu0 %v4029
    %4102 = vmatpush.bf16.msra.mxu0 %v4027
    %4103 = vmatpush.bf16.msra.mxu0 %v4025
    %4104 = vmatpush.bf16.msra.mxu0 %v4023
    %4105 = vmatpush.bf16.msra.mxu0 %v4021
    %4106 = vmatpush.bf16.msra.mxu0 %v4019
    %4107 = vmatpush.bf16.msra.mxu0 %v4017
    %4108 = vmatpush.bf16.msra.mxu0 %v4015
    %4109 = vmatmul.bf16.gmra.mxu0 %v3863
    %v4110 = vpop.f32.mrf.mxu0
    %v4111 = vadd.f32 %v4098, %v4110
    %v4112 = vpop.f32.mrf.mxu0
    %4113 = vdwg.mxu0
    %v4114 = vmax.f32 %v4085, 0.0
    %v4115 = vmax.f32 %v4111, 0.0
    %vm4116 = vcmp.ne.f32.partialorder %v4085, %v4085
    %vm4117 = vcmp.ne.f32.partialorder %v4111, %v4111
    %v4118 = vadd.f32 %v4085, 0.0
    %v4119 = vadd.f32 %v4111, 0.0
    %v4120 = vand.u32 2147483647, %v4085
    %v4121 = vand.u32 2147483647, %v4111
    %v4122 = vsub.f32 0.0, %v4120
    %v4123 = vsub.f32 0.0, %v4121
    %v4124 = vmul.f32 %v4122, 1.442695
    %v4125 = vpow.pop %v4124
    %v4126 = vmul.f32 %v4123, 1.442695
    %v4127 = vpow.pop %v4126
    %v4128 = vadd.f32 %v4125, 1.0
    %v4129 = vlog2.pop %v4128
    %v4130 = vmul.f32 %v4129, 0.6931472
    %v4131 = vmul.f32 -0.5, %v4125
    %v4132 = vadd.f32 %v4131, 1.0
    %v4133 = vmul.f32 %v4132, %v4125
    %v4134 = vand.u32 2147483647, %v4125
    %vm4135 = vcmp.lt.f32.partialorder %v4134, 0.0004427343
    %v4136 = vsel %vm4135, %v4133, %v4130
    %v4137 = vadd.f32 %v4127, 1.0
    %v4138 = vlog2.pop %v4137
    %v4139 = vmul.f32 %v4138, 0.6931472
    %v4140 = vmul.f32 -0.5, %v4127
    %v4141 = vadd.f32 %v4140, 1.0
    %v4142 = vmul.f32 %v4141, %v4127
    %v4143 = vand.u32 2147483647, %v4127
    %vm4144 = vcmp.lt.f32.partialorder %v4143, 0.0004427343
    %v4145 = vsel %vm4144, %v4142, %v4139
    %v4146 = vadd.f32 %v4114, %v4136
    %v4147 = vadd.f32 %v4115, %v4145
    %v4148 = vsel %vm4116, %v4118, %v4146
    %v4149 = vsel %vm4117, %v4119, %v4147
    %v4150 = vtanh.pop %v4148
    %v4151 = vtanh.pop %v4149
    %v4152 = vmul.f32 %v4085, %v4150
    %v4153 = vmul.f32 %v4111, %v4151
    %v4154 = vpack.c.bf16 %v4152, %v4152
    %v4155 = vpack.c.bf16 %v4153, %v4153
    %v4156 = vld [vmem:[#allocation16] sm:$0xf]
    %v4157 = vld [vmem:[#allocation16 + $0x4] sm:$0xf]
    %v4158 = vld [vmem:[#allocation16 + $0x8] sm:$0xf]
    %v4159 = vld [vmem:[#allocation16 + $0xc] sm:$0xf]
    %v4160 = vld [vmem:[#allocation16 + $0x10] sm:$0xf]
    %v4161 = vld [vmem:[#allocation16 + $0x14] sm:$0xf]
    %v4162 = vld [vmem:[#allocation16 + $0x18] sm:$0xf]
    %v4163 = vld [vmem:[#allocation16 + $0x1c] sm:$0xf]
    %v4164 = vld [vmem:[#allocation16 + $0x20] sm:$0xf]
    %v4165 = vld [vmem:[#allocation16 + $0x24] sm:$0xf]
    %v4166 = vld [vmem:[#allocation16 + $0x28] sm:$0xf]
    %v4167 = vld [vmem:[#allocation16 + $0x2c] sm:$0xf]
    %v4168 = vld [vmem:[#allocation16 + $0x30] sm:$0xf]
    %v4169 = vld [vmem:[#allocation16 + $0x34] sm:$0xf]
    %v4170 = vld [vmem:[#allocation16 + $0x38] sm:$0xf]
    %v4171 = vld [vmem:[#allocation16 + $0x3c] sm:$0xf]
    %v4172 = vld [vmem:[#allocation16 + $0x40] sm:$0xf]
    %v4173 = vld [vmem:[#allocation16 + $0x44] sm:$0xf]
    %v4174 = vld [vmem:[#allocation16 + $0x48] sm:$0xf]
    %v4175 = vld [vmem:[#allocation16 + $0x4c] sm:$0xf]
    %v4176 = vld [vmem:[#allocation16 + $0x50] sm:$0xf]
    %v4177 = vld [vmem:[#allocation16 + $0x54] sm:$0xf]
    %v4178 = vld [vmem:[#allocation16 + $0x58] sm:$0xf]
    %v4179 = vld [vmem:[#allocation16 + $0x5c] sm:$0xf]
    %v4180 = vld [vmem:[#allocation16 + $0x60] sm:$0xf]
    %v4181 = vld [vmem:[#allocation16 + $0x64] sm:$0xf]
    %v4182 = vld [vmem:[#allocation16 + $0x68] sm:$0xf]
    %v4183 = vld [vmem:[#allocation16 + $0x6c] sm:$0xf]
    %v4184 = vld [vmem:[#allocation16 + $0x70] sm:$0xf]
    %v4185 = vld [vmem:[#allocation16 + $0x74] sm:$0xf]
    %v4186 = vld [vmem:[#allocation16 + $0x78] sm:$0xf]
    %v4187 = vld [vmem:[#allocation16 + $0x7c] sm:$0xf]
    %v4188 = vld [vmem:[%s12] sm:$0x1]
    %v4190 = vperm.slane %v4188, 0
    %v4224 = vunpack.c.l.b16 %v4156
    %v4225 = vunpack.c.l.b16 %v4157
    %v4226 = vunpack.c.l.b16 %v4158
    %v4227 = vunpack.c.l.b16 %v4159
    %v4228 = vunpack.c.l.b16 %v4160
    %v4229 = vunpack.c.l.b16 %v4161
    %v4230 = vunpack.c.l.b16 %v4162
    %v4231 = vunpack.c.l.b16 %v4163
    %v4232 = vunpack.c.l.b16 %v4164
    %v4233 = vunpack.c.l.b16 %v4165
    %v4234 = vunpack.c.l.b16 %v4166
    %v4235 = vunpack.c.l.b16 %v4167
    %v4236 = vunpack.c.l.b16 %v4168
    %v4237 = vunpack.c.l.b16 %v4169
    %v4238 = vunpack.c.l.b16 %v4170
    %v4239 = vunpack.c.l.b16 %v4171
    %v4240 = vunpack.c.l.b16 %v4172
    %v4241 = vunpack.c.l.b16 %v4173
    %v4242 = vunpack.c.l.b16 %v4174
    %v4243 = vunpack.c.l.b16 %v4175
    %v4244 = vunpack.c.l.b16 %v4176
    %v4245 = vunpack.c.l.b16 %v4177
    %v4246 = vunpack.c.l.b16 %v4178
    %v4247 = vunpack.c.l.b16 %v4179
    %v4248 = vunpack.c.l.b16 %v4180
    %v4249 = vunpack.c.l.b16 %v4181
    %v4250 = vunpack.c.l.b16 %v4182
    %v4251 = vunpack.c.l.b16 %v4183
    %v4252 = vunpack.c.l.b16 %v4184
    %v4253 = vunpack.c.l.b16 %v4185
    %v4254 = vunpack.c.l.b16 %v4186
    %v4255 = vunpack.c.l.b16 %v4187
    %v4256 = vpack.c.b16 %v4225, %v4224
    %v4257 = vpack.c.b16 %v4227, %v4226
    %v4258 = vpack.c.b16 %v4229, %v4228
    %v4259 = vpack.c.b16 %v4231, %v4230
    %v4260 = vpack.c.b16 %v4233, %v4232
    %v4261 = vpack.c.b16 %v4235, %v4234
    %v4262 = vpack.c.b16 %v4237, %v4236
    %v4263 = vpack.c.b16 %v4239, %v4238
    %v4264 = vpack.c.b16 %v4241, %v4240
    %v4265 = vpack.c.b16 %v4243, %v4242
    %v4266 = vpack.c.b16 %v4245, %v4244
    %v4267 = vpack.c.b16 %v4247, %v4246
    %v4268 = vpack.c.b16 %v4249, %v4248
    %v4269 = vpack.c.b16 %v4251, %v4250
    %v4270 = vpack.c.b16 %v4253, %v4252
    %v4271 = vpack.c.b16 %v4255, %v4254
    %4288 = vmatpush.bf16.msra.mxu0 %v4263
    %4289 = vmatpush.bf16.msra.mxu0 %v4262
    %4290 = vmatpush.bf16.msra.mxu0 %v4261
    %4291 = vmatpush.bf16.msra.mxu0 %v4260
    %4292 = vmatpush.bf16.msra.mxu0 %v4259
    %4293 = vmatpush.bf16.msra.mxu0 %v4258
    %4294 = vmatpush.bf16.msra.mxu0 %v4257
    %4295 = vmatpush.bf16.msra.mxu0 %v4256
    %4296 = vmatmul.bf16.gmra.mxu0 %v4154
    %v4297 = vpop.f32.mrf.mxu0
    %v4298 = vadd.f32 %v4190, %v4297
    %v4299 = vpop.f32.mrf.mxu0
    %4300 = vdwg.mxu0
    %4301 = vmatpush.bf16.msra.mxu0 %v4271
    %4302 = vmatpush.bf16.msra.mxu0 %v4270
    %4303 = vmatpush.bf16.msra.mxu0 %v4269
    %4304 = vmatpush.bf16.msra.mxu0 %v4268
    %4305 = vmatpush.bf16.msra.mxu0 %v4267
    %4306 = vmatpush.bf16.msra.mxu0 %v4266
    %4307 = vmatpush.bf16.msra.mxu0 %v4265
    %4308 = vmatpush.bf16.msra.mxu0 %v4264
    %4309 = vmatmul.bf16.gmra.mxu0 %v4155
    %v4310 = vpop.f32.mrf.mxu0
    %v4311 = vadd.f32 %v4298, %v4310
    %v4312 = vpop.f32.mrf.mxu0
    %4313 = vdwg.mxu0
    %4314 = vst [vmem:[#allocation17] sm:$0xff] %v4311
    // Predicated region
    $region90: #{tpu_custom_call.1} parent=1 // pred_check
      _
    $region91: #{tpu_custom_call.1} parent=1 // pred_check_branch
      %4316 = sbr.rel (0) target = $region93
    $region92: #{tpu_custom_call.1} parent=1 // pred_region
      %4318 = vsyncadd [#allocation4], 0
      %s4320 = sshll.u32 [#allocation17], 4
      %s4321 = int_to_ptr.vmem [resolvable:$true] %s4320
      %s4322 = sshll.u32 %s13, 4
      %s4323 = int_to_ptr.hbm [resolvable:$true] %s4322
      %4325 = dma.vmem_to_hbm [thread:$0]  %s4321, 128, %s4323, [#allocation4]
    $region93: #{tpu_custom_call.1} parent=1 // pred_fallthru
      _
    // Predicated region
    $region94: #{tpu_custom_call.1} parent=1 // pred_check
      _
    $region95: #{tpu_custom_call.1} parent=1 // pred_check_branch
      %4327 = sbr.rel (0) target = $region97
    $region96: #{tpu_custom_call.1} parent=1 // pred_region
      %4329 = dma.done [#allocation4], 128
    $region97: #{tpu_custom_call.1} parent=1 // pred_fallthru
      _
    %4330 = vsyncpa [#allocation3], 1
    %4331 = vsyncpa [#allocation6], 1
    %4332 = vsyncpa [#allocation9], 1
    %4333 = vsyncpa [#allocation12], 1
    %4334 = vsyncpa [#allocation15], 1
    %4335 = vsyncpa [#allocation4], 1

</llo_original>
